<compile_context>
chip_gen: v7x
topology: tpu7x:2x2x1
jax: 0.10.0
libtpu: 0.0.40
codegen_flags: <defaults>
</compile_context>

<pallas_src>
import functools
import jax
import jax.numpy as jnp
from jax.experimental import pallas as pl
from jax.experimental.pallas import tpu as pltpu

EPS = 1e-5  # PyTorch LayerNorm default eps


def _layer_norm(x, gamma, beta):
    mu = jnp.mean(x, axis=-1, keepdims=True)
    var = jnp.mean((x - mu) ** 2, axis=-1, keepdims=True)
    return (x - mu) * jax.lax.rsqrt(var + EPS) * gamma + beta


# ---------------------------------------------------------------------------
# Fused decoder-layer kernel (one block of `bt` batch elements per grid step)
# ---------------------------------------------------------------------------
def decoder_layer_kernel(
        dec_ref, enc_ref,
        s_wq, s_bq, s_wk, s_bk, s_wv, s_bv, s_wo, s_bo, s_g, s_t,
        c_wq, c_bq, c_wk, c_bk, c_wv, c_bv, c_wo, c_bo, c_g, c_t,
        f_w1, f_b1, f_w2, f_b2, f_g, f_t,
        out_ref, attn_ref,
        *, n_head, d_k, d_v, bt, l_q, l_k):
    d_model = dec_ref.shape[-1]
    inv_temp = 1.0 / (d_k ** 0.5)

    # Flatten batch into the matmul M dimension; keep f32 residuals resident in VMEM.
    x_dec = dec_ref[...].reshape(bt * l_q, d_model)            # (bt*Lq, D) f32
    x_enc = enc_ref[...].reshape(bt * l_k, d_model)            # (bt*Lk, D) f32
    x_dec_b = x_dec.astype(jnp.bfloat16)                       # hoisted casts: once each
    x_enc_b = x_enc.astype(jnp.bfloat16)

    def split_heads(x, rows, d):
        # (bt*rows, H*d) -> (H*bt, rows, d).
        # Static lane slices + one stack + a flat-order-preserving reshape; avoids any
        # 4-D transpose while keeping the score/AV einsums in the safe 3-D batched form.
        xs = jnp.stack([x[:, h * d:(h + 1) * d] for h in range(n_head)], axis=0)
        return xs.reshape(n_head * bt, rows, d)

    def merge_heads(o, rows, d):
        # (H*bt, rows, d) -> (bt*rows, H*d): leading-dim reshape + lane concat, feeding a
        # single output-projection matmul with contraction K = n_head*d (no per-head
        # matmuls, no cross-head sum).
        o = o.reshape(n_head, bt * rows, d)
        return jnp.concatenate([o[h] for h in range(n_head)], axis=-1)

    def mha(xq_b16, xkv_b16, residual, rows_q, rows_k,
            wq, bq, wk, bk, wv, bv, wo, bo, g, t, exact_softmax):
        # Wide projections (M = bt*rows), bf16 operands, f32 MXU accumulation.
        q = jnp.dot(xq_b16, wq[...], preferred_element_type=jnp.float32) + bq[...]
        k = jnp.dot(xkv_b16, wk[...], preferred_element_type=jnp.float32) + bk[...]
        v = jnp.dot(xkv_b16, wv[...], preferred_element_type=jnp.float32) + bv[...]

        qh = split_heads(q, rows_q, d_k).astype(jnp.bfloat16)   # (H*bt, Lq, d_k)
        kh = split_heads(k, rows_k, d_k).astype(jnp.bfloat16)   # (H*bt, Lk, d_k)
        vh = split_heads(v, rows_k, d_v).astype(jnp.bfloat16)   # (H*bt, Lk, d_v)

        # Scores + softmax in f32 (v5e VPU/EUP have no bf16 path).
        s = jnp.einsum('zqd,zkd->zqk', qh, kh,
                       preferred_element_type=jnp.float32) * inv_temp
        s = s - jnp.max(s, axis=-1, keepdims=True)
        e = jnp.exp(s)
        den = jnp.sum(e, axis=-1, keepdims=True)
        # Exact reciprocal when the probabilities are a returned output of the layer;
        # approximate (EUP) reciprocal when they only feed the A@V product.
        a = e * pl.reciprocal(den, approx=not exact_softmax)    # (H*bt, Lq, Lk) f32

        o = jnp.einsum('zqk,zkd->zqd', a.astype(jnp.bfloat16), vh,
                       preferred_element_type=jnp.float32)      # (H*bt, Lq, d_v)
        o_m = merge_heads(o, rows_q, d_v).astype(jnp.bfloat16)  # (bt*Lq, H*d_v)
        y = jnp.dot(o_m, wo[...], preferred_element_type=jnp.float32) + bo[...]
        return _layer_norm(y + residual, g[...], t[...]), a

    # --- self-attention (its attention matrix is discarded by DecoderLayer) ---
    h1, _ = mha(x_dec_b, x_dec_b, x_dec, l_q, l_q,
                s_wq, s_bq, s_wk, s_bk, s_wv, s_bv, s_wo, s_bo, s_g, s_t,
                exact_softmax=False)
    h1_b = h1.astype(jnp.bfloat16)

    # --- encoder-decoder cross-attention (probabilities are returned) ---
    h2, a2 = mha(h1_b, x_enc_b, h1, l_q, l_k,
                 c_wq, c_bq, c_wk, c_bk, c_wv, c_bv, c_wo, c_bo, c_g, c_t,
                 exact_softmax=True)
    # (H*bt, Lq, Lk) -> (H, bt, Lq, Lk): flat-order-preserving reshape, head-major as in PyTorch.
    attn_ref[...] = a2.reshape(n_head, bt, l_q, l_k)

    # --- position-wise FFN (Conv1d(k=1) on NCL == per-position Linear) ---
    h2_b = h2.astype(jnp.bfloat16)
    hid = jnp.dot(h2_b, f_w1[...], preferred_element_type=jnp.float32) + f_b1[...]
    hid = jnp.maximum(hid, 0.0)
    y = jnp.dot(hid.astype(jnp.bfloat16), f_w2[...],
                preferred_element_type=jnp.float32) + f_b2[...]
    out = _layer_norm(y + h2, f_g[...], f_t[...])
    out_ref[...] = out.reshape(bt, l_q, d_model)

    # TODO(synk): dropout layers treated as identity (eval-mode) and mask=None hard-coded.
    # TODO(synk): for long sequences / v7x (64 MiB VMEM) an Lk-tiled online-softmax with
    #             unrolled fori_loop and an explicit vmem_limit_bytes would be needed;
    #             full score materialization is fine at these sizes.
    # TODO(synk): resident-weight BlockSpecs could be single-buffered (pl.Buffered(1)) on
    #             v7x to halve their VMEM footprint; left at the default to stay conservative.


# ---------------------------------------------------------------------------
# Wrapper
# ---------------------------------------------------------------------------
def _pick_batch_block(batch, seq_q, *, target_m=256, max_block=64):
    """Largest-enough divisor of `batch` so bt*seq_q >= target_m (MXU M-fill)."""
    divisors = [d for d in range(1, batch + 1) if batch % d == 0]
    want = max(1, -(-target_m // seq_q))          # ceil(target_m / seq_q)
    eligible = [d for d in divisors if want <= d <= max_block]
    if eligible:
        return min(eligible)
    capped = [d for d in divisors if d <= max_block]
    return max(capped) if capped else batch


def decoder_layer(dec_input, enc_output, params, *, n_head, d_k, d_v, batch_block=None):
    B, Lq, D = dec_input.shape
    Lk = enc_output.shape[1]
    bt = batch_block if batch_block is not None else _pick_batch_block(B, Lq)
    assert B % bt == 0, "batch block must divide batch"

    def attn_args(p):
        return (
            p["wq"].astype(jnp.bfloat16), p["bq"],
            p["wk"].astype(jnp.bfloat16), p["bk"],
            p["wv"].astype(jnp.bfloat16), p["bv"],
            p["wfc"].astype(jnp.bfloat16), p["bfc"],   # (n_head*d_v, D): single merged proj
            p["gamma"], p["beta"],
        )

    f = params["pos_ffn"]
    flat = (*attn_args(params["slf_attn"]),
            *attn_args(params["enc_attn"]),
            f["w1"].astype(jnp.bfloat16), f["b1"],
            f["w2"].astype(jnp.bfloat16), f["b2"],
            f["gamma"], f["beta"])

    def resident(a):  # full array, constant block index -> stays resident across the grid
        return pl.BlockSpec(a.shape, lambda b, nd=a.ndim: (0,) * nd)

    kern = functools.partial(decoder_layer_kernel, n_head=n_head, d_k=d_k, d_v=d_v,
                             bt=bt, l_q=Lq, l_k=Lk)
    out, attn = pl.pallas_call(
        kern,
        out_shape=(jax.ShapeDtypeStruct((B, Lq, D), jnp.float32),
                   jax.ShapeDtypeStruct((n_head, B, Lq, Lk), jnp.float32)),
        grid=(B // bt,),
        in_specs=[
            pl.BlockSpec((bt, Lq, D), lambda b: (b, 0, 0)),
            pl.BlockSpec((bt, Lk, D), lambda b: (b, 0, 0)),
            *[resident(a) for a in flat],
        ],
        out_specs=(
            pl.BlockSpec((bt, Lq, D), lambda b: (b, 0, 0)),
            pl.BlockSpec((n_head, bt, Lq, Lk), lambda b: (0, b, 0, 0)),
        ),
        compiler_params=pltpu.CompilerParams(dimension_semantics=("parallel",)),
    )(dec_input, enc_output, *flat)

    # (H, B, Lq, Lk) -> (H*B, Lq, Lk): contiguous reshape, no transpose pass.
    return out, attn.reshape(n_head * B, Lq, Lk)


# ---------------------------------------------------------------------------
# Deterministic synthetic parameters (weights stored pre-transposed: (in, out))
# ---------------------------------------------------------------------------
def init_params(key, d_o, d_inner, n_head, d_k, d_v):
    def attn_params(k):
        ks = jax.random.split(k, 4)
        return {
            "wq": 0.1 * jax.random.normal(ks[0], (d_o, n_head * d_k), jnp.float32),
            "bq": jnp.zeros((1, n_head * d_k), jnp.float32),
            "wk": 0.1 * jax.random.normal(ks[1], (d_o, n_head * d_k), jnp.float32),
            "bk": jnp.zeros((1, n_head * d_k), jnp.float32),
            "wv": 0.1 * jax.random.normal(ks[2], (d_o, n_head * d_v), jnp.float32),
            "bv": jnp.zeros((1, n_head * d_v), jnp.float32),
            "wfc": 0.1 * jax.random.normal(ks[3], (n_head * d_v, d_o), jnp.float32),
            "bfc": jnp.zeros((1, d_o), jnp.float32),
            "gamma": jnp.ones((1, d_o), jnp.float32),
            "beta": jnp.zeros((1, d_o), jnp.float32),
        }

    k1, k2, k3, k4 = jax.random.split(key, 4)
    return {
        "slf_attn": attn_params(k1),
        "enc_attn": attn_params(k2),
        "pos_ffn": {
            "w1": 0.1 * jax.random.normal(k3, (d_o, d_inner), jnp.float32),
            "b1": jnp.zeros((1, d_inner), jnp.float32),
            "w2": 0.1 * jax.random.normal(k4, (d_inner, d_o), jnp.float32),
            "b2": jnp.zeros((1, d_o), jnp.float32),
            "gamma": jnp.ones((1, d_o), jnp.float32),
            "beta": jnp.zeros((1, d_o), jnp.float32),
        },
    }


# ---------------------------------------------------------------------------
# Pure-JAX f32 reference (mirrors the PyTorch forward) for a loose sanity check
# ---------------------------------------------------------------------------
def _reference(dec_input, enc_output, p, *, n_head, d_k, d_v):
    def ln(x, g, b):
        mu = jnp.mean(x, -1, keepdims=True)
        var = jnp.mean((x - mu) ** 2, -1, keepdims=True)
        return (x - mu) / jnp.sqrt(var + EPS) * g + b

    def mha(q_in, kv_in, pp):
        B, Lq, D = q_in.shape
        Lk = kv_in.shape[1]
        q = (q_in @ pp["wq"] + pp["bq"]).reshape(B, Lq, n_head, d_k).transpose(0, 2, 1, 3)
        k = (kv_in @ pp["wk"] + pp["bk"]).reshape(B, Lk, n_head, d_k).transpose(0, 2, 1, 3)
        v = (kv_in @ pp["wv"] + pp["bv"]).reshape(B, Lk, n_head, d_v).transpose(0, 2, 1, 3)
        s = jnp.einsum('bhqd,bhkd->bhqk', q, k) / (d_k ** 0.5)
        a = jax.nn.softmax(s, axis=-1)
        o = jnp.einsum('bhqk,bhkd->bhqd', a, v).transpose(0, 2, 1, 3).reshape(B, Lq, n_head * d_v)
        out = ln((o @ pp["wfc"] + pp["bfc"]) + q_in, pp["gamma"], pp["beta"])
        return out, a.transpose(1, 0, 2, 3).reshape(n_head * B, Lq, Lk)

    h1, _ = mha(dec_input, dec_input, p["slf_attn"])
    h2, attn = mha(h1, enc_output, p["enc_attn"])
    f = p["pos_ffn"]
    hid = jnp.maximum(h2 @ f["w1"] + f["b1"], 0.0)
    out = ln((hid @ f["w2"] + f["b2"]) + h2, f["gamma"], f["beta"])
    return out, attn


if __name__ == "__main__":
    # Small shapes consistent with the module
    B, L_dec, L_enc = 2, 8, 8
    d_o, d_inner, n_head, d_k, d_v = 32, 64, 4, 8, 8

    key = jax.random.PRNGKey(0)
    kx, ke, kp = jax.random.split(key, 3)
    dec_input = jax.random.normal(kx, (B, L_dec, d_o), jnp.float32)
    enc_output = jax.random.normal(ke, (B, L_enc, d_o), jnp.float32)
    params = init_params(kp, d_o, d_inner, n_head, d_k, d_v)

    dec_out, dec_enc_attn = decoder_layer(
        dec_input, enc_output, params, n_head=n_head, d_k=d_k, d_v=d_v)
    jax.block_until_ready((dec_out, dec_enc_attn))

    assert dec_out.shape == (B, L_dec, d_o)
    assert dec_enc_attn.shape == (n_head * B, L_dec, L_enc)

    # Loose tolerance: kernel uses bf16 matmul operands (f32 accumulation).
    ref_out, ref_attn = _reference(dec_input, enc_output, params,
                                   n_head=n_head, d_k=d_k, d_v=d_v)
    assert float(jnp.max(jnp.abs(dec_out - ref_out))) < 0.15
    assert float(jnp.max(jnp.abs(dec_enc_attn - ref_attn))) < 0.05
    print("KERNEL_OK")
</pallas_src>

<mosaic_0001>
module attributes {stable_mosaic.version = 11 : i64} {
  func.func @decoder_layer_kernel(%arg0: i32, %arg1: memref<2x8x32xf32, #tpu.memory_space<vmem>>, %arg2: memref<2x8x32xf32, #tpu.memory_space<vmem>>, %arg3: memref<32x32xbf16, #tpu.memory_space<vmem>>, %arg4: memref<1x32xf32, #tpu.memory_space<vmem>>, %arg5: memref<32x32xbf16, #tpu.memory_space<vmem>>, %arg6: memref<1x32xf32, #tpu.memory_space<vmem>>, %arg7: memref<32x32xbf16, #tpu.memory_space<vmem>>, %arg8: memref<1x32xf32, #tpu.memory_space<vmem>>, %arg9: memref<32x32xbf16, #tpu.memory_space<vmem>>, %arg10: memref<1x32xf32, #tpu.memory_space<vmem>>, %arg11: memref<1x32xf32, #tpu.memory_space<vmem>>, %arg12: memref<1x32xf32, #tpu.memory_space<vmem>>, %arg13: memref<32x32xbf16, #tpu.memory_space<vmem>>, %arg14: memref<1x32xf32, #tpu.memory_space<vmem>>, %arg15: memref<32x32xbf16, #tpu.memory_space<vmem>>, %arg16: memref<1x32xf32, #tpu.memory_space<vmem>>, %arg17: memref<32x32xbf16, #tpu.memory_space<vmem>>, %arg18: memref<1x32xf32, #tpu.memory_space<vmem>>, %arg19: memref<32x32xbf16, #tpu.memory_space<vmem>>, %arg20: memref<1x32xf32, #tpu.memory_space<vmem>>, %arg21: memref<1x32xf32, #tpu.memory_space<vmem>>, %arg22: memref<1x32xf32, #tpu.memory_space<vmem>>, %arg23: memref<32x64xbf16, #tpu.memory_space<vmem>>, %arg24: memref<1x64xf32, #tpu.memory_space<vmem>>, %arg25: memref<64x32xbf16, #tpu.memory_space<vmem>>, %arg26: memref<1x32xf32, #tpu.memory_space<vmem>>, %arg27: memref<1x32xf32, #tpu.memory_space<vmem>>, %arg28: memref<1x32xf32, #tpu.memory_space<vmem>>, %arg29: memref<2x8x32xf32, #tpu.memory_space<vmem>>, %arg30: memref<4x2x8x8xf32, #tpu.memory_space<vmem>>) attributes {dimension_semantics = [#tpu.dimension_semantics<parallel>], iteration_bounds = array<i64: 1>, scalar_prefetch = 0 : i64, scratch_operands = 0 : i64, tpu.core_type = #tpu.core_type<tc>, window_params = [{transform_indices = @transform_0, window_bounds = array<i64: 2, 8, 32>}, {transform_indices = @transform_1, window_bounds = array<i64: 2, 8, 32>}, {pipeline_mode = #tpu.pipeline_mode<synchronous>, transform_indices = @transform_2, window_bounds = array<i64: 32, 32>}, {pipeline_mode = #tpu.pipeline_mode<synchronous>, transform_indices = @transform_3, window_bounds = array<i64: 1, 32>}, {pipeline_mode = #tpu.pipeline_mode<synchronous>, transform_indices = @transform_4, window_bounds = array<i64: 32, 32>}, {pipeline_mode = #tpu.pipeline_mode<synchronous>, transform_indices = @transform_5, window_bounds = array<i64: 1, 32>}, {pipeline_mode = #tpu.pipeline_mode<synchronous>, transform_indices = @transform_6, window_bounds = array<i64: 32, 32>}, {pipeline_mode = #tpu.pipeline_mode<synchronous>, transform_indices = @transform_7, window_bounds = array<i64: 1, 32>}, {pipeline_mode = #tpu.pipeline_mode<synchronous>, transform_indices = @transform_8, window_bounds = array<i64: 32, 32>}, {pipeline_mode = #tpu.pipeline_mode<synchronous>, transform_indices = @transform_9, window_bounds = array<i64: 1, 32>}, {pipeline_mode = #tpu.pipeline_mode<synchronous>, transform_indices = @transform_10, window_bounds = array<i64: 1, 32>}, {pipeline_mode = #tpu.pipeline_mode<synchronous>, transform_indices = @transform_11, window_bounds = array<i64: 1, 32>}, {pipeline_mode = #tpu.pipeline_mode<synchronous>, transform_indices = @transform_12, window_bounds = array<i64: 32, 32>}, {pipeline_mode = #tpu.pipeline_mode<synchronous>, transform_indices = @transform_13, window_bounds = array<i64: 1, 32>}, {pipeline_mode = #tpu.pipeline_mode<synchronous>, transform_indices = @transform_14, window_bounds = array<i64: 32, 32>}, {pipeline_mode = #tpu.pipeline_mode<synchronous>, transform_indices = @transform_15, window_bounds = array<i64: 1, 32>}, {pipeline_mode = #tpu.pipeline_mode<synchronous>, transform_indices = @transform_16, window_bounds = array<i64: 32, 32>}, {pipeline_mode = #tpu.pipeline_mode<synchronous>, transform_indices = @transform_17, window_bounds = array<i64: 1, 32>}, {pipeline_mode = #tpu.pipeline_mode<synchronous>, transform_indices = @transform_18, window_bounds = array<i64: 32, 32>}, {pipeline_mode = #tpu.pipeline_mode<synchronous>, transform_indices = @transform_19, window_bounds = array<i64: 1, 32>}, {pipeline_mode = #tpu.pipeline_mode<synchronous>, transform_indices = @transform_20, window_bounds = array<i64: 1, 32>}, {pipeline_mode = #tpu.pipeline_mode<synchronous>, transform_indices = @transform_21, window_bounds = array<i64: 1, 32>}, {pipeline_mode = #tpu.pipeline_mode<synchronous>, transform_indices = @transform_22, window_bounds = array<i64: 32, 64>}, {pipeline_mode = #tpu.pipeline_mode<synchronous>, transform_indices = @transform_23, window_bounds = array<i64: 1, 64>}, {pipeline_mode = #tpu.pipeline_mode<synchronous>, transform_indices = @transform_24, window_bounds = array<i64: 64, 32>}, {pipeline_mode = #tpu.pipeline_mode<synchronous>, transform_indices = @transform_25, window_bounds = array<i64: 1, 32>}, {pipeline_mode = #tpu.pipeline_mode<synchronous>, transform_indices = @transform_26, window_bounds = array<i64: 1, 32>}, {pipeline_mode = #tpu.pipeline_mode<synchronous>, transform_indices = @transform_27, window_bounds = array<i64: 1, 32>}, {transform_indices = @transform_28, window_bounds = array<i64: 2, 8, 32>}, {transform_indices = @transform_29, window_bounds = array<i64: 4, 2, 8, 8>}]} {
    %c0 = arith.constant 0 : index
    %c0_0 = arith.constant 0 : index
    %c0_1 = arith.constant 0 : index
    %0 = vector.load %arg1[%c0, %c0_0, %c0_1] : memref<2x8x32xf32, #tpu.memory_space<vmem>>, vector<2x8x32xf32>
    %1 = vector.shape_cast %0 : vector<2x8x32xf32> to vector<16x32xf32>
    %c0_2 = arith.constant 0 : index
    %c0_3 = arith.constant 0 : index
    %c0_4 = arith.constant 0 : index
    %2 = vector.load %arg2[%c0_2, %c0_3, %c0_4] : memref<2x8x32xf32, #tpu.memory_space<vmem>>, vector<2x8x32xf32>
    %3 = vector.shape_cast %2 : vector<2x8x32xf32> to vector<16x32xf32>
    %4 = arith.truncf %1 : vector<16x32xf32> to vector<16x32xbf16>
    %5 = arith.truncf %3 : vector<16x32xf32> to vector<16x32xbf16>
    %c0_5 = arith.constant 0 : index
    %c0_6 = arith.constant 0 : index
    %6 = vector.load %arg3[%c0_5, %c0_6] : memref<32x32xbf16, #tpu.memory_space<vmem>>, vector<32x32xbf16>
    %cst = arith.constant dense<0.000000e+00> : vector<16x32xf32>
    %7 = tpu.matmul %4, %6, %cst {dimension_numbers = #tpu.dot_dimension_numbers<[1], [0], [0], [1], [0, 0, 1, 1], [], []>} : vector<16x32xbf16>, vector<32x32xbf16>, vector<16x32xf32> -> vector<16x32xf32>
    %c0_7 = arith.constant 0 : index
    %c0_8 = arith.constant 0 : index
    %8 = vector.load %arg4[%c0_7, %c0_8] : memref<1x32xf32, #tpu.memory_space<vmem>>, vector<1x32xf32>
    %9 = vector.broadcast %8 : vector<1x32xf32> to vector<16x32xf32>
    %10 = arith.addf %7, %9 : vector<16x32xf32>
    %c0_9 = arith.constant 0 : index
    %c0_10 = arith.constant 0 : index
    %11 = vector.load %arg5[%c0_9, %c0_10] : memref<32x32xbf16, #tpu.memory_space<vmem>>, vector<32x32xbf16>
    %cst_11 = arith.constant dense<0.000000e+00> : vector<16x32xf32>
    %12 = tpu.matmul %4, %11, %cst_11 {dimension_numbers = #tpu.dot_dimension_numbers<[1], [0], [0], [1], [0, 0, 1, 1], [], []>} : vector<16x32xbf16>, vector<32x32xbf16>, vector<16x32xf32> -> vector<16x32xf32>
    %c0_12 = arith.constant 0 : index
    %c0_13 = arith.constant 0 : index
    %13 = vector.load %arg6[%c0_12, %c0_13] : memref<1x32xf32, #tpu.memory_space<vmem>>, vector<1x32xf32>
    %14 = vector.broadcast %13 : vector<1x32xf32> to vector<16x32xf32>
    %15 = arith.addf %12, %14 : vector<16x32xf32>
    %c0_14 = arith.constant 0 : index
    %c0_15 = arith.constant 0 : index
    %16 = vector.load %arg7[%c0_14, %c0_15] : memref<32x32xbf16, #tpu.memory_space<vmem>>, vector<32x32xbf16>
    %cst_16 = arith.constant dense<0.000000e+00> : vector<16x32xf32>
    %17 = tpu.matmul %4, %16, %cst_16 {dimension_numbers = #tpu.dot_dimension_numbers<[1], [0], [0], [1], [0, 0, 1, 1], [], []>} : vector<16x32xbf16>, vector<32x32xbf16>, vector<16x32xf32> -> vector<16x32xf32>
    %c0_17 = arith.constant 0 : index
    %c0_18 = arith.constant 0 : index
    %18 = vector.load %arg8[%c0_17, %c0_18] : memref<1x32xf32, #tpu.memory_space<vmem>>, vector<1x32xf32>
    %19 = vector.broadcast %18 : vector<1x32xf32> to vector<16x32xf32>
    %20 = arith.addf %17, %19 : vector<16x32xf32>
    %21 = vector.extract_strided_slice %10 {offsets = [0, 0], sizes = [16, 8], strides = [1, 1]} : vector<16x32xf32> to vector<16x8xf32>
    %22 = vector.extract_strided_slice %10 {offsets = [0, 8], sizes = [16, 8], strides = [1, 1]} : vector<16x32xf32> to vector<16x8xf32>
    %23 = vector.extract_strided_slice %10 {offsets = [0, 16], sizes = [16, 8], strides = [1, 1]} : vector<16x32xf32> to vector<16x8xf32>
    %24 = vector.extract_strided_slice %10 {offsets = [0, 24], sizes = [16, 8], strides = [1, 1]} : vector<16x32xf32> to vector<16x8xf32>
    %25 = vector.shape_cast %21 : vector<16x8xf32> to vector<1x16x8xf32>
    %26 = vector.shape_cast %22 : vector<16x8xf32> to vector<1x16x8xf32>
    %27 = vector.shape_cast %23 : vector<16x8xf32> to vector<1x16x8xf32>
    %28 = vector.shape_cast %24 : vector<16x8xf32> to vector<1x16x8xf32>
    %29 = tpu.concatenate %25, %26, %27, %28 in 0 : vector<1x16x8xf32>, vector<1x16x8xf32>, vector<1x16x8xf32>, vector<1x16x8xf32> -> vector<4x16x8xf32>
    %30 = vector.shape_cast %29 : vector<4x16x8xf32> to vector<8x8x8xf32>
    %31 = arith.truncf %30 : vector<8x8x8xf32> to vector<8x8x8xbf16>
    %32 = vector.extract_strided_slice %15 {offsets = [0, 0], sizes = [16, 8], strides = [1, 1]} : vector<16x32xf32> to vector<16x8xf32>
    %33 = vector.extract_strided_slice %15 {offsets = [0, 8], sizes = [16, 8], strides = [1, 1]} : vector<16x32xf32> to vector<16x8xf32>
    %34 = vector.extract_strided_slice %15 {offsets = [0, 16], sizes = [16, 8], strides = [1, 1]} : vector<16x32xf32> to vector<16x8xf32>
    %35 = vector.extract_strided_slice %15 {offsets = [0, 24], sizes = [16, 8], strides = [1, 1]} : vector<16x32xf32> to vector<16x8xf32>
    %36 = vector.shape_cast %32 : vector<16x8xf32> to vector<1x16x8xf32>
    %37 = vector.shape_cast %33 : vector<16x8xf32> to vector<1x16x8xf32>
    %38 = vector.shape_cast %34 : vector<16x8xf32> to vector<1x16x8xf32>
    %39 = vector.shape_cast %35 : vector<16x8xf32> to vector<1x16x8xf32>
    %40 = tpu.concatenate %36, %37, %38, %39 in 0 : vector<1x16x8xf32>, vector<1x16x8xf32>, vector<1x16x8xf32>, vector<1x16x8xf32> -> vector<4x16x8xf32>
    %41 = vector.shape_cast %40 : vector<4x16x8xf32> to vector<8x8x8xf32>
    %42 = arith.truncf %41 : vector<8x8x8xf32> to vector<8x8x8xbf16>
    %43 = vector.extract_strided_slice %20 {offsets = [0, 0], sizes = [16, 8], strides = [1, 1]} : vector<16x32xf32> to vector<16x8xf32>
    %44 = vector.extract_strided_slice %20 {offsets = [0, 8], sizes = [16, 8], strides = [1, 1]} : vector<16x32xf32> to vector<16x8xf32>
    %45 = vector.extract_strided_slice %20 {offsets = [0, 16], sizes = [16, 8], strides = [1, 1]} : vector<16x32xf32> to vector<16x8xf32>
    %46 = vector.extract_strided_slice %20 {offsets = [0, 24], sizes = [16, 8], strides = [1, 1]} : vector<16x32xf32> to vector<16x8xf32>
    %47 = vector.shape_cast %43 : vector<16x8xf32> to vector<1x16x8xf32>
    %48 = vector.shape_cast %44 : vector<16x8xf32> to vector<1x16x8xf32>
    %49 = vector.shape_cast %45 : vector<16x8xf32> to vector<1x16x8xf32>
    %50 = vector.shape_cast %46 : vector<16x8xf32> to vector<1x16x8xf32>
    %51 = tpu.concatenate %47, %48, %49, %50 in 0 : vector<1x16x8xf32>, vector<1x16x8xf32>, vector<1x16x8xf32>, vector<1x16x8xf32> -> vector<4x16x8xf32>
    %52 = vector.shape_cast %51 : vector<4x16x8xf32> to vector<8x8x8xf32>
    %53 = arith.truncf %52 : vector<8x8x8xf32> to vector<8x8x8xbf16>
    "tpu.trace_start"() <{level = 10 : i32, message = "zqd,zkd->zqk"}> : () -> ()
    %cst_19 = arith.constant dense<0.000000e+00> : vector<8x8x8xf32>
    %54 = tpu.matmul %31, %42, %cst_19 {dimension_numbers = #tpu.dot_dimension_numbers<[2], [2], [1], [1], [0, 0, 0, 1, 1, 1], [0], [0]>} : vector<8x8x8xbf16>, vector<8x8x8xbf16>, vector<8x8x8xf32> -> vector<8x8x8xf32>
    "tpu.trace_stop"() : () -> ()
    %cst_20 = arith.constant 0.353553385 : f32
    %55 = vector.broadcast %cst_20 : f32 to vector<8x8x8xf32>
    %56 = arith.mulf %54, %55 : vector<8x8x8xf32>
    %cst_21 = arith.constant dense<0xFF800000> : vector<8x8xf32>
    %57 = vector.multi_reduction <maximumf>, %56, %cst_21 [2] : vector<8x8x8xf32> to vector<8x8xf32>
    %58 = vector.shape_cast %57 : vector<8x8xf32> to vector<8x8x1xf32>
    %59 = vector.broadcast %58 : vector<8x8x1xf32> to vector<8x8x8xf32>
    %60 = arith.subf %56, %59 : vector<8x8x8xf32>
    %61 = math.exp %60 : vector<8x8x8xf32>
    %cst_22 = arith.constant dense<0.000000e+00> : vector<8x8xf32>
    %62 = vector.multi_reduction <add>, %61, %cst_22 [2] : vector<8x8x8xf32> to vector<8x8xf32>
    %63 = vector.shape_cast %62 : vector<8x8xf32> to vector<8x8x1xf32>
    %64 = tpu.reciprocal %63 {approx = true} : vector<8x8x1xf32> -> vector<8x8x1xf32>
    %65 = vector.broadcast %64 : vector<8x8x1xf32> to vector<8x8x8xf32>
    %66 = arith.mulf %61, %65 : vector<8x8x8xf32>
    %67 = arith.truncf %66 : vector<8x8x8xf32> to vector<8x8x8xbf16>
    "tpu.trace_start"() <{level = 10 : i32, message = "zqk,zkd->zqd"}> : () -> ()
    %cst_23 = arith.constant dense<0.000000e+00> : vector<8x8x8xf32>
    %68 = tpu.matmul %67, %53, %cst_23 {dimension_numbers = #tpu.dot_dimension_numbers<[2], [1], [1], [2], [0, 0, 0, 1, 1, 2], [0], [0]>} : vector<8x8x8xbf16>, vector<8x8x8xbf16>, vector<8x8x8xf32> -> vector<8x8x8xf32>
    "tpu.trace_stop"() : () -> ()
    %69 = vector.shape_cast %68 : vector<8x8x8xf32> to vector<4x16x8xf32>
    %70 = vector.extract_strided_slice %69 {offsets = [0, 0, 0], sizes = [1, 16, 8], strides = [1, 1, 1]} : vector<4x16x8xf32> to vector<1x16x8xf32>
    %71 = vector.shape_cast %70 : vector<1x16x8xf32> to vector<16x8xf32>
    %72 = vector.extract_strided_slice %69 {offsets = [1, 0, 0], sizes = [1, 16, 8], strides = [1, 1, 1]} : vector<4x16x8xf32> to vector<1x16x8xf32>
    %73 = vector.shape_cast %72 : vector<1x16x8xf32> to vector<16x8xf32>
    %74 = vector.extract_strided_slice %69 {offsets = [2, 0, 0], sizes = [1, 16, 8], strides = [1, 1, 1]} : vector<4x16x8xf32> to vector<1x16x8xf32>
    %75 = vector.shape_cast %74 : vector<1x16x8xf32> to vector<16x8xf32>
    %76 = vector.extract_strided_slice %69 {offsets = [3, 0, 0], sizes = [1, 16, 8], strides = [1, 1, 1]} : vector<4x16x8xf32> to vector<1x16x8xf32>
    %77 = vector.shape_cast %76 : vector<1x16x8xf32> to vector<16x8xf32>
    %78 = tpu.concatenate %71, %73, %75, %77 in 1 : vector<16x8xf32>, vector<16x8xf32>, vector<16x8xf32>, vector<16x8xf32> -> vector<16x32xf32>
    %79 = arith.truncf %78 : vector<16x32xf32> to vector<16x32xbf16>
    %c0_24 = arith.constant 0 : index
    %c0_25 = arith.constant 0 : index
    %80 = vector.load %arg9[%c0_24, %c0_25] : memref<32x32xbf16, #tpu.memory_space<vmem>>, vector<32x32xbf16>
    %cst_26 = arith.constant dense<0.000000e+00> : vector<16x32xf32>
    %81 = tpu.matmul %79, %80, %cst_26 {dimension_numbers = #tpu.dot_dimension_numbers<[1], [0], [0], [1], [0, 0, 1, 1], [], []>} : vector<16x32xbf16>, vector<32x32xbf16>, vector<16x32xf32> -> vector<16x32xf32>
    %c0_27 = arith.constant 0 : index
    %c0_28 = arith.constant 0 : index
    %82 = vector.load %arg10[%c0_27, %c0_28] : memref<1x32xf32, #tpu.memory_space<vmem>>, vector<1x32xf32>
    %83 = vector.broadcast %82 : vector<1x32xf32> to vector<16x32xf32>
    %84 = arith.addf %81, %83 : vector<16x32xf32>
    %85 = arith.addf %84, %1 : vector<16x32xf32>
    %c0_29 = arith.constant 0 : index
    %c0_30 = arith.constant 0 : index
    %86 = vector.load %arg11[%c0_29, %c0_30] : memref<1x32xf32, #tpu.memory_space<vmem>>, vector<1x32xf32>
    %c0_31 = arith.constant 0 : index
    %c0_32 = arith.constant 0 : index
    %87 = vector.load %arg12[%c0_31, %c0_32] : memref<1x32xf32, #tpu.memory_space<vmem>>, vector<1x32xf32>
    %cst_33 = arith.constant dense<0.000000e+00> : vector<16xf32>
    %88 = vector.multi_reduction <add>, %85, %cst_33 [1] : vector<16x32xf32> to vector<16xf32>
    %89 = vector.shape_cast %88 : vector<16xf32> to vector<16x1xf32>
    %cst_34 = arith.constant 3.200000e+01 : f32
    %90 = vector.broadcast %cst_34 : f32 to vector<16x1xf32>
    %91 = arith.divf %89, %90 : vector<16x1xf32>
    %92 = vector.broadcast %91 : vector<16x1xf32> to vector<16x32xf32>
    %93 = arith.subf %85, %92 : vector<16x32xf32>
    %94 = arith.mulf %93, %93 : vector<16x32xf32>
    %cst_35 = arith.constant dense<0.000000e+00> : vector<16xf32>
    %95 = vector.multi_reduction <add>, %94, %cst_35 [1] : vector<16x32xf32> to vector<16xf32>
    %96 = vector.shape_cast %95 : vector<16xf32> to vector<16x1xf32>
    %cst_36 = arith.constant 3.200000e+01 : f32
    %97 = vector.broadcast %cst_36 : f32 to vector<16x1xf32>
    %98 = arith.divf %96, %97 : vector<16x1xf32>
    %99 = vector.broadcast %91 : vector<16x1xf32> to vector<16x32xf32>
    %100 = arith.subf %85, %99 : vector<16x32xf32>
    %cst_37 = arith.constant 9.99999974E-6 : f32
    %101 = vector.broadcast %cst_37 : f32 to vector<16x1xf32>
    %102 = arith.addf %98, %101 : vector<16x1xf32>
    %103 = math.rsqrt %102 : vector<16x1xf32>
    %104 = vector.broadcast %103 : vector<16x1xf32> to vector<16x32xf32>
    %105 = arith.mulf %100, %104 : vector<16x32xf32>
    %106 = vector.broadcast %86 : vector<1x32xf32> to vector<16x32xf32>
    %107 = arith.mulf %105, %106 : vector<16x32xf32>
    %108 = vector.broadcast %87 : vector<1x32xf32> to vector<16x32xf32>
    %109 = arith.addf %107, %108 : vector<16x32xf32>
    %110 = arith.truncf %109 : vector<16x32xf32> to vector<16x32xbf16>
    %c0_38 = arith.constant 0 : index
    %c0_39 = arith.constant 0 : index
    %111 = vector.load %arg13[%c0_38, %c0_39] : memref<32x32xbf16, #tpu.memory_space<vmem>>, vector<32x32xbf16>
    %cst_40 = arith.constant dense<0.000000e+00> : vector<16x32xf32>
    %112 = tpu.matmul %110, %111, %cst_40 {dimension_numbers = #tpu.dot_dimension_numbers<[1], [0], [0], [1], [0, 0, 1, 1], [], []>} : vector<16x32xbf16>, vector<32x32xbf16>, vector<16x32xf32> -> vector<16x32xf32>
    %c0_41 = arith.constant 0 : index
    %c0_42 = arith.constant 0 : index
    %113 = vector.load %arg14[%c0_41, %c0_42] : memref<1x32xf32, #tpu.memory_space<vmem>>, vector<1x32xf32>
    %114 = vector.broadcast %113 : vector<1x32xf32> to vector<16x32xf32>
    %115 = arith.addf %112, %114 : vector<16x32xf32>
    %c0_43 = arith.constant 0 : index
    %c0_44 = arith.constant 0 : index
    %116 = vector.load %arg15[%c0_43, %c0_44] : memref<32x32xbf16, #tpu.memory_space<vmem>>, vector<32x32xbf16>
    %cst_45 = arith.constant dense<0.000000e+00> : vector<16x32xf32>
    %117 = tpu.matmul %5, %116, %cst_45 {dimension_numbers = #tpu.dot_dimension_numbers<[1], [0], [0], [1], [0, 0, 1, 1], [], []>} : vector<16x32xbf16>, vector<32x32xbf16>, vector<16x32xf32> -> vector<16x32xf32>
    %c0_46 = arith.constant 0 : index
    %c0_47 = arith.constant 0 : index
    %118 = vector.load %arg16[%c0_46, %c0_47] : memref<1x32xf32, #tpu.memory_space<vmem>>, vector<1x32xf32>
    %119 = vector.broadcast %118 : vector<1x32xf32> to vector<16x32xf32>
    %120 = arith.addf %117, %119 : vector<16x32xf32>
    %c0_48 = arith.constant 0 : index
    %c0_49 = arith.constant 0 : index
    %121 = vector.load %arg17[%c0_48, %c0_49] : memref<32x32xbf16, #tpu.memory_space<vmem>>, vector<32x32xbf16>
    %cst_50 = arith.constant dense<0.000000e+00> : vector<16x32xf32>
    %122 = tpu.matmul %5, %121, %cst_50 {dimension_numbers = #tpu.dot_dimension_numbers<[1], [0], [0], [1], [0, 0, 1, 1], [], []>} : vector<16x32xbf16>, vector<32x32xbf16>, vector<16x32xf32> -> vector<16x32xf32>
    %c0_51 = arith.constant 0 : index
    %c0_52 = arith.constant 0 : index
    %123 = vector.load %arg18[%c0_51, %c0_52] : memref<1x32xf32, #tpu.memory_space<vmem>>, vector<1x32xf32>
    %124 = vector.broadcast %123 : vector<1x32xf32> to vector<16x32xf32>
    %125 = arith.addf %122, %124 : vector<16x32xf32>
    %126 = vector.extract_strided_slice %115 {offsets = [0, 0], sizes = [16, 8], strides = [1, 1]} : vector<16x32xf32> to vector<16x8xf32>
    %127 = vector.extract_strided_slice %115 {offsets = [0, 8], sizes = [16, 8], strides = [1, 1]} : vector<16x32xf32> to vector<16x8xf32>
    %128 = vector.extract_strided_slice %115 {offsets = [0, 16], sizes = [16, 8], strides = [1, 1]} : vector<16x32xf32> to vector<16x8xf32>
    %129 = vector.extract_strided_slice %115 {offsets = [0, 24], sizes = [16, 8], strides = [1, 1]} : vector<16x32xf32> to vector<16x8xf32>
    %130 = vector.shape_cast %126 : vector<16x8xf32> to vector<1x16x8xf32>
    %131 = vector.shape_cast %127 : vector<16x8xf32> to vector<1x16x8xf32>
    %132 = vector.shape_cast %128 : vector<16x8xf32> to vector<1x16x8xf32>
    %133 = vector.shape_cast %129 : vector<16x8xf32> to vector<1x16x8xf32>
    %134 = tpu.concatenate %130, %131, %132, %133 in 0 : vector<1x16x8xf32>, vector<1x16x8xf32>, vector<1x16x8xf32>, vector<1x16x8xf32> -> vector<4x16x8xf32>
    %135 = vector.shape_cast %134 : vector<4x16x8xf32> to vector<8x8x8xf32>
    %136 = arith.truncf %135 : vector<8x8x8xf32> to vector<8x8x8xbf16>
    %137 = vector.extract_strided_slice %120 {offsets = [0, 0], sizes = [16, 8], strides = [1, 1]} : vector<16x32xf32> to vector<16x8xf32>
    %138 = vector.extract_strided_slice %120 {offsets = [0, 8], sizes = [16, 8], strides = [1, 1]} : vector<16x32xf32> to vector<16x8xf32>
    %139 = vector.extract_strided_slice %120 {offsets = [0, 16], sizes = [16, 8], strides = [1, 1]} : vector<16x32xf32> to vector<16x8xf32>
    %140 = vector.extract_strided_slice %120 {offsets = [0, 24], sizes = [16, 8], strides = [1, 1]} : vector<16x32xf32> to vector<16x8xf32>
    %141 = vector.shape_cast %137 : vector<16x8xf32> to vector<1x16x8xf32>
    %142 = vector.shape_cast %138 : vector<16x8xf32> to vector<1x16x8xf32>
    %143 = vector.shape_cast %139 : vector<16x8xf32> to vector<1x16x8xf32>
    %144 = vector.shape_cast %140 : vector<16x8xf32> to vector<1x16x8xf32>
    %145 = tpu.concatenate %141, %142, %143, %144 in 0 : vector<1x16x8xf32>, vector<1x16x8xf32>, vector<1x16x8xf32>, vector<1x16x8xf32> -> vector<4x16x8xf32>
    %146 = vector.shape_cast %145 : vector<4x16x8xf32> to vector<8x8x8xf32>
    %147 = arith.truncf %146 : vector<8x8x8xf32> to vector<8x8x8xbf16>
    %148 = vector.extract_strided_slice %125 {offsets = [0, 0], sizes = [16, 8], strides = [1, 1]} : vector<16x32xf32> to vector<16x8xf32>
    %149 = vector.extract_strided_slice %125 {offsets = [0, 8], sizes = [16, 8], strides = [1, 1]} : vector<16x32xf32> to vector<16x8xf32>
    %150 = vector.extract_strided_slice %125 {offsets = [0, 16], sizes = [16, 8], strides = [1, 1]} : vector<16x32xf32> to vector<16x8xf32>
    %151 = vector.extract_strided_slice %125 {offsets = [0, 24], sizes = [16, 8], strides = [1, 1]} : vector<16x32xf32> to vector<16x8xf32>
    %152 = vector.shape_cast %148 : vector<16x8xf32> to vector<1x16x8xf32>
    %153 = vector.shape_cast %149 : vector<16x8xf32> to vector<1x16x8xf32>
    %154 = vector.shape_cast %150 : vector<16x8xf32> to vector<1x16x8xf32>
    %155 = vector.shape_cast %151 : vector<16x8xf32> to vector<1x16x8xf32>
    %156 = tpu.concatenate %152, %153, %154, %155 in 0 : vector<1x16x8xf32>, vector<1x16x8xf32>, vector<1x16x8xf32>, vector<1x16x8xf32> -> vector<4x16x8xf32>
    %157 = vector.shape_cast %156 : vector<4x16x8xf32> to vector<8x8x8xf32>
    %158 = arith.truncf %157 : vector<8x8x8xf32> to vector<8x8x8xbf16>
    "tpu.trace_start"() <{level = 10 : i32, message = "zqd,zkd->zqk"}> : () -> ()
    %cst_53 = arith.constant dense<0.000000e+00> : vector<8x8x8xf32>
    %159 = tpu.matmul %136, %147, %cst_53 {dimension_numbers = #tpu.dot_dimension_numbers<[2], [2], [1], [1], [0, 0, 0, 1, 1, 1], [0], [0]>} : vector<8x8x8xbf16>, vector<8x8x8xbf16>, vector<8x8x8xf32> -> vector<8x8x8xf32>
    "tpu.trace_stop"() : () -> ()
    %cst_54 = arith.constant 0.353553385 : f32
    %160 = vector.broadcast %cst_54 : f32 to vector<8x8x8xf32>
    %161 = arith.mulf %159, %160 : vector<8x8x8xf32>
    %cst_55 = arith.constant dense<0xFF800000> : vector<8x8xf32>
    %162 = vector.multi_reduction <maximumf>, %161, %cst_55 [2] : vector<8x8x8xf32> to vector<8x8xf32>
    %163 = vector.shape_cast %162 : vector<8x8xf32> to vector<8x8x1xf32>
    %164 = vector.broadcast %163 : vector<8x8x1xf32> to vector<8x8x8xf32>
    %165 = arith.subf %161, %164 : vector<8x8x8xf32>
    %166 = math.exp %165 : vector<8x8x8xf32>
    %cst_56 = arith.constant dense<0.000000e+00> : vector<8x8xf32>
    %167 = vector.multi_reduction <add>, %166, %cst_56 [2] : vector<8x8x8xf32> to vector<8x8xf32>
    %168 = vector.shape_cast %167 : vector<8x8xf32> to vector<8x8x1xf32>
    %169 = tpu.reciprocal %168 : vector<8x8x1xf32> -> vector<8x8x1xf32>
    %170 = vector.broadcast %169 : vector<8x8x1xf32> to vector<8x8x8xf32>
    %171 = arith.mulf %166, %170 : vector<8x8x8xf32>
    %172 = arith.truncf %171 : vector<8x8x8xf32> to vector<8x8x8xbf16>
    "tpu.trace_start"() <{level = 10 : i32, message = "zqk,zkd->zqd"}> : () -> ()
    %cst_57 = arith.constant dense<0.000000e+00> : vector<8x8x8xf32>
    %173 = tpu.matmul %172, %158, %cst_57 {dimension_numbers = #tpu.dot_dimension_numbers<[2], [1], [1], [2], [0, 0, 0, 1, 1, 2], [0], [0]>} : vector<8x8x8xbf16>, vector<8x8x8xbf16>, vector<8x8x8xf32> -> vector<8x8x8xf32>
    "tpu.trace_stop"() : () -> ()
    %174 = vector.shape_cast %173 : vector<8x8x8xf32> to vector<4x16x8xf32>
    %175 = vector.extract_strided_slice %174 {offsets = [0, 0, 0], sizes = [1, 16, 8], strides = [1, 1, 1]} : vector<4x16x8xf32> to vector<1x16x8xf32>
    %176 = vector.shape_cast %175 : vector<1x16x8xf32> to vector<16x8xf32>
    %177 = vector.extract_strided_slice %174 {offsets = [1, 0, 0], sizes = [1, 16, 8], strides = [1, 1, 1]} : vector<4x16x8xf32> to vector<1x16x8xf32>
    %178 = vector.shape_cast %177 : vector<1x16x8xf32> to vector<16x8xf32>
    %179 = vector.extract_strided_slice %174 {offsets = [2, 0, 0], sizes = [1, 16, 8], strides = [1, 1, 1]} : vector<4x16x8xf32> to vector<1x16x8xf32>
    %180 = vector.shape_cast %179 : vector<1x16x8xf32> to vector<16x8xf32>
    %181 = vector.extract_strided_slice %174 {offsets = [3, 0, 0], sizes = [1, 16, 8], strides = [1, 1, 1]} : vector<4x16x8xf32> to vector<1x16x8xf32>
    %182 = vector.shape_cast %181 : vector<1x16x8xf32> to vector<16x8xf32>
    %183 = tpu.concatenate %176, %178, %180, %182 in 1 : vector<16x8xf32>, vector<16x8xf32>, vector<16x8xf32>, vector<16x8xf32> -> vector<16x32xf32>
    %184 = arith.truncf %183 : vector<16x32xf32> to vector<16x32xbf16>
    %c0_58 = arith.constant 0 : index
    %c0_59 = arith.constant 0 : index
    %185 = vector.load %arg19[%c0_58, %c0_59] : memref<32x32xbf16, #tpu.memory_space<vmem>>, vector<32x32xbf16>
    %cst_60 = arith.constant dense<0.000000e+00> : vector<16x32xf32>
    %186 = tpu.matmul %184, %185, %cst_60 {dimension_numbers = #tpu.dot_dimension_numbers<[1], [0], [0], [1], [0, 0, 1, 1], [], []>} : vector<16x32xbf16>, vector<32x32xbf16>, vector<16x32xf32> -> vector<16x32xf32>
    %c0_61 = arith.constant 0 : index
    %c0_62 = arith.constant 0 : index
    %187 = vector.load %arg20[%c0_61, %c0_62] : memref<1x32xf32, #tpu.memory_space<vmem>>, vector<1x32xf32>
    %188 = vector.broadcast %187 : vector<1x32xf32> to vector<16x32xf32>
    %189 = arith.addf %186, %188 : vector<16x32xf32>
    %190 = arith.addf %189, %109 : vector<16x32xf32>
    %c0_63 = arith.constant 0 : index
    %c0_64 = arith.constant 0 : index
    %191 = vector.load %arg21[%c0_63, %c0_64] : memref<1x32xf32, #tpu.memory_space<vmem>>, vector<1x32xf32>
    %c0_65 = arith.constant 0 : index
    %c0_66 = arith.constant 0 : index
    %192 = vector.load %arg22[%c0_65, %c0_66] : memref<1x32xf32, #tpu.memory_space<vmem>>, vector<1x32xf32>
    %cst_67 = arith.constant dense<0.000000e+00> : vector<16xf32>
    %193 = vector.multi_reduction <add>, %190, %cst_67 [1] : vector<16x32xf32> to vector<16xf32>
    %194 = vector.shape_cast %193 : vector<16xf32> to vector<16x1xf32>
    %cst_68 = arith.constant 3.200000e+01 : f32
    %195 = vector.broadcast %cst_68 : f32 to vector<16x1xf32>
    %196 = arith.divf %194, %195 : vector<16x1xf32>
    %197 = vector.broadcast %196 : vector<16x1xf32> to vector<16x32xf32>
    %198 = arith.subf %190, %197 : vector<16x32xf32>
    %199 = arith.mulf %198, %198 : vector<16x32xf32>
    %cst_69 = arith.constant dense<0.000000e+00> : vector<16xf32>
    %200 = vector.multi_reduction <add>, %199, %cst_69 [1] : vector<16x32xf32> to vector<16xf32>
    %201 = vector.shape_cast %200 : vector<16xf32> to vector<16x1xf32>
    %cst_70 = arith.constant 3.200000e+01 : f32
    %202 = vector.broadcast %cst_70 : f32 to vector<16x1xf32>
    %203 = arith.divf %201, %202 : vector<16x1xf32>
    %204 = vector.broadcast %196 : vector<16x1xf32> to vector<16x32xf32>
    %205 = arith.subf %190, %204 : vector<16x32xf32>
    %cst_71 = arith.constant 9.99999974E-6 : f32
    %206 = vector.broadcast %cst_71 : f32 to vector<16x1xf32>
    %207 = arith.addf %203, %206 : vector<16x1xf32>
    %208 = math.rsqrt %207 : vector<16x1xf32>
    %209 = vector.broadcast %208 : vector<16x1xf32> to vector<16x32xf32>
    %210 = arith.mulf %205, %209 : vector<16x32xf32>
    %211 = vector.broadcast %191 : vector<1x32xf32> to vector<16x32xf32>
    %212 = arith.mulf %210, %211 : vector<16x32xf32>
    %213 = vector.broadcast %192 : vector<1x32xf32> to vector<16x32xf32>
    %214 = arith.addf %212, %213 : vector<16x32xf32>
    %215 = vector.shape_cast %171 : vector<8x8x8xf32> to vector<4x2x8x8xf32>
    %c0_72 = arith.constant 0 : index
    %c0_73 = arith.constant 0 : index
    %c0_74 = arith.constant 0 : index
    %c0_75 = arith.constant 0 : index
    %216 = vector.load %arg30[%c0_72, %c0_73, %c0_74, %c0_75] : memref<4x2x8x8xf32, #tpu.memory_space<vmem>>, vector<4x2x8x8xf32>
    tpu.vector_store %arg30[%c0_72, %c0_73, %c0_74, %c0_75], %215 {strides = array<i32>} : memref<4x2x8x8xf32, #tpu.memory_space<vmem>>, vector<4x2x8x8xf32>,
    %217 = arith.truncf %214 : vector<16x32xf32> to vector<16x32xbf16>
    %c0_76 = arith.constant 0 : index
    %c0_77 = arith.constant 0 : index
    %218 = vector.load %arg23[%c0_76, %c0_77] : memref<32x64xbf16, #tpu.memory_space<vmem>>, vector<32x64xbf16>
    %cst_78 = arith.constant dense<0.000000e+00> : vector<16x64xf32>
    %219 = tpu.matmul %217, %218, %cst_78 {dimension_numbers = #tpu.dot_dimension_numbers<[1], [0], [0], [1], [0, 0, 1, 1], [], []>} : vector<16x32xbf16>, vector<32x64xbf16>, vector<16x64xf32> -> vector<16x64xf32>
    %c0_79 = arith.constant 0 : index
    %c0_80 = arith.constant 0 : index
    %220 = vector.load %arg24[%c0_79, %c0_80] : memref<1x64xf32, #tpu.memory_space<vmem>>, vector<1x64xf32>
    %221 = vector.broadcast %220 : vector<1x64xf32> to vector<16x64xf32>
    %222 = arith.addf %219, %221 : vector<16x64xf32>
    %cst_81 = arith.constant 0.000000e+00 : f32
    %223 = vector.broadcast %cst_81 : f32 to vector<16x64xf32>
    %224 = arith.maximumf %222, %223 : vector<16x64xf32>
    %225 = arith.truncf %224 : vector<16x64xf32> to vector<16x64xbf16>
    %c0_82 = arith.constant 0 : index
    %c0_83 = arith.constant 0 : index
    %226 = vector.load %arg25[%c0_82, %c0_83] : memref<64x32xbf16, #tpu.memory_space<vmem>>, vector<64x32xbf16>
    %cst_84 = arith.constant dense<0.000000e+00> : vector<16x32xf32>
    %227 = tpu.matmul %225, %226, %cst_84 {dimension_numbers = #tpu.dot_dimension_numbers<[1], [0], [0], [1], [0, 0, 1, 1], [], []>} : vector<16x64xbf16>, vector<64x32xbf16>, vector<16x32xf32> -> vector<16x32xf32>
    %c0_85 = arith.constant 0 : index
    %c0_86 = arith.constant 0 : index
    %228 = vector.load %arg26[%c0_85, %c0_86] : memref<1x32xf32, #tpu.memory_space<vmem>>, vector<1x32xf32>
    %229 = vector.broadcast %228 : vector<1x32xf32> to vector<16x32xf32>
    %230 = arith.addf %227, %229 : vector<16x32xf32>
    %231 = arith.addf %230, %214 : vector<16x32xf32>
    %c0_87 = arith.constant 0 : index
    %c0_88 = arith.constant 0 : index
    %232 = vector.load %arg27[%c0_87, %c0_88] : memref<1x32xf32, #tpu.memory_space<vmem>>, vector<1x32xf32>
    %c0_89 = arith.constant 0 : index
    %c0_90 = arith.constant 0 : index
    %233 = vector.load %arg28[%c0_89, %c0_90] : memref<1x32xf32, #tpu.memory_space<vmem>>, vector<1x32xf32>
    %cst_91 = arith.constant dense<0.000000e+00> : vector<16xf32>
    %234 = vector.multi_reduction <add>, %231, %cst_91 [1] : vector<16x32xf32> to vector<16xf32>
    %235 = vector.shape_cast %234 : vector<16xf32> to vector<16x1xf32>
    %cst_92 = arith.constant 3.200000e+01 : f32
    %236 = vector.broadcast %cst_92 : f32 to vector<16x1xf32>
    %237 = arith.divf %235, %236 : vector<16x1xf32>
    %238 = vector.broadcast %237 : vector<16x1xf32> to vector<16x32xf32>
    %239 = arith.subf %231, %238 : vector<16x32xf32>
    %240 = arith.mulf %239, %239 : vector<16x32xf32>
    %cst_93 = arith.constant dense<0.000000e+00> : vector<16xf32>
    %241 = vector.multi_reduction <add>, %240, %cst_93 [1] : vector<16x32xf32> to vector<16xf32>
    %242 = vector.shape_cast %241 : vector<16xf32> to vector<16x1xf32>
    %cst_94 = arith.constant 3.200000e+01 : f32
    %243 = vector.broadcast %cst_94 : f32 to vector<16x1xf32>
    %244 = arith.divf %242, %243 : vector<16x1xf32>
    %245 = vector.broadcast %237 : vector<16x1xf32> to vector<16x32xf32>
    %246 = arith.subf %231, %245 : vector<16x32xf32>
    %cst_95 = arith.constant 9.99999974E-6 : f32
    %247 = vector.broadcast %cst_95 : f32 to vector<16x1xf32>
    %248 = arith.addf %244, %247 : vector<16x1xf32>
    %249 = math.rsqrt %248 : vector<16x1xf32>
    %250 = vector.broadcast %249 : vector<16x1xf32> to vector<16x32xf32>
    %251 = arith.mulf %246, %250 : vector<16x32xf32>
    %252 = vector.broadcast %232 : vector<1x32xf32> to vector<16x32xf32>
    %253 = arith.mulf %251, %252 : vector<16x32xf32>
    %254 = vector.broadcast %233 : vector<1x32xf32> to vector<16x32xf32>
    %255 = arith.addf %253, %254 : vector<16x32xf32>
    %256 = vector.shape_cast %255 : vector<16x32xf32> to vector<2x8x32xf32>
    %c0_96 = arith.constant 0 : index
    %c0_97 = arith.constant 0 : index
    %c0_98 = arith.constant 0 : index
    %257 = vector.load %arg29[%c0_96, %c0_97, %c0_98] : memref<2x8x32xf32, #tpu.memory_space<vmem>>, vector<2x8x32xf32>
    tpu.vector_store %arg29[%c0_96, %c0_97, %c0_98], %256 {strides = array<i32>} : memref<2x8x32xf32, #tpu.memory_space<vmem>>, vector<2x8x32xf32>,
    return
  }
  func.func @transform_0(%arg0: i32) -> (i32, i32, i32) {
    %c0_i32 = arith.constant 0 : i32
    %c0_i32_0 = arith.constant 0 : i32
    %c0_i32_1 = arith.constant 0 : i32
    return %arg0, %c0_i32, %c0_i32_0 : i32, i32, i32
  }
  func.func @transform_1(%arg0: i32) -> (i32, i32, i32) {
    %c0_i32 = arith.constant 0 : i32
    %c0_i32_0 = arith.constant 0 : i32
    %c0_i32_1 = arith.constant 0 : i32
    return %arg0, %c0_i32, %c0_i32_0 : i32, i32, i32
  }
  func.func @transform_2(%arg0: i32) -> (i32, i32) {
    %c0_i32 = arith.constant 0 : i32
    %c0_i32_0 = arith.constant 0 : i32
    %c0_i32_1 = arith.constant 0 : i32
    return %c0_i32, %c0_i32_0 : i32, i32
  }
  func.func @transform_3(%arg0: i32) -> (i32, i32) {
    %c0_i32 = arith.constant 0 : i32
    %c0_i32_0 = arith.constant 0 : i32
    %c0_i32_1 = arith.constant 0 : i32
    return %c0_i32, %c0_i32_0 : i32, i32
  }
  func.func @transform_4(%arg0: i32) -> (i32, i32) {
    %c0_i32 = arith.constant 0 : i32
    %c0_i32_0 = arith.constant 0 : i32
    %c0_i32_1 = arith.constant 0 : i32
    return %c0_i32, %c0_i32_0 : i32, i32
  }
  func.func @transform_5(%arg0: i32) -> (i32, i32) {
    %c0_i32 = arith.constant 0 : i32
    %c0_i32_0 = arith.constant 0 : i32
    %c0_i32_1 = arith.constant 0 : i32
    return %c0_i32, %c0_i32_0 : i32, i32
  }
  func.func @transform_6(%arg0: i32) -> (i32, i32) {
    %c0_i32 = arith.constant 0 : i32
    %c0_i32_0 = arith.constant 0 : i32
    %c0_i32_1 = arith.constant 0 : i32
    return %c0_i32, %c0_i32_0 : i32, i32
  }
  func.func @transform_7(%arg0: i32) -> (i32, i32) {
    %c0_i32 = arith.constant 0 : i32
    %c0_i32_0 = arith.constant 0 : i32
    %c0_i32_1 = arith.constant 0 : i32
    return %c0_i32, %c0_i32_0 : i32, i32
  }
  func.func @transform_8(%arg0: i32) -> (i32, i32) {
    %c0_i32 = arith.constant 0 : i32
    %c0_i32_0 = arith.constant 0 : i32
    %c0_i32_1 = arith.constant 0 : i32
    return %c0_i32, %c0_i32_0 : i32, i32
  }
  func.func @transform_9(%arg0: i32) -> (i32, i32) {
    %c0_i32 = arith.constant 0 : i32
    %c0_i32_0 = arith.constant 0 : i32
    %c0_i32_1 = arith.constant 0 : i32
    return %c0_i32, %c0_i32_0 : i32, i32
  }
  func.func @transform_10(%arg0: i32) -> (i32, i32) {
    %c0_i32 = arith.constant 0 : i32
    %c0_i32_0 = arith.constant 0 : i32
    %c0_i32_1 = arith.constant 0 : i32
    return %c0_i32, %c0_i32_0 : i32, i32
  }
  func.func @transform_11(%arg0: i32) -> (i32, i32) {
    %c0_i32 = arith.constant 0 : i32
    %c0_i32_0 = arith.constant 0 : i32
    %c0_i32_1 = arith.constant 0 : i32
    return %c0_i32, %c0_i32_0 : i32, i32
  }
  func.func @transform_12(%arg0: i32) -> (i32, i32) {
    %c0_i32 = arith.constant 0 : i32
    %c0_i32_0 = arith.constant 0 : i32
    %c0_i32_1 = arith.constant 0 : i32
    return %c0_i32, %c0_i32_0 : i32, i32
  }
  func.func @transform_13(%arg0: i32) -> (i32, i32) {
    %c0_i32 = arith.constant 0 : i32
    %c0_i32_0 = arith.constant 0 : i32
    %c0_i32_1 = arith.constant 0 : i32
    return %c0_i32, %c0_i32_0 : i32, i32
  }
  func.func @transform_14(%arg0: i32) -> (i32, i32) {
    %c0_i32 = arith.constant 0 : i32
    %c0_i32_0 = arith.constant 0 : i32
    %c0_i32_1 = arith.constant 0 : i32
    return %c0_i32, %c0_i32_0 : i32, i32
  }
  func.func @transform_15(%arg0: i32) -> (i32, i32) {
    %c0_i32 = arith.constant 0 : i32
    %c0_i32_0 = arith.constant 0 : i32
    %c0_i32_1 = arith.constant 0 : i32
    return %c0_i32, %c0_i32_0 : i32, i32
  }
  func.func @transform_16(%arg0: i32) -> (i32, i32) {
    %c0_i32 = arith.constant 0 : i32
    %c0_i32_0 = arith.constant 0 : i32
    %c0_i32_1 = arith.constant 0 : i32
    return %c0_i32, %c0_i32_0 : i32, i32
  }
  func.func @transform_17(%arg0: i32) -> (i32, i32) {
    %c0_i32 = arith.constant 0 : i32
    %c0_i32_0 = arith.constant 0 : i32
    %c0_i32_1 = arith.constant 0 : i32
    return %c0_i32, %c0_i32_0 : i32, i32
  }
  func.func @transform_18(%arg0: i32) -> (i32, i32) {
    %c0_i32 = arith.constant 0 : i32
    %c0_i32_0 = arith.constant 0 : i32
    %c0_i32_1 = arith.constant 0 : i32
    return %c0_i32, %c0_i32_0 : i32, i32
  }
  func.func @transform_19(%arg0: i32) -> (i32, i32) {
    %c0_i32 = arith.constant 0 : i32
    %c0_i32_0 = arith.constant 0 : i32
    %c0_i32_1 = arith.constant 0 : i32
    return %c0_i32, %c0_i32_0 : i32, i32
  }
  func.func @transform_20(%arg0: i32) -> (i32, i32) {
    %c0_i32 = arith.constant 0 : i32
    %c0_i32_0 = arith.constant 0 : i32
    %c0_i32_1 = arith.constant 0 : i32
    return %c0_i32, %c0_i32_0 : i32, i32
  }
  func.func @transform_21(%arg0: i32) -> (i32, i32) {
    %c0_i32 = arith.constant 0 : i32
    %c0_i32_0 = arith.constant 0 : i32
    %c0_i32_1 = arith.constant 0 : i32
    return %c0_i32, %c0_i32_0 : i32, i32
  }
  func.func @transform_22(%arg0: i32) -> (i32, i32) {
    %c0_i32 = arith.constant 0 : i32
    %c0_i32_0 = arith.constant 0 : i32
    %c0_i32_1 = arith.constant 0 : i32
    return %c0_i32, %c0_i32_0 : i32, i32
  }
  func.func @transform_23(%arg0: i32) -> (i32, i32) {
    %c0_i32 = arith.constant 0 : i32
    %c0_i32_0 = arith.constant 0 : i32
    %c0_i32_1 = arith.constant 0 : i32
    return %c0_i32, %c0_i32_0 : i32, i32
  }
  func.func @transform_24(%arg0: i32) -> (i32, i32) {
    %c0_i32 = arith.constant 0 : i32
    %c0_i32_0 = arith.constant 0 : i32
    %c0_i32_1 = arith.constant 0 : i32
    return %c0_i32, %c0_i32_0 : i32, i32
  }
  func.func @transform_25(%arg0: i32) -> (i32, i32) {
    %c0_i32 = arith.constant 0 : i32
    %c0_i32_0 = arith.constant 0 : i32
    %c0_i32_1 = arith.constant 0 : i32
    return %c0_i32, %c0_i32_0 : i32, i32
  }
  func.func @transform_26(%arg0: i32) -> (i32, i32) {
    %c0_i32 = arith.constant 0 : i32
    %c0_i32_0 = arith.constant 0 : i32
    %c0_i32_1 = arith.constant 0 : i32
    return %c0_i32, %c0_i32_0 : i32, i32
  }
  func.func @transform_27(%arg0: i32) -> (i32, i32) {
    %c0_i32 = arith.constant 0 : i32
    %c0_i32_0 = arith.constant 0 : i32
    %c0_i32_1 = arith.constant 0 : i32
    return %c0_i32, %c0_i32_0 : i32, i32
  }
  func.func @transform_28(%arg0: i32) -> (i32, i32, i32) {
    %c0_i32 = arith.constant 0 : i32
    %c0_i32_0 = arith.constant 0 : i32
    %c0_i32_1 = arith.constant 0 : i32
    return %arg0, %c0_i32, %c0_i32_0 : i32, i32, i32
  }
  func.func @transform_29(%arg0: i32) -> (i32, i32, i32, i32) {
    %c0_i32 = arith.constant 0 : i32
    %c0_i32_0 = arith.constant 0 : i32
    %c0_i32_1 = arith.constant 0 : i32
    %c0_i32_2 = arith.constant 0 : i32
    return %c0_i32, %arg0, %c0_i32_0, %c0_i32_1 : i32, i32, i32, i32
  }
}

</mosaic_0001>

<llo_original>
// kernel: tpu_custom_call.1
$region0: #{tpu_custom_call.1}
  #allocation0 [shape = 'u32[]', space=smem, size = 0x4, offset = 0x4, fixed_abs, tag = 'smem constant byte address 0x4 - core index']
  #allocation1 [shape = 'u32[144,128]{1,0:T(1,128)}', space=vmem, size = 0x12000, scoped, tag = 'internal scratch']
  %s0 = inlined_call_operand.smem [shape: u32[30], index: -1, kind: input, shape index: {}]
  %s1 = sld [smem:[%s0]]
  %s2 = scalar_lea.smem %s0, 1
  %s3 = sld [smem:[%s2]]
  %s4 = scalar_lea.smem %s0, 2
  %s5 = sld [smem:[%s4]]
  %s6 = scalar_lea.smem %s0, 3
  %s7 = sld [smem:[%s6]]
  %s8 = scalar_lea.smem %s0, 4
  %s9 = sld [smem:[%s8]]
  %s10 = scalar_lea.smem %s0, 5
  %s11 = sld [smem:[%s10]]
  %s12 = scalar_lea.smem %s0, 6
  %s13 = sld [smem:[%s12]]
  %s14 = scalar_lea.smem %s0, 7
  %s15 = sld [smem:[%s14]]
  %s16 = scalar_lea.smem %s0, 8
  %s17 = sld [smem:[%s16]]
  %s18 = scalar_lea.smem %s0, 9
  %s19 = sld [smem:[%s18]]
  %s20 = scalar_lea.smem %s0, 10
  %s21 = sld [smem:[%s20]]
  %s22 = scalar_lea.smem %s0, 11
  %s23 = sld [smem:[%s22]]
  %s24 = scalar_lea.smem %s0, 12
  %s25 = sld [smem:[%s24]]
  %s26 = scalar_lea.smem %s0, 13
  %s27 = sld [smem:[%s26]]
  %s28 = scalar_lea.smem %s0, 14
  %s29 = sld [smem:[%s28]]
  %s30 = scalar_lea.smem %s0, 15
  %s31 = sld [smem:[%s30]]
  %s32 = scalar_lea.smem %s0, 16
  %s33 = sld [smem:[%s32]]
  %s34 = scalar_lea.smem %s0, 17
  %s35 = sld [smem:[%s34]]
  %s36 = scalar_lea.smem %s0, 18
  %s37 = sld [smem:[%s36]]
  %s38 = scalar_lea.smem %s0, 19
  %s39 = sld [smem:[%s38]]
  %s40 = scalar_lea.smem %s0, 20
  %s41 = sld [smem:[%s40]]
  %s42 = scalar_lea.smem %s0, 21
  %s43 = sld [smem:[%s42]]
  %s44 = scalar_lea.smem %s0, 22
  %s45 = sld [smem:[%s44]]
  %s46 = scalar_lea.smem %s0, 23
  %s47 = sld [smem:[%s46]]
  %s48 = scalar_lea.smem %s0, 24
  %s49 = sld [smem:[%s48]]
  %s50 = scalar_lea.smem %s0, 25
  %s51 = sld [smem:[%s50]]
  %s52 = scalar_lea.smem %s0, 26
  %s53 = sld [smem:[%s52]]
  %s54 = scalar_lea.smem %s0, 27
  %s55 = sld [smem:[%s54]]
  %s56 = scalar_lea.smem %s0, 28
  %s57 = sld [smem:[%s56]]
  %s58 = scalar_lea.smem %s0, 29
  %s59 = sld [smem:[%s58]]
  %60 = xla_tuple %s57, %s59
  %s61 = sld [smem:[#allocation0]]
  $region178: #{tpu_custom_call.1} parent=0
    _
  %s63 = ssub.s32 1, %s61
  %s64 = scalar_select 0, %s63, %s61
  $region1: #{tpu_custom_call.1} parent=0
    #allocation2 [shape = 'u8[512]{0}', space=vmem, size = 0x400, scoped, tag = 'input window, operand 3, single buffered']
    #allocation3 [shape = 's32[1]{0}', space=sflag, size = 0x4, scoped, tag = 'scoped memory for tpu_custom_call.1']
    #allocation4 [shape = 's32[1]{0}', space=sflag, size = 0x4, scoped, tag = 'scoped memory for tpu_custom_call.1']
    #allocation5 [shape = 'u8[8192]{0}', space=vmem, size = 0x2000, scoped, tag = 'input window, operand 4, single buffered']
    #allocation6 [shape = 's32[1]{0}', space=sflag, size = 0x4, scoped, tag = 'scoped memory for tpu_custom_call.1']
    #allocation7 [shape = 'u8[512]{0}', space=vmem, size = 0x400, scoped, tag = 'input window, operand 5, single buffered']
    #allocation8 [shape = 'u8[512]{0}', space=vmem, size = 0x400, scoped, tag = 'input window, operand 7, single buffered']
    #allocation9 [shape = 's32[1]{0}', space=sflag, size = 0x4, scoped, tag = 'scoped memory for tpu_custom_call.1']
    #allocation10 [shape = 'u8[8192]{0}', space=vmem, size = 0x2000, scoped, tag = 'input window, operand 8, single buffered']
    #allocation11 [shape = 'u8[512]{0}', space=vmem, size = 0x400, scoped, tag = 'input window, operand 9, single buffered']
    #allocation12 [shape = 's32[1]{0}', space=sflag, size = 0x4, scoped, tag = 'scoped memory for tpu_custom_call.1']
    #allocation13 [shape = 'u8[512]{0}', space=vmem, size = 0x400, scoped, tag = 'input window, operand 10, single buffered']
    #allocation14 [shape = 'u8[512]{0}', space=vmem, size = 0x400, scoped, tag = 'input window, operand 11, single buffered']
    #allocation15 [shape = 's32[1]{0}', space=sflag, size = 0x4, scoped, tag = 'scoped memory for tpu_custom_call.1']
    #allocation16 [shape = 'u8[512]{0}', space=vmem, size = 0x400, scoped, tag = 'input window, operand 13, single buffered']
    #allocation17 [shape = 'u8[512]{0}', space=vmem, size = 0x400, scoped, tag = 'input window, operand 15, single buffered']
    #allocation18 [shape = 's32[1]{0}', space=sflag, size = 0x4, scoped, tag = 'scoped memory for tpu_custom_call.1']
    #allocation19 [shape = 'u8[8192]{0}', space=vmem, size = 0x2000, scoped, tag = 'input window, operand 16, single buffered']
    #allocation20 [shape = 'u8[512]{0}', space=vmem, size = 0x400, scoped, tag = 'input window, operand 17, single buffered']
    #allocation21 [shape = 's32[1]{0}', space=sflag, size = 0x4, scoped, tag = 'scoped memory for tpu_custom_call.1']
    #allocation22 [shape = 'u8[8192]{0}', space=vmem, size = 0x2000, scoped, tag = 'output window, operand 0, single buffered']
    #allocation23 [shape = 'u8[32768]{0}', space=vmem, size = 0x8000, scoped, tag = 'output window, operand 1, single buffered']
    #allocation24 [shape = 's32[1]{0}', space=sflag, size = 0x4, scoped, tag = 'scoped memory for tpu_custom_call.1']
    %65 = vsyncpa [#allocation3], 0
    %66 = vsyncpa [#allocation6], 0
    %67 = vsyncpa [#allocation9], 0
    %68 = vsyncpa [#allocation12], 0
    %69 = vsyncpa [#allocation15], 0
    %70 = vsyncpa [#allocation18], 0
    %71 = vsyncpa [#allocation21], 0
    %72 = vsyncpa [#allocation4], 0
    %73 = vsyncpa [#allocation24], 0
    // Predicated region
    $region2: #{tpu_custom_call.1} parent=1 // pred_check
      _
    $region3: #{tpu_custom_call.1} parent=1 // pred_check_branch
      %75 = sbr.rel (0) target = $region5
    $region4: #{tpu_custom_call.1} parent=1 // pred_region
      _
    $region5: #{tpu_custom_call.1} parent=1 // pred_fallthru
      _
    // Predicated region
    $region6: #{tpu_custom_call.1} parent=1 // pred_check
      _
    $region7: #{tpu_custom_call.1} parent=1 // pred_check_branch
      %77 = sbr.rel (0) target = $region9
    $region8: #{tpu_custom_call.1} parent=1 // pred_region
      _
    $region9: #{tpu_custom_call.1} parent=1 // pred_fallthru
      _
    // Predicated region
    $region10: #{tpu_custom_call.1} parent=1 // pred_check
      _
    $region11: #{tpu_custom_call.1} parent=1 // pred_check_branch
      %79 = sbr.rel (0) target = $region13
    $region12: #{tpu_custom_call.1} parent=1 // pred_region
      _
    $region13: #{tpu_custom_call.1} parent=1 // pred_fallthru
      _
    // Predicated region
    $region14: #{tpu_custom_call.1} parent=1 // pred_check
      _
    $region15: #{tpu_custom_call.1} parent=1 // pred_check_branch
      %81 = sbr.rel (0) target = $region17
    $region16: #{tpu_custom_call.1} parent=1 // pred_region
      %s83 = ssub.s32 16, 16
      %84 = vsyncadd [#allocation3], %s83
      %s86 = sshll.u32 [#allocation2], 4
      %s87 = int_to_ptr.vmem [resolvable:$true] %s86
      %89 = dma.hbm_to_vmem [thread:$0]  %s7, 16, %s87, [#allocation3]
    $region17: #{tpu_custom_call.1} parent=1 // pred_fallthru
      _
    // Predicated region
    $region18: #{tpu_custom_call.1} parent=1 // pred_check
      _
    $region19: #{tpu_custom_call.1} parent=1 // pred_check_branch
      %91 = sbr.rel (0) target = $region21
    $region20: #{tpu_custom_call.1} parent=1 // pred_region
      %s93 = ssub.s32 256, 256
      %94 = vsyncadd [#allocation6], %s93
      %s95 = sshll.u32 [#allocation5], 4
      %s96 = int_to_ptr.vmem [resolvable:$true] %s95
      %101 = dma.hbm_to_vmem [thread:$0]  %s9, 256, %s96, [#allocation6], 64, 64, 4
    $region21: #{tpu_custom_call.1} parent=1 // pred_fallthru
      _
    // Predicated region
    $region22: #{tpu_custom_call.1} parent=1 // pred_check
      _
    $region23: #{tpu_custom_call.1} parent=1 // pred_check_branch
      %103 = sbr.rel (0) target = $region25
    $region24: #{tpu_custom_call.1} parent=1 // pred_region
      %s105 = ssub.s32 16, 16
      %106 = vsyncadd [#allocation6], %s105
      %s108 = sshll.u32 [#allocation7], 4
      %s109 = int_to_ptr.vmem [resolvable:$true] %s108
      %111 = dma.hbm_to_vmem [thread:$0]  %s11, 16, %s109, [#allocation6]
    $region25: #{tpu_custom_call.1} parent=1 // pred_fallthru
      _
    // Predicated region
    $region26: #{tpu_custom_call.1} parent=1 // pred_check
      _
    $region27: #{tpu_custom_call.1} parent=1 // pred_check_branch
      %113 = sbr.rel (0) target = $region29
    $region28: #{tpu_custom_call.1} parent=1 // pred_region
      _
    $region29: #{tpu_custom_call.1} parent=1 // pred_fallthru
      _
    // Predicated region
    $region30: #{tpu_custom_call.1} parent=1 // pred_check
      _
    $region31: #{tpu_custom_call.1} parent=1 // pred_check_branch
      %115 = sbr.rel (0) target = $region33
    $region32: #{tpu_custom_call.1} parent=1 // pred_region
      %s117 = ssub.s32 16, 16
      %118 = vsyncadd [#allocation9], %s117
      %s120 = sshll.u32 [#allocation8], 4
      %s121 = int_to_ptr.vmem [resolvable:$true] %s120
      %123 = dma.hbm_to_vmem [thread:$0]  %s15, 16, %s121, [#allocation9]
    $region33: #{tpu_custom_call.1} parent=1 // pred_fallthru
      _
    // Predicated region
    $region34: #{tpu_custom_call.1} parent=1 // pred_check
      _
    $region35: #{tpu_custom_call.1} parent=1 // pred_check_branch
      %125 = sbr.rel (0) target = $region37
    $region36: #{tpu_custom_call.1} parent=1 // pred_region
      %s127 = ssub.s32 256, 256
      %128 = vsyncadd [#allocation9], %s127
      %s129 = sshll.u32 [#allocation10], 4
      %s130 = int_to_ptr.vmem [resolvable:$true] %s129
      %135 = dma.hbm_to_vmem [thread:$0]  %s17, 256, %s130, [#allocation9], 64, 64, 4
    $region37: #{tpu_custom_call.1} parent=1 // pred_fallthru
      _
    // Predicated region
    $region38: #{tpu_custom_call.1} parent=1 // pred_check
      _
    $region39: #{tpu_custom_call.1} parent=1 // pred_check_branch
      %137 = sbr.rel (0) target = $region41
    $region40: #{tpu_custom_call.1} parent=1 // pred_region
      %s139 = ssub.s32 16, 16
      %140 = vsyncadd [#allocation12], %s139
      %s142 = sshll.u32 [#allocation11], 4
      %s143 = int_to_ptr.vmem [resolvable:$true] %s142
      %145 = dma.hbm_to_vmem [thread:$0]  %s19, 16, %s143, [#allocation12]
    $region41: #{tpu_custom_call.1} parent=1 // pred_fallthru
      _
    // Predicated region
    $region42: #{tpu_custom_call.1} parent=1 // pred_check
      _
    $region43: #{tpu_custom_call.1} parent=1 // pred_check_branch
      %147 = sbr.rel (0) target = $region45
    $region44: #{tpu_custom_call.1} parent=1 // pred_region
      %s149 = ssub.s32 16, 16
      %150 = vsyncadd [#allocation12], %s149
      %s152 = sshll.u32 [#allocation13], 4
      %s153 = int_to_ptr.vmem [resolvable:$true] %s152
      %155 = dma.hbm_to_vmem [thread:$0]  %s21, 16, %s153, [#allocation12]
    $region45: #{tpu_custom_call.1} parent=1 // pred_fallthru
      _
    // Predicated region
    $region46: #{tpu_custom_call.1} parent=1 // pred_check
      _
    $region47: #{tpu_custom_call.1} parent=1 // pred_check_branch
      %157 = sbr.rel (0) target = $region49
    $region48: #{tpu_custom_call.1} parent=1 // pred_region
      %s159 = ssub.s32 16, 16
      %160 = vsyncadd [#allocation15], %s159
      %s162 = sshll.u32 [#allocation14], 4
      %s163 = int_to_ptr.vmem [resolvable:$true] %s162
      %165 = dma.hbm_to_vmem [thread:$0]  %s23, 16, %s163, [#allocation15]
    $region49: #{tpu_custom_call.1} parent=1 // pred_fallthru
      _
    // Predicated region
    $region50: #{tpu_custom_call.1} parent=1 // pred_check
      _
    $region51: #{tpu_custom_call.1} parent=1 // pred_check_branch
      %167 = sbr.rel (0) target = $region53
    $region52: #{tpu_custom_call.1} parent=1 // pred_region
      _
    $region53: #{tpu_custom_call.1} parent=1 // pred_fallthru
      _
    // Predicated region
    $region54: #{tpu_custom_call.1} parent=1 // pred_check
      _
    $region55: #{tpu_custom_call.1} parent=1 // pred_check_branch
      %169 = sbr.rel (0) target = $region57
    $region56: #{tpu_custom_call.1} parent=1 // pred_region
      %s171 = ssub.s32 16, 16
      %172 = vsyncadd [#allocation15], %s171
      %s174 = sshll.u32 [#allocation16], 4
      %s175 = int_to_ptr.vmem [resolvable:$true] %s174
      %177 = dma.hbm_to_vmem [thread:$0]  %s27, 16, %s175, [#allocation15]
    $region57: #{tpu_custom_call.1} parent=1 // pred_fallthru
      _
    // Predicated region
    $region58: #{tpu_custom_call.1} parent=1 // pred_check
      _
    $region59: #{tpu_custom_call.1} parent=1 // pred_check_branch
      %179 = sbr.rel (0) target = $region61
    $region60: #{tpu_custom_call.1} parent=1 // pred_region
      _
    $region61: #{tpu_custom_call.1} parent=1 // pred_fallthru
      _
    // Predicated region
    $region62: #{tpu_custom_call.1} parent=1 // pred_check
      _
    $region63: #{tpu_custom_call.1} parent=1 // pred_check_branch
      %181 = sbr.rel (0) target = $region65
    $region64: #{tpu_custom_call.1} parent=1 // pred_region
      %s183 = ssub.s32 16, 16
      %184 = vsyncadd [#allocation18], %s183
      %s186 = sshll.u32 [#allocation17], 4
      %s187 = int_to_ptr.vmem [resolvable:$true] %s186
      %189 = dma.hbm_to_vmem [thread:$0]  %s31, 16, %s187, [#allocation18]
    $region65: #{tpu_custom_call.1} parent=1 // pred_fallthru
      _
    // Predicated region
    $region66: #{tpu_custom_call.1} parent=1 // pred_check
      _
    $region67: #{tpu_custom_call.1} parent=1 // pred_check_branch
      %191 = sbr.rel (0) target = $region69
    $region68: #{tpu_custom_call.1} parent=1 // pred_region
      %s193 = ssub.s32 256, 256
      %194 = vsyncadd [#allocation18], %s193
      %s195 = sshll.u32 [#allocation19], 4
      %s196 = int_to_ptr.vmem [resolvable:$true] %s195
      %201 = dma.hbm_to_vmem [thread:$0]  %s33, 256, %s196, [#allocation18], 64, 64, 4
    $region69: #{tpu_custom_call.1} parent=1 // pred_fallthru
      _
    // Predicated region
    $region70: #{tpu_custom_call.1} parent=1 // pred_check
      _
    $region71: #{tpu_custom_call.1} parent=1 // pred_check_branch
      %203 = sbr.rel (0) target = $region73
    $region72: #{tpu_custom_call.1} parent=1 // pred_region
      %s205 = ssub.s32 16, 16
      %206 = vsyncadd [#allocation21], %s205
      %s208 = sshll.u32 [#allocation20], 4
      %s209 = int_to_ptr.vmem [resolvable:$true] %s208
      %211 = dma.hbm_to_vmem [thread:$0]  %s35, 16, %s209, [#allocation21]
    $region73: #{tpu_custom_call.1} parent=1 // pred_fallthru
      _
    // Predicated region
    $region74: #{tpu_custom_call.1} parent=1 // pred_check
      _
    $region75: #{tpu_custom_call.1} parent=1 // pred_check_branch
      %213 = sbr.rel (0) target = $region77
    $region76: #{tpu_custom_call.1} parent=1 // pred_region
      _
    $region77: #{tpu_custom_call.1} parent=1 // pred_fallthru
      _
    // Predicated region
    $region78: #{tpu_custom_call.1} parent=1 // pred_check
      _
    $region79: #{tpu_custom_call.1} parent=1 // pred_check_branch
      %215 = sbr.rel (0) target = $region81
    $region80: #{tpu_custom_call.1} parent=1 // pred_region
      _
    $region81: #{tpu_custom_call.1} parent=1 // pred_fallthru
      _
    // Predicated region
    $region82: #{tpu_custom_call.1} parent=1 // pred_check
      _
    $region83: #{tpu_custom_call.1} parent=1 // pred_check_branch
      %217 = sbr.rel (0) target = $region85
    $region84: #{tpu_custom_call.1} parent=1 // pred_region
      _
    $region85: #{tpu_custom_call.1} parent=1 // pred_fallthru
      _
    // Predicated region
    $region86: #{tpu_custom_call.1} parent=1 // pred_check
      _
    $region87: #{tpu_custom_call.1} parent=1 // pred_check_branch
      %219 = sbr.rel (0) target = $region89
    $region88: #{tpu_custom_call.1} parent=1 // pred_region
      _
    $region89: #{tpu_custom_call.1} parent=1 // pred_fallthru
      _
    // Predicated region
    $region90: #{tpu_custom_call.1} parent=1 // pred_check
      _
    $region91: #{tpu_custom_call.1} parent=1 // pred_check_branch
      %221 = sbr.rel (0) target = $region93
    $region92: #{tpu_custom_call.1} parent=1 // pred_region
      _
    $region93: #{tpu_custom_call.1} parent=1 // pred_fallthru
      _
    // Predicated region
    $region94: #{tpu_custom_call.1} parent=1 // pred_check
      _
    $region95: #{tpu_custom_call.1} parent=1 // pred_check_branch
      %223 = sbr.rel (0) target = $region97
    $region96: #{tpu_custom_call.1} parent=1 // pred_region
      _
    $region97: #{tpu_custom_call.1} parent=1 // pred_fallthru
      _
    // Predicated region
    $region98: #{tpu_custom_call.1} parent=1 // pred_check
      _
    $region99: #{tpu_custom_call.1} parent=1 // pred_check_branch
      %225 = sbr.rel (0) target = $region101
    $region100: #{tpu_custom_call.1} parent=1 // pred_region
      _
    $region101: #{tpu_custom_call.1} parent=1 // pred_fallthru
      _
    // Predicated region
    $region102: #{tpu_custom_call.1} parent=1 // pred_check
      _
    $region103: #{tpu_custom_call.1} parent=1 // pred_check_branch
      %227 = sbr.rel (0) target = $region105
    $region104: #{tpu_custom_call.1} parent=1 // pred_region
      _
    $region105: #{tpu_custom_call.1} parent=1 // pred_fallthru
      _
    // Predicated region
    $region106: #{tpu_custom_call.1} parent=1 // pred_check
      _
    $region107: #{tpu_custom_call.1} parent=1 // pred_check_branch
      %229 = sbr.rel (0) target = $region109
    $region108: #{tpu_custom_call.1} parent=1 // pred_region
      _
    $region109: #{tpu_custom_call.1} parent=1 // pred_fallthru
      _
    // Predicated region
    $region110: #{tpu_custom_call.1} parent=1 // pred_check
      _
    $region111: #{tpu_custom_call.1} parent=1 // pred_check_branch
      %231 = sbr.rel (0) target = $region113
    $region112: #{tpu_custom_call.1} parent=1 // pred_region
      _
    $region113: #{tpu_custom_call.1} parent=1 // pred_fallthru
      _
    // Predicated region
    $region114: #{tpu_custom_call.1} parent=1 // pred_check
      _
    $region115: #{tpu_custom_call.1} parent=1 // pred_check_branch
      %233 = sbr.rel (0) target = $region117
    $region116: #{tpu_custom_call.1} parent=1 // pred_region
      %234 = dma.done [#allocation3], 16
    $region117: #{tpu_custom_call.1} parent=1 // pred_fallthru
      _
    // Predicated region
    $region118: #{tpu_custom_call.1} parent=1 // pred_check
      _
    $region119: #{tpu_custom_call.1} parent=1 // pred_check_branch
      %236 = sbr.rel (0) target = $region121
    $region120: #{tpu_custom_call.1} parent=1 // pred_region
      %237 = dma.done [#allocation6], 256
    $region121: #{tpu_custom_call.1} parent=1 // pred_fallthru
      _
    // Predicated region
    $region122: #{tpu_custom_call.1} parent=1 // pred_check
      _
    $region123: #{tpu_custom_call.1} parent=1 // pred_check_branch
      %239 = sbr.rel (0) target = $region125
    $region124: #{tpu_custom_call.1} parent=1 // pred_region
      %240 = dma.done [#allocation6], 16
    $region125: #{tpu_custom_call.1} parent=1 // pred_fallthru
      _
    // Predicated region
    $region126: #{tpu_custom_call.1} parent=1 // pred_check
      _
    $region127: #{tpu_custom_call.1} parent=1 // pred_check_branch
      %242 = sbr.rel (0) target = $region129
    $region128: #{tpu_custom_call.1} parent=1 // pred_region
      %243 = dma.done [#allocation9], 16
    $region129: #{tpu_custom_call.1} parent=1 // pred_fallthru
      _
    // Predicated region
    $region130: #{tpu_custom_call.1} parent=1 // pred_check
      _
    $region131: #{tpu_custom_call.1} parent=1 // pred_check_branch
      %245 = sbr.rel (0) target = $region133
    $region132: #{tpu_custom_call.1} parent=1 // pred_region
      %246 = dma.done [#allocation9], 256
    $region133: #{tpu_custom_call.1} parent=1 // pred_fallthru
      _
    // Predicated region
    $region134: #{tpu_custom_call.1} parent=1 // pred_check
      _
    $region135: #{tpu_custom_call.1} parent=1 // pred_check_branch
      %248 = sbr.rel (0) target = $region137
    $region136: #{tpu_custom_call.1} parent=1 // pred_region
      %249 = dma.done [#allocation12], 16
    $region137: #{tpu_custom_call.1} parent=1 // pred_fallthru
      _
    // Predicated region
    $region138: #{tpu_custom_call.1} parent=1 // pred_check
      _
    $region139: #{tpu_custom_call.1} parent=1 // pred_check_branch
      %251 = sbr.rel (0) target = $region141
    $region140: #{tpu_custom_call.1} parent=1 // pred_region
      %252 = dma.done [#allocation12], 16
    $region141: #{tpu_custom_call.1} parent=1 // pred_fallthru
      _
    // Predicated region
    $region142: #{tpu_custom_call.1} parent=1 // pred_check
      _
    $region143: #{tpu_custom_call.1} parent=1 // pred_check_branch
      %254 = sbr.rel (0) target = $region145
    $region144: #{tpu_custom_call.1} parent=1 // pred_region
      %255 = dma.done [#allocation15], 16
    $region145: #{tpu_custom_call.1} parent=1 // pred_fallthru
      _
    // Predicated region
    $region146: #{tpu_custom_call.1} parent=1 // pred_check
      _
    $region147: #{tpu_custom_call.1} parent=1 // pred_check_branch
      %257 = sbr.rel (0) target = $region149
    $region148: #{tpu_custom_call.1} parent=1 // pred_region
      %258 = dma.done [#allocation15], 16
    $region149: #{tpu_custom_call.1} parent=1 // pred_fallthru
      _
    // Predicated region
    $region150: #{tpu_custom_call.1} parent=1 // pred_check
      _
    $region151: #{tpu_custom_call.1} parent=1 // pred_check_branch
      %260 = sbr.rel (0) target = $region153
    $region152: #{tpu_custom_call.1} parent=1 // pred_region
      %261 = dma.done [#allocation18], 16
    $region153: #{tpu_custom_call.1} parent=1 // pred_fallthru
      _
    // Predicated region
    $region154: #{tpu_custom_call.1} parent=1 // pred_check
      _
    $region155: #{tpu_custom_call.1} parent=1 // pred_check_branch
      %263 = sbr.rel (0) target = $region157
    $region156: #{tpu_custom_call.1} parent=1 // pred_region
      %264 = dma.done [#allocation18], 256
    $region157: #{tpu_custom_call.1} parent=1 // pred_fallthru
      _
    // Predicated region
    $region158: #{tpu_custom_call.1} parent=1 // pred_check
      _
    $region159: #{tpu_custom_call.1} parent=1 // pred_check_branch
      %266 = sbr.rel (0) target = $region161
    $region160: #{tpu_custom_call.1} parent=1 // pred_region
      %267 = dma.done [#allocation21], 16
    $region161: #{tpu_custom_call.1} parent=1 // pred_fallthru
      _
    %v269 = vld [vmem:[%s1] sm:$0xff]
    %v270 = vld [vmem:[%s1 + $0x8] sm:$0xff]
    %v271 = vld [vmem:[%s3] sm:$0xff]
    %v272 = vld [vmem:[%s3 + $0x8] sm:$0xff]
    %v273 = vpack.c.bf16 %v270, %v269
    %v274 = vpack.c.bf16 %v272, %v271
    %v275 = vld [vmem:[%s5] sm:$0xf]
    %v276 = vld [vmem:[%s5 + $0x4] sm:$0xf]
    %v277 = vld [vmem:[%s5 + $0x8] sm:$0xf]
    %v278 = vld [vmem:[%s5 + $0xc] sm:$0xf]
    %v279 = vld [vmem:[#allocation2] sm:$0x1]
    %v281 = vlaneseq
    %v282 = vshrl.u32 %v281, 7
    %v283 = vsub.s32 0, %v282
    %v284 = vrot.slane %v279, %v283
    %v290 = vunpack.c.l.b16 %v275
    %v291 = vunpack.c.l.b16 %v276
    %v292 = vunpack.c.l.b16 %v277
    %v293 = vunpack.c.l.b16 %v278
    %v294 = vpack.c.b16 %v291, %v290
    %v295 = vpack.c.b16 %v293, %v292
    %vm298 = vcmask 261120
    %v300 = vsel %vm298, %v273, 0
    %302 = vmatprep.subr.bf16.mxu0 0
    %303 = vmatpush1.bf16.msra.mxu0 %v294
    %304 = vmatprep.subr.bf16.mxu0 0
    %305 = vmatpush1.bf16.msra.mxu0 %v295
    %306 = vmatprep.subr.bf16.mxu0 0
    %307 = vmatpush1.bf16.msra.mxu0 0
    %308 = vmatprep.subr.bf16.mxu0 0
    %309 = vmatpush1.bf16.msra.mxu0 0
    %310 = vmatprep.subr.bf16.mxu0 0
    %311 = vmatpush1.bf16.msra.mxu0 0
    %312 = vmatprep.subr.bf16.mxu0 0
    %313 = vmatpush1.bf16.msra.mxu0 0
    %314 = vmatprep.subr.bf16.mxu0 0
    %315 = vmatpush1.bf16.msra.mxu0 0
    %316 = vmatprep.subr.bf16.mxu0 0
    %317 = vmatpush1.bf16.msra.mxu0 0
    %318 = vmatprep.subr.bf16.mxu0 0
    %319 = vmatpush1.bf16.msra.mxu0 0
    %320 = vmatprep.subr.bf16.mxu0 0
    %321 = vmatpush1.bf16.msra.mxu0 0
    %322 = vmatprep.subr.bf16.mxu0 0
    %323 = vmatpush1.bf16.msra.mxu0 0
    %324 = vmatprep.subr.bf16.mxu0 0
    %325 = vmatpush1.bf16.msra.mxu0 0
    %326 = vmatprep.subr.bf16.mxu0 0
    %327 = vmatpush1.bf16.msra.mxu0 0
    %328 = vmatprep.subr.bf16.mxu0 0
    %329 = vmatpush1.bf16.msra.mxu0 0
    %330 = vmatprep.subr.bf16.mxu0 0
    %331 = vmatpush1.bf16.msra.mxu0 0
    %332 = vmatprep.subr.bf16.mxu0 0
    %333 = vmatpush1.bf16.msra.mxu0 0
    %334 = vmatprep.mubr.bf16.mxu0 0
    %335 = vmatmul.mubr.bf16.gmra.mrb[0].mxu0 %v300
    %v336 = vpop.f32.mrb[0].mxu0
    %v337 = vadd.f32 %v284, %v336
    %v338 = vpop.f32.mrb[0].mxu0
    %v339 = vpop.f32.mrb[0].mxu0
    %v340 = vadd.f32 %v284, %v339
    %v341 = vpop.f32.mrb[0].mxu0
    %342 = vdwg.mxu0
    %v343 = vld [vmem:[#allocation5] sm:$0xf]
    %v344 = vld [vmem:[#allocation5 + $0x4] sm:$0xf]
    %v345 = vld [vmem:[#allocation5 + $0x8] sm:$0xf]
    %v346 = vld [vmem:[#allocation5 + $0xc] sm:$0xf]
    %v347 = vld [vmem:[#allocation7] sm:$0x1]
    %v349 = vlaneseq
    %v350 = vshrl.u32 %v349, 7
    %v351 = vsub.s32 0, %v350
    %v352 = vrot.slane %v347, %v351
    %v358 = vunpack.c.l.b16 %v343
    %v359 = vunpack.c.l.b16 %v344
    %v360 = vunpack.c.l.b16 %v345
    %v361 = vunpack.c.l.b16 %v346
    %v362 = vpack.c.b16 %v359, %v358
    %v363 = vpack.c.b16 %v361, %v360
    %366 = vmatprep.subr.bf16.mxu0 0
    %367 = vmatpush1.bf16.msra.mxu0 %v362
    %368 = vmatprep.subr.bf16.mxu0 0
    %369 = vmatpush1.bf16.msra.mxu0 %v363
    %370 = vmatprep.subr.bf16.mxu0 0
    %371 = vmatpush1.bf16.msra.mxu0 0
    %372 = vmatprep.subr.bf16.mxu0 0
    %373 = vmatpush1.bf16.msra.mxu0 0
    %374 = vmatprep.subr.bf16.mxu0 0
    %375 = vmatpush1.bf16.msra.mxu0 0
    %376 = vmatprep.subr.bf16.mxu0 0
    %377 = vmatpush1.bf16.msra.mxu0 0
    %378 = vmatprep.subr.bf16.mxu0 0
    %379 = vmatpush1.bf16.msra.mxu0 0
    %380 = vmatprep.subr.bf16.mxu0 0
    %381 = vmatpush1.bf16.msra.mxu0 0
    %382 = vmatprep.subr.bf16.mxu0 0
    %383 = vmatpush1.bf16.msra.mxu0 0
    %384 = vmatprep.subr.bf16.mxu0 0
    %385 = vmatpush1.bf16.msra.mxu0 0
    %386 = vmatprep.subr.bf16.mxu0 0
    %387 = vmatpush1.bf16.msra.mxu0 0
    %388 = vmatprep.subr.bf16.mxu0 0
    %389 = vmatpush1.bf16.msra.mxu0 0
    %390 = vmatprep.subr.bf16.mxu0 0
    %391 = vmatpush1.bf16.msra.mxu0 0
    %392 = vmatprep.subr.bf16.mxu0 0
    %393 = vmatpush1.bf16.msra.mxu0 0
    %394 = vmatprep.subr.bf16.mxu0 0
    %395 = vmatpush1.bf16.msra.mxu0 0
    %396 = vmatprep.subr.bf16.mxu0 0
    %397 = vmatpush1.bf16.msra.mxu0 0
    %398 = vmatprep.mubr.bf16.mxu0 0
    %399 = vmatmul.mubr.bf16.gmra.mrb[0].mxu0 %v300
    %v400 = vpop.f32.mrb[0].mxu0
    %v401 = vadd.f32 %v352, %v400
    %v402 = vpop.f32.mrb[0].mxu0
    %v403 = vpop.f32.mrb[0].mxu0
    %v404 = vadd.f32 %v352, %v403
    %v405 = vpop.f32.mrb[0].mxu0
    %406 = vdwg.mxu0
    %v407 = vld [vmem:[%s13] sm:$0xf]
    %v408 = vld [vmem:[%s13 + $0x4] sm:$0xf]
    %v409 = vld [vmem:[%s13 + $0x8] sm:$0xf]
    %v410 = vld [vmem:[%s13 + $0xc] sm:$0xf]
    %v411 = vld [vmem:[#allocation8] sm:$0x1]
    %v413 = vlaneseq
    %v414 = vshrl.u32 %v413, 7
    %v415 = vsub.s32 0, %v414
    %v416 = vrot.slane %v411, %v415
    %v422 = vunpack.c.l.b16 %v407
    %v423 = vunpack.c.l.b16 %v408
    %v424 = vunpack.c.l.b16 %v409
    %v425 = vunpack.c.l.b16 %v410
    %v426 = vpack.c.b16 %v423, %v422
    %v427 = vpack.c.b16 %v425, %v424
    %430 = vmatprep.subr.bf16.mxu0 0
    %431 = vmatpush1.bf16.msra.mxu0 %v426
    %432 = vmatprep.subr.bf16.mxu0 0
    %433 = vmatpush1.bf16.msra.mxu0 %v427
    %434 = vmatprep.subr.bf16.mxu0 0
    %435 = vmatpush1.bf16.msra.mxu0 0
    %436 = vmatprep.subr.bf16.mxu0 0
    %437 = vmatpush1.bf16.msra.mxu0 0
    %438 = vmatprep.subr.bf16.mxu0 0
    %439 = vmatpush1.bf16.msra.mxu0 0
    %440 = vmatprep.subr.bf16.mxu0 0
    %441 = vmatpush1.bf16.msra.mxu0 0
    %442 = vmatprep.subr.bf16.mxu0 0
    %443 = vmatpush1.bf16.msra.mxu0 0
    %444 = vmatprep.subr.bf16.mxu0 0
    %445 = vmatpush1.bf16.msra.mxu0 0
    %446 = vmatprep.subr.bf16.mxu0 0
    %447 = vmatpush1.bf16.msra.mxu0 0
    %448 = vmatprep.subr.bf16.mxu0 0
    %449 = vmatpush1.bf16.msra.mxu0 0
    %450 = vmatprep.subr.bf16.mxu0 0
    %451 = vmatpush1.bf16.msra.mxu0 0
    %452 = vmatprep.subr.bf16.mxu0 0
    %453 = vmatpush1.bf16.msra.mxu0 0
    %454 = vmatprep.subr.bf16.mxu0 0
    %455 = vmatpush1.bf16.msra.mxu0 0
    %456 = vmatprep.subr.bf16.mxu0 0
    %457 = vmatpush1.bf16.msra.mxu0 0
    %458 = vmatprep.subr.bf16.mxu0 0
    %459 = vmatpush1.bf16.msra.mxu0 0
    %460 = vmatprep.subr.bf16.mxu0 0
    %461 = vmatpush1.bf16.msra.mxu0 0
    %462 = vmatprep.mubr.bf16.mxu0 0
    %463 = vmatmul.mubr.bf16.gmra.mrb[0].mxu0 %v300
    %v464 = vpop.f32.mrb[0].mxu0
    %v465 = vadd.f32 %v416, %v464
    %v466 = vpop.f32.mrb[0].mxu0
    %v467 = vpop.f32.mrb[0].mxu0
    %v468 = vadd.f32 %v416, %v467
    %v469 = vpop.f32.mrb[0].mxu0
    %470 = vdwg.mxu0
    %473 = vrot.lane.b32.xlu0 %v337, 120
    %v474 = vpop.permute.xlu0 %473
    %475 = vrot.lane.b32.xlu0 %v340, 120
    %v476 = vpop.permute.xlu0 %475
    %479 = vrot.lane.b32.xlu0 %v337, 112
    %v480 = vpop.permute.xlu0 %479
    %481 = vrot.lane.b32.xlu0 %v340, 112
    %v482 = vpop.permute.xlu0 %481
    %485 = vrot.lane.b32.xlu0 %v337, 104
    %v486 = vpop.permute.xlu0 %485
    %487 = vrot.lane.b32.xlu0 %v340, 104
    %v488 = vpop.permute.xlu0 %487
    %v491 = vpack.c.bf16 %v337, %v337
    %v492 = vpack.c.bf16 %v340, %v340
    %v493 = vpack.c.bf16 %v474, %v474
    %v494 = vpack.c.bf16 %v476, %v476
    %v495 = vpack.c.bf16 %v480, %v480
    %v496 = vpack.c.bf16 %v482, %v482
    %v497 = vpack.c.bf16 %v486, %v486
    %v498 = vpack.c.bf16 %v488, %v488
    %501 = vrot.lane.b32.xlu0 %v401, 120
    %v502 = vpop.permute.xlu0 %501
    %503 = vrot.lane.b32.xlu0 %v404, 120
    %v504 = vpop.permute.xlu0 %503
    %507 = vrot.lane.b32.xlu0 %v401, 112
    %v508 = vpop.permute.xlu0 %507
    %509 = vrot.lane.b32.xlu0 %v404, 112
    %v510 = vpop.permute.xlu0 %509
    %513 = vrot.lane.b32.xlu0 %v401, 104
    %v514 = vpop.permute.xlu0 %513
    %515 = vrot.lane.b32.xlu0 %v404, 104
    %v516 = vpop.permute.xlu0 %515
    %v519 = vpack.c.bf16 %v401, %v401
    %v520 = vpack.c.bf16 %v404, %v404
    %v521 = vpack.c.bf16 %v502, %v502
    %v522 = vpack.c.bf16 %v504, %v504
    %v523 = vpack.c.bf16 %v508, %v508
    %v524 = vpack.c.bf16 %v510, %v510
    %v525 = vpack.c.bf16 %v514, %v514
    %v526 = vpack.c.bf16 %v516, %v516
    %529 = vrot.lane.b32.xlu0 %v465, 120
    %v530 = vpop.permute.xlu0 %529
    %531 = vrot.lane.b32.xlu0 %v468, 120
    %v532 = vpop.permute.xlu0 %531
    %535 = vrot.lane.b32.xlu0 %v465, 112
    %v536 = vpop.permute.xlu0 %535
    %537 = vrot.lane.b32.xlu0 %v468, 112
    %v538 = vpop.permute.xlu0 %537
    %541 = vrot.lane.b32.xlu0 %v465, 104
    %v542 = vpop.permute.xlu0 %541
    %543 = vrot.lane.b32.xlu0 %v468, 104
    %v544 = vpop.permute.xlu0 %543
    %v547 = vpack.c.bf16 %v465, %v465
    %v548 = vpack.c.bf16 %v468, %v468
    %v549 = vpack.c.bf16 %v530, %v530
    %v550 = vpack.c.bf16 %v532, %v532
    %v551 = vpack.c.bf16 %v536, %v536
    %v552 = vpack.c.bf16 %v538, %v538
    %v553 = vpack.c.bf16 %v542, %v542
    %v554 = vpack.c.bf16 %v544, %v544
    %vm555 = vcmask 64512
    %v557 = vsel %vm555, %v491, 0
    %v560 = vsel %vm555, %v519, 0
    %562 = vmatprep.subr.bf16.mxu0 0
    %563 = vmatpush1.bf16.xpose.msra.mxu0 %v560
    %564 = vmatprep.subr.bf16.mxu0 0
    %565 = vmatpush1.bf16.xpose.msra.mxu0 0
    %566 = vmatprep.subr.bf16.mxu0 0
    %567 = vmatpush1.bf16.xpose.msra.mxu0 0
    %568 = vmatprep.subr.bf16.mxu0 0
    %569 = vmatpush1.bf16.xpose.msra.mxu0 0
    %570 = vmatprep.subr.bf16.mxu0 0
    %571 = vmatpush1.bf16.xpose.msra.mxu0 0
    %572 = vmatprep.subr.bf16.mxu0 0
    %573 = vmatpush1.bf16.xpose.msra.mxu0 0
    %574 = vmatprep.subr.bf16.mxu0 0
    %575 = vmatpush1.bf16.xpose.msra.mxu0 0
    %576 = vmatprep.subr.bf16.mxu0 0
    %577 = vmatpush1.bf16.xpose.msra.mxu0 0
    %578 = vmatprep.subr.bf16.mxu0 0
    %579 = vmatpush1.bf16.xpose.msra.mxu0 0
    %580 = vmatprep.subr.bf16.mxu0 0
    %581 = vmatpush1.bf16.xpose.msra.mxu0 0
    %582 = vmatprep.subr.bf16.mxu0 0
    %583 = vmatpush1.bf16.xpose.msra.mxu0 0
    %584 = vmatprep.subr.bf16.mxu0 0
    %585 = vmatpush1.bf16.xpose.msra.mxu0 0
    %586 = vmatprep.subr.bf16.mxu0 0
    %587 = vmatpush1.bf16.xpose.msra.mxu0 0
    %588 = vmatprep.subr.bf16.mxu0 0
    %589 = vmatpush1.bf16.xpose.msra.mxu0 0
    %590 = vmatprep.subr.bf16.mxu0 0
    %591 = vmatpush1.bf16.xpose.msra.mxu0 0
    %592 = vmatprep.subr.bf16.mxu0 0
    %593 = vmatpush1.bf16.xpose.msra.mxu0 0
    %594 = vmatprep.mubr.bf16.mxu0 0
    %595 = vmatmul.mubr.bf16.gmra.mrb[0].mxu0 %v557
    %v596 = vpop.f32.mrb[0].mxu0
    %v597 = vadd.f32 0.0, %v596
    %v598 = vpop.f32.mrb[0].mxu0
    %v599 = vpop.f32.mrb[0].mxu0
    %v600 = vpop.f32.mrb[0].mxu0
    %601 = vdwg.mxu0
    %v603 = vsel %vm555, %v492, 0
    %v606 = vsel %vm555, %v520, 0
    %608 = vmatprep.subr.bf16.mxu0 0
    %609 = vmatpush1.bf16.xpose.msra.mxu0 %v606
    %610 = vmatprep.subr.bf16.mxu0 0
    %611 = vmatpush1.bf16.xpose.msra.mxu0 0
    %612 = vmatprep.subr.bf16.mxu0 0
    %613 = vmatpush1.bf16.xpose.msra.mxu0 0
    %614 = vmatprep.subr.bf16.mxu0 0
    %615 = vmatpush1.bf16.xpose.msra.mxu0 0
    %616 = vmatprep.subr.bf16.mxu0 0
    %617 = vmatpush1.bf16.xpose.msra.mxu0 0
    %618 = vmatprep.subr.bf16.mxu0 0
    %619 = vmatpush1.bf16.xpose.msra.mxu0 0
    %620 = vmatprep.subr.bf16.mxu0 0
    %621 = vmatpush1.bf16.xpose.msra.mxu0 0
    %622 = vmatprep.subr.bf16.mxu0 0
    %623 = vmatpush1.bf16.xpose.msra.mxu0 0
    %624 = vmatprep.subr.bf16.mxu0 0
    %625 = vmatpush1.bf16.xpose.msra.mxu0 0
    %626 = vmatprep.subr.bf16.mxu0 0
    %627 = vmatpush1.bf16.xpose.msra.mxu0 0
    %628 = vmatprep.subr.bf16.mxu0 0
    %629 = vmatpush1.bf16.xpose.msra.mxu0 0
    %630 = vmatprep.subr.bf16.mxu0 0
    %631 = vmatpush1.bf16.xpose.msra.mxu0 0
    %632 = vmatprep.subr.bf16.mxu0 0
    %633 = vmatpush1.bf16.xpose.msra.mxu0 0
    %634 = vmatprep.subr.bf16.mxu0 0
    %635 = vmatpush1.bf16.xpose.msra.mxu0 0
    %636 = vmatprep.subr.bf16.mxu0 0
    %637 = vmatpush1.bf16.xpose.msra.mxu0 0
    %638 = vmatprep.subr.bf16.mxu0 0
    %639 = vmatpush1.bf16.xpose.msra.mxu0 0
    %640 = vmatprep.mubr.bf16.mxu0 0
    %641 = vmatmul.mubr.bf16.gmra.mrb[0].mxu0 %v603
    %v642 = vpop.f32.mrb[0].mxu0
    %v643 = vadd.f32 0.0, %v642
    %v644 = vpop.f32.mrb[0].mxu0
    %v645 = vpop.f32.mrb[0].mxu0
    %v646 = vpop.f32.mrb[0].mxu0
    %647 = vdwg.mxu0
    %v649 = vsel %vm555, %v493, 0
    %v652 = vsel %vm555, %v521, 0
    %654 = vmatprep.subr.bf16.mxu0 0
    %655 = vmatpush1.bf16.xpose.msra.mxu0 %v652
    %656 = vmatprep.subr.bf16.mxu0 0
    %657 = vmatpush1.bf16.xpose.msra.mxu0 0
    %658 = vmatprep.subr.bf16.mxu0 0
    %659 = vmatpush1.bf16.xpose.msra.mxu0 0
    %660 = vmatprep.subr.bf16.mxu0 0
    %661 = vmatpush1.bf16.xpose.msra.mxu0 0
    %662 = vmatprep.subr.bf16.mxu0 0
    %663 = vmatpush1.bf16.xpose.msra.mxu0 0
    %664 = vmatprep.subr.bf16.mxu0 0
    %665 = vmatpush1.bf16.xpose.msra.mxu0 0
    %666 = vmatprep.subr.bf16.mxu0 0
    %667 = vmatpush1.bf16.xpose.msra.mxu0 0
    %668 = vmatprep.subr.bf16.mxu0 0
    %669 = vmatpush1.bf16.xpose.msra.mxu0 0
    %670 = vmatprep.subr.bf16.mxu0 0
    %671 = vmatpush1.bf16.xpose.msra.mxu0 0
    %672 = vmatprep.subr.bf16.mxu0 0
    %673 = vmatpush1.bf16.xpose.msra.mxu0 0
    %674 = vmatprep.subr.bf16.mxu0 0
    %675 = vmatpush1.bf16.xpose.msra.mxu0 0
    %676 = vmatprep.subr.bf16.mxu0 0
    %677 = vmatpush1.bf16.xpose.msra.mxu0 0
    %678 = vmatprep.subr.bf16.mxu0 0
    %679 = vmatpush1.bf16.xpose.msra.mxu0 0
    %680 = vmatprep.subr.bf16.mxu0 0
    %681 = vmatpush1.bf16.xpose.msra.mxu0 0
    %682 = vmatprep.subr.bf16.mxu0 0
    %683 = vmatpush1.bf16.xpose.msra.mxu0 0
    %684 = vmatprep.subr.bf16.mxu0 0
    %685 = vmatpush1.bf16.xpose.msra.mxu0 0
    %686 = vmatprep.mubr.bf16.mxu0 0
    %687 = vmatmul.mubr.bf16.gmra.mrb[0].mxu0 %v649
    %v688 = vpop.f32.mrb[0].mxu0
    %v689 = vadd.f32 0.0, %v688
    %v690 = vpop.f32.mrb[0].mxu0
    %v691 = vpop.f32.mrb[0].mxu0
    %v692 = vpop.f32.mrb[0].mxu0
    %693 = vdwg.mxu0
    %v695 = vsel %vm555, %v494, 0
    %v698 = vsel %vm555, %v522, 0
    %700 = vmatprep.subr.bf16.mxu0 0
    %701 = vmatpush1.bf16.xpose.msra.mxu0 %v698
    %702 = vmatprep.subr.bf16.mxu0 0
    %703 = vmatpush1.bf16.xpose.msra.mxu0 0
    %704 = vmatprep.subr.bf16.mxu0 0
    %705 = vmatpush1.bf16.xpose.msra.mxu0 0
    %706 = vmatprep.subr.bf16.mxu0 0
    %707 = vmatpush1.bf16.xpose.msra.mxu0 0
    %708 = vmatprep.subr.bf16.mxu0 0
    %709 = vmatpush1.bf16.xpose.msra.mxu0 0
    %710 = vmatprep.subr.bf16.mxu0 0
    %711 = vmatpush1.bf16.xpose.msra.mxu0 0
    %712 = vmatprep.subr.bf16.mxu0 0
    %713 = vmatpush1.bf16.xpose.msra.mxu0 0
    %714 = vmatprep.subr.bf16.mxu0 0
    %715 = vmatpush1.bf16.xpose.msra.mxu0 0
    %716 = vmatprep.subr.bf16.mxu0 0
    %717 = vmatpush1.bf16.xpose.msra.mxu0 0
    %718 = vmatprep.subr.bf16.mxu0 0
    %719 = vmatpush1.bf16.xpose.msra.mxu0 0
    %720 = vmatprep.subr.bf16.mxu0 0
    %721 = vmatpush1.bf16.xpose.msra.mxu0 0
    %722 = vmatprep.subr.bf16.mxu0 0
    %723 = vmatpush1.bf16.xpose.msra.mxu0 0
    %724 = vmatprep.subr.bf16.mxu0 0
    %725 = vmatpush1.bf16.xpose.msra.mxu0 0
    %726 = vmatprep.subr.bf16.mxu0 0
    %727 = vmatpush1.bf16.xpose.msra.mxu0 0
    %728 = vmatprep.subr.bf16.mxu0 0
    %729 = vmatpush1.bf16.xpose.msra.mxu0 0
    %730 = vmatprep.subr.bf16.mxu0 0
    %731 = vmatpush1.bf16.xpose.msra.mxu0 0
    %732 = vmatprep.mubr.bf16.mxu0 0
    %733 = vmatmul.mubr.bf16.gmra.mrb[0].mxu0 %v695
    %v734 = vpop.f32.mrb[0].mxu0
    %v735 = vadd.f32 0.0, %v734
    %v736 = vpop.f32.mrb[0].mxu0
    %v737 = vpop.f32.mrb[0].mxu0
    %v738 = vpop.f32.mrb[0].mxu0
    %739 = vdwg.mxu0
    %v741 = vsel %vm555, %v495, 0
    %v744 = vsel %vm555, %v523, 0
    %746 = vmatprep.subr.bf16.mxu0 0
    %747 = vmatpush1.bf16.xpose.msra.mxu0 %v744
    %748 = vmatprep.subr.bf16.mxu0 0
    %749 = vmatpush1.bf16.xpose.msra.mxu0 0
    %750 = vmatprep.subr.bf16.mxu0 0
    %751 = vmatpush1.bf16.xpose.msra.mxu0 0
    %752 = vmatprep.subr.bf16.mxu0 0
    %753 = vmatpush1.bf16.xpose.msra.mxu0 0
    %754 = vmatprep.subr.bf16.mxu0 0
    %755 = vmatpush1.bf16.xpose.msra.mxu0 0
    %756 = vmatprep.subr.bf16.mxu0 0
    %757 = vmatpush1.bf16.xpose.msra.mxu0 0
    %758 = vmatprep.subr.bf16.mxu0 0
    %759 = vmatpush1.bf16.xpose.msra.mxu0 0
    %760 = vmatprep.subr.bf16.mxu0 0
    %761 = vmatpush1.bf16.xpose.msra.mxu0 0
    %762 = vmatprep.subr.bf16.mxu0 0
    %763 = vmatpush1.bf16.xpose.msra.mxu0 0
    %764 = vmatprep.subr.bf16.mxu0 0
    %765 = vmatpush1.bf16.xpose.msra.mxu0 0
    %766 = vmatprep.subr.bf16.mxu0 0
    %767 = vmatpush1.bf16.xpose.msra.mxu0 0
    %768 = vmatprep.subr.bf16.mxu0 0
    %769 = vmatpush1.bf16.xpose.msra.mxu0 0
    %770 = vmatprep.subr.bf16.mxu0 0
    %771 = vmatpush1.bf16.xpose.msra.mxu0 0
    %772 = vmatprep.subr.bf16.mxu0 0
    %773 = vmatpush1.bf16.xpose.msra.mxu0 0
    %774 = vmatprep.subr.bf16.mxu0 0
    %775 = vmatpush1.bf16.xpose.msra.mxu0 0
    %776 = vmatprep.subr.bf16.mxu0 0
    %777 = vmatpush1.bf16.xpose.msra.mxu0 0
    %778 = vmatprep.mubr.bf16.mxu0 0
    %779 = vmatmul.mubr.bf16.gmra.mrb[0].mxu0 %v741
    %v780 = vpop.f32.mrb[0].mxu0
    %v781 = vadd.f32 0.0, %v780
    %v782 = vpop.f32.mrb[0].mxu0
    %v783 = vpop.f32.mrb[0].mxu0
    %v784 = vpop.f32.mrb[0].mxu0
    %785 = vdwg.mxu0
    %v787 = vsel %vm555, %v496, 0
    %v790 = vsel %vm555, %v524, 0
    %792 = vmatprep.subr.bf16.mxu0 0
    %793 = vmatpush1.bf16.xpose.msra.mxu0 %v790
    %794 = vmatprep.subr.bf16.mxu0 0
    %795 = vmatpush1.bf16.xpose.msra.mxu0 0
    %796 = vmatprep.subr.bf16.mxu0 0
    %797 = vmatpush1.bf16.xpose.msra.mxu0 0
    %798 = vmatprep.subr.bf16.mxu0 0
    %799 = vmatpush1.bf16.xpose.msra.mxu0 0
    %800 = vmatprep.subr.bf16.mxu0 0
    %801 = vmatpush1.bf16.xpose.msra.mxu0 0
    %802 = vmatprep.subr.bf16.mxu0 0
    %803 = vmatpush1.bf16.xpose.msra.mxu0 0
    %804 = vmatprep.subr.bf16.mxu0 0
    %805 = vmatpush1.bf16.xpose.msra.mxu0 0
    %806 = vmatprep.subr.bf16.mxu0 0
    %807 = vmatpush1.bf16.xpose.msra.mxu0 0
    %808 = vmatprep.subr.bf16.mxu0 0
    %809 = vmatpush1.bf16.xpose.msra.mxu0 0
    %810 = vmatprep.subr.bf16.mxu0 0
    %811 = vmatpush1.bf16.xpose.msra.mxu0 0
    %812 = vmatprep.subr.bf16.mxu0 0
    %813 = vmatpush1.bf16.xpose.msra.mxu0 0
    %814 = vmatprep.subr.bf16.mxu0 0
    %815 = vmatpush1.bf16.xpose.msra.mxu0 0
    %816 = vmatprep.subr.bf16.mxu0 0
    %817 = vmatpush1.bf16.xpose.msra.mxu0 0
    %818 = vmatprep.subr.bf16.mxu0 0
    %819 = vmatpush1.bf16.xpose.msra.mxu0 0
    %820 = vmatprep.subr.bf16.mxu0 0
    %821 = vmatpush1.bf16.xpose.msra.mxu0 0
    %822 = vmatprep.subr.bf16.mxu0 0
    %823 = vmatpush1.bf16.xpose.msra.mxu0 0
    %824 = vmatprep.mubr.bf16.mxu0 0
    %825 = vmatmul.mubr.bf16.gmra.mrb[0].mxu0 %v787
    %v826 = vpop.f32.mrb[0].mxu0
    %v827 = vadd.f32 0.0, %v826
    %v828 = vpop.f32.mrb[0].mxu0
    %v829 = vpop.f32.mrb[0].mxu0
    %v830 = vpop.f32.mrb[0].mxu0
    %831 = vdwg.mxu0
    %v833 = vsel %vm555, %v497, 0
    %v836 = vsel %vm555, %v525, 0
    %838 = vmatprep.subr.bf16.mxu0 0
    %839 = vmatpush1.bf16.xpose.msra.mxu0 %v836
    %840 = vmatprep.subr.bf16.mxu0 0
    %841 = vmatpush1.bf16.xpose.msra.mxu0 0
    %842 = vmatprep.subr.bf16.mxu0 0
    %843 = vmatpush1.bf16.xpose.msra.mxu0 0
    %844 = vmatprep.subr.bf16.mxu0 0
    %845 = vmatpush1.bf16.xpose.msra.mxu0 0
    %846 = vmatprep.subr.bf16.mxu0 0
    %847 = vmatpush1.bf16.xpose.msra.mxu0 0
    %848 = vmatprep.subr.bf16.mxu0 0
    %849 = vmatpush1.bf16.xpose.msra.mxu0 0
    %850 = vmatprep.subr.bf16.mxu0 0
    %851 = vmatpush1.bf16.xpose.msra.mxu0 0
    %852 = vmatprep.subr.bf16.mxu0 0
    %853 = vmatpush1.bf16.xpose.msra.mxu0 0
    %854 = vmatprep.subr.bf16.mxu0 0
    %855 = vmatpush1.bf16.xpose.msra.mxu0 0
    %856 = vmatprep.subr.bf16.mxu0 0
    %857 = vmatpush1.bf16.xpose.msra.mxu0 0
    %858 = vmatprep.subr.bf16.mxu0 0
    %859 = vmatpush1.bf16.xpose.msra.mxu0 0
    %860 = vmatprep.subr.bf16.mxu0 0
    %861 = vmatpush1.bf16.xpose.msra.mxu0 0
    %862 = vmatprep.subr.bf16.mxu0 0
    %863 = vmatpush1.bf16.xpose.msra.mxu0 0
    %864 = vmatprep.subr.bf16.mxu0 0
    %865 = vmatpush1.bf16.xpose.msra.mxu0 0
    %866 = vmatprep.subr.bf16.mxu0 0
    %867 = vmatpush1.bf16.xpose.msra.mxu0 0
    %868 = vmatprep.subr.bf16.mxu0 0
    %869 = vmatpush1.bf16.xpose.msra.mxu0 0
    %870 = vmatprep.mubr.bf16.mxu0 0
    %871 = vmatmul.mubr.bf16.gmra.mrb[0].mxu0 %v833
    %v872 = vpop.f32.mrb[0].mxu0
    %v873 = vadd.f32 0.0, %v872
    %v874 = vpop.f32.mrb[0].mxu0
    %v875 = vpop.f32.mrb[0].mxu0
    %v876 = vpop.f32.mrb[0].mxu0
    %877 = vdwg.mxu0
    %v879 = vsel %vm555, %v498, 0
    %v882 = vsel %vm555, %v526, 0
    %884 = vmatprep.subr.bf16.mxu0 0
    %885 = vmatpush1.bf16.xpose.msra.mxu0 %v882
    %886 = vmatprep.subr.bf16.mxu0 0
    %887 = vmatpush1.bf16.xpose.msra.mxu0 0
    %888 = vmatprep.subr.bf16.mxu0 0
    %889 = vmatpush1.bf16.xpose.msra.mxu0 0
    %890 = vmatprep.subr.bf16.mxu0 0
    %891 = vmatpush1.bf16.xpose.msra.mxu0 0
    %892 = vmatprep.subr.bf16.mxu0 0
    %893 = vmatpush1.bf16.xpose.msra.mxu0 0
    %894 = vmatprep.subr.bf16.mxu0 0
    %895 = vmatpush1.bf16.xpose.msra.mxu0 0
    %896 = vmatprep.subr.bf16.mxu0 0
    %897 = vmatpush1.bf16.xpose.msra.mxu0 0
    %898 = vmatprep.subr.bf16.mxu0 0
    %899 = vmatpush1.bf16.xpose.msra.mxu0 0
    %900 = vmatprep.subr.bf16.mxu0 0
    %901 = vmatpush1.bf16.xpose.msra.mxu0 0
    %902 = vmatprep.subr.bf16.mxu0 0
    %903 = vmatpush1.bf16.xpose.msra.mxu0 0
    %904 = vmatprep.subr.bf16.mxu0 0
    %905 = vmatpush1.bf16.xpose.msra.mxu0 0
    %906 = vmatprep.subr.bf16.mxu0 0
    %907 = vmatpush1.bf16.xpose.msra.mxu0 0
    %908 = vmatprep.subr.bf16.mxu0 0
    %909 = vmatpush1.bf16.xpose.msra.mxu0 0
    %910 = vmatprep.subr.bf16.mxu0 0
    %911 = vmatpush1.bf16.xpose.msra.mxu0 0
    %912 = vmatprep.subr.bf16.mxu0 0
    %913 = vmatpush1.bf16.xpose.msra.mxu0 0
    %914 = vmatprep.subr.bf16.mxu0 0
    %915 = vmatpush1.bf16.xpose.msra.mxu0 0
    %916 = vmatprep.mubr.bf16.mxu0 0
    %917 = vmatmul.mubr.bf16.gmra.mrb[0].mxu0 %v879
    %v918 = vpop.f32.mrb[0].mxu0
    %v919 = vadd.f32 0.0, %v918
    %v920 = vpop.f32.mrb[0].mxu0
    %v921 = vpop.f32.mrb[0].mxu0
    %v922 = vpop.f32.mrb[0].mxu0
    %923 = vdwg.mxu0
    %v924 = vmul.f32 %v597, 0.35355338
    %v925 = vmul.f32 %v643, 0.35355338
    %v926 = vmul.f32 %v689, 0.35355338
    %v927 = vmul.f32 %v735, 0.35355338
    %v928 = vmul.f32 %v781, 0.35355338
    %v929 = vmul.f32 %v827, 0.35355338
    %v930 = vmul.f32 %v873, 0.35355338
    %v931 = vmul.f32 %v919, 0.35355338
    %v932 = vsel %vm555, %v924, -inf
    %933 = vmax.xlane.f32.xlu0 %v932
    %v934 = vpop.xlane.xlu0 %933
    %v935 = vsel %vm555, %v925, -inf
    %936 = vmax.xlane.f32.xlu0 %v935
    %v937 = vpop.xlane.xlu0 %936
    %v938 = vsel %vm555, %v926, -inf
    %939 = vmax.xlane.f32.xlu0 %v938
    %v940 = vpop.xlane.xlu0 %939
    %v941 = vsel %vm555, %v927, -inf
    %942 = vmax.xlane.f32.xlu0 %v941
    %v943 = vpop.xlane.xlu0 %942
    %v944 = vsel %vm555, %v928, -inf
    %945 = vmax.xlane.f32.xlu0 %v944
    %v946 = vpop.xlane.xlu0 %945
    %v947 = vsel %vm555, %v929, -inf
    %948 = vmax.xlane.f32.xlu0 %v947
    %v949 = vpop.xlane.xlu0 %948
    %v950 = vsel %vm555, %v930, -inf
    %951 = vmax.xlane.f32.xlu0 %v950
    %v952 = vpop.xlane.xlu0 %951
    %v953 = vsel %vm555, %v931, -inf
    %954 = vmax.xlane.f32.xlu0 %v953
    %v955 = vpop.xlane.xlu0 %954
    %v956 = vsub.f32 %v924, %v934
    %v957 = vsub.f32 %v925, %v937
    %v958 = vsub.f32 %v926, %v940
    %v959 = vsub.f32 %v927, %v943
    %v960 = vsub.f32 %v928, %v946
    %v961 = vsub.f32 %v929, %v949
    %v962 = vsub.f32 %v930, %v952
    %v963 = vsub.f32 %v931, %v955
    %v964 = vmul.f32 %v956, 1.442695
    %v965 = vpow.pop %v964
    %v966 = vmul.f32 %v957, 1.442695
    %v967 = vpow.pop %v966
    %v968 = vmul.f32 %v958, 1.442695
    %v969 = vpow.pop %v968
    %v970 = vmul.f32 %v959, 1.442695
    %v971 = vpow.pop %v970
    %v972 = vmul.f32 %v960, 1.442695
    %v973 = vpow.pop %v972
    %v974 = vmul.f32 %v961, 1.442695
    %v975 = vpow.pop %v974
    %v976 = vmul.f32 %v962, 1.442695
    %v977 = vpow.pop %v976
    %v978 = vmul.f32 %v963, 1.442695
    %v979 = vpow.pop %v978
    %v980 = vsel %vm555, %v965, 0.0
    %981 = vadd.xlane.f32.xlu0 %v980
    %v982 = vpop.xlane.xlu0 %981
    %v983 = vsel %vm555, %v967, 0.0
    %984 = vadd.xlane.f32.xlu0 %v983
    %v985 = vpop.xlane.xlu0 %984
    %v986 = vsel %vm555, %v969, 0.0
    %987 = vadd.xlane.f32.xlu0 %v986
    %v988 = vpop.xlane.xlu0 %987
    %v989 = vsel %vm555, %v971, 0.0
    %990 = vadd.xlane.f32.xlu0 %v989
    %v991 = vpop.xlane.xlu0 %990
    %v992 = vsel %vm555, %v973, 0.0
    %993 = vadd.xlane.f32.xlu0 %v992
    %v994 = vpop.xlane.xlu0 %993
    %v995 = vsel %vm555, %v975, 0.0
    %996 = vadd.xlane.f32.xlu0 %v995
    %v997 = vpop.xlane.xlu0 %996
    %v998 = vsel %vm555, %v977, 0.0
    %999 = vadd.xlane.f32.xlu0 %v998
    %v1000 = vpop.xlane.xlu0 %999
    %v1001 = vsel %vm555, %v979, 0.0
    %1002 = vadd.xlane.f32.xlu0 %v1001
    %v1003 = vpop.xlane.xlu0 %1002
    %v1004 = vrcp.pop %v982
    %v1005 = vrcp.pop %v985
    %v1006 = vrcp.pop %v988
    %v1007 = vrcp.pop %v991
    %v1008 = vrcp.pop %v994
    %v1009 = vrcp.pop %v997
    %v1010 = vrcp.pop %v1000
    %v1011 = vrcp.pop %v1003
    %v1012 = vmul.f32 %v965, %v1004
    %v1013 = vmul.f32 %v967, %v1005
    %v1014 = vmul.f32 %v969, %v1006
    %v1015 = vmul.f32 %v971, %v1007
    %v1016 = vmul.f32 %v973, %v1008
    %v1017 = vmul.f32 %v975, %v1009
    %v1018 = vmul.f32 %v977, %v1010
    %v1019 = vmul.f32 %v979, %v1011
    %v1020 = vpack.c.bf16 %v1012, %v1012
    %v1021 = vpack.c.bf16 %v1013, %v1013
    %v1022 = vpack.c.bf16 %v1014, %v1014
    %v1023 = vpack.c.bf16 %v1015, %v1015
    %v1024 = vpack.c.bf16 %v1016, %v1016
    %v1025 = vpack.c.bf16 %v1017, %v1017
    %v1026 = vpack.c.bf16 %v1018, %v1018
    %v1027 = vpack.c.bf16 %v1019, %v1019
    %v1029 = vsel %vm555, %v1020, 0
    %vm1031 = vcmask 1043456
    %v1033 = vsel %vm1031, %v547, 0
    %1035 = vmatprep.subr.bf16.mxu0 0
    %1036 = vmatpush1.bf16.msra.mxu0 %v1033
    %1037 = vmatprep.subr.bf16.mxu0 0
    %1038 = vmatpush1.bf16.msra.mxu0 0
    %1039 = vmatprep.subr.bf16.mxu0 0
    %1040 = vmatpush1.bf16.msra.mxu0 0
    %1041 = vmatprep.subr.bf16.mxu0 0
    %1042 = vmatpush1.bf16.msra.mxu0 0
    %1043 = vmatprep.subr.bf16.mxu0 0
    %1044 = vmatpush1.bf16.msra.mxu0 0
    %1045 = vmatprep.subr.bf16.mxu0 0
    %1046 = vmatpush1.bf16.msra.mxu0 0
    %1047 = vmatprep.subr.bf16.mxu0 0
    %1048 = vmatpush1.bf16.msra.mxu0 0
    %1049 = vmatprep.subr.bf16.mxu0 0
    %1050 = vmatpush1.bf16.msra.mxu0 0
    %1051 = vmatprep.subr.bf16.mxu0 0
    %1052 = vmatpush1.bf16.msra.mxu0 0
    %1053 = vmatprep.subr.bf16.mxu0 0
    %1054 = vmatpush1.bf16.msra.mxu0 0
    %1055 = vmatprep.subr.bf16.mxu0 0
    %1056 = vmatpush1.bf16.msra.mxu0 0
    %1057 = vmatprep.subr.bf16.mxu0 0
    %1058 = vmatpush1.bf16.msra.mxu0 0
    %1059 = vmatprep.subr.bf16.mxu0 0
    %1060 = vmatpush1.bf16.msra.mxu0 0
    %1061 = vmatprep.subr.bf16.mxu0 0
    %1062 = vmatpush1.bf16.msra.mxu0 0
    %1063 = vmatprep.subr.bf16.mxu0 0
    %1064 = vmatpush1.bf16.msra.mxu0 0
    %1065 = vmatprep.subr.bf16.mxu0 0
    %1066 = vmatpush1.bf16.msra.mxu0 0
    %1067 = vmatprep.mubr.bf16.mxu0 0
    %1068 = vmatmul.mubr.bf16.gmra.mrb[0].mxu0 %v1029
    %v1069 = vpop.f32.mrb[0].mxu0
    %v1070 = vadd.f32 0.0, %v1069
    %v1071 = vpop.f32.mrb[0].mxu0
    %v1072 = vpop.f32.mrb[0].mxu0
    %v1073 = vpop.f32.mrb[0].mxu0
    %1074 = vdwg.mxu0
    %v1076 = vsel %vm555, %v1021, 0
    %v1079 = vsel %vm1031, %v548, 0
    %1081 = vmatprep.subr.bf16.mxu0 0
    %1082 = vmatpush1.bf16.msra.mxu0 %v1079
    %1083 = vmatprep.subr.bf16.mxu0 0
    %1084 = vmatpush1.bf16.msra.mxu0 0
    %1085 = vmatprep.subr.bf16.mxu0 0
    %1086 = vmatpush1.bf16.msra.mxu0 0
    %1087 = vmatprep.subr.bf16.mxu0 0
    %1088 = vmatpush1.bf16.msra.mxu0 0
    %1089 = vmatprep.subr.bf16.mxu0 0
    %1090 = vmatpush1.bf16.msra.mxu0 0
    %1091 = vmatprep.subr.bf16.mxu0 0
    %1092 = vmatpush1.bf16.msra.mxu0 0
    %1093 = vmatprep.subr.bf16.mxu0 0
    %1094 = vmatpush1.bf16.msra.mxu0 0
    %1095 = vmatprep.subr.bf16.mxu0 0
    %1096 = vmatpush1.bf16.msra.mxu0 0
    %1097 = vmatprep.subr.bf16.mxu0 0
    %1098 = vmatpush1.bf16.msra.mxu0 0
    %1099 = vmatprep.subr.bf16.mxu0 0
    %1100 = vmatpush1.bf16.msra.mxu0 0
    %1101 = vmatprep.subr.bf16.mxu0 0
    %1102 = vmatpush1.bf16.msra.mxu0 0
    %1103 = vmatprep.subr.bf16.mxu0 0
    %1104 = vmatpush1.bf16.msra.mxu0 0
    %1105 = vmatprep.subr.bf16.mxu0 0
    %1106 = vmatpush1.bf16.msra.mxu0 0
    %1107 = vmatprep.subr.bf16.mxu0 0
    %1108 = vmatpush1.bf16.msra.mxu0 0
    %1109 = vmatprep.subr.bf16.mxu0 0
    %1110 = vmatpush1.bf16.msra.mxu0 0
    %1111 = vmatprep.subr.bf16.mxu0 0
    %1112 = vmatpush1.bf16.msra.mxu0 0
    %1113 = vmatprep.mubr.bf16.mxu0 0
    %1114 = vmatmul.mubr.bf16.gmra.mrb[0].mxu0 %v1076
    %v1115 = vpop.f32.mrb[0].mxu0
    %v1116 = vadd.f32 0.0, %v1115
    %v1117 = vpop.f32.mrb[0].mxu0
    %v1118 = vpop.f32.mrb[0].mxu0
    %v1119 = vpop.f32.mrb[0].mxu0
    %1120 = vdwg.mxu0
    %v1122 = vsel %vm555, %v1022, 0
    %v1125 = vsel %vm1031, %v549, 0
    %1127 = vmatprep.subr.bf16.mxu0 0
    %1128 = vmatpush1.bf16.msra.mxu0 %v1125
    %1129 = vmatprep.subr.bf16.mxu0 0
    %1130 = vmatpush1.bf16.msra.mxu0 0
    %1131 = vmatprep.subr.bf16.mxu0 0
    %1132 = vmatpush1.bf16.msra.mxu0 0
    %1133 = vmatprep.subr.bf16.mxu0 0
    %1134 = vmatpush1.bf16.msra.mxu0 0
    %1135 = vmatprep.subr.bf16.mxu0 0
    %1136 = vmatpush1.bf16.msra.mxu0 0
    %1137 = vmatprep.subr.bf16.mxu0 0
    %1138 = vmatpush1.bf16.msra.mxu0 0
    %1139 = vmatprep.subr.bf16.mxu0 0
    %1140 = vmatpush1.bf16.msra.mxu0 0
    %1141 = vmatprep.subr.bf16.mxu0 0
    %1142 = vmatpush1.bf16.msra.mxu0 0
    %1143 = vmatprep.subr.bf16.mxu0 0
    %1144 = vmatpush1.bf16.msra.mxu0 0
    %1145 = vmatprep.subr.bf16.mxu0 0
    %1146 = vmatpush1.bf16.msra.mxu0 0
    %1147 = vmatprep.subr.bf16.mxu0 0
    %1148 = vmatpush1.bf16.msra.mxu0 0
    %1149 = vmatprep.subr.bf16.mxu0 0
    %1150 = vmatpush1.bf16.msra.mxu0 0
    %1151 = vmatprep.subr.bf16.mxu0 0
    %1152 = vmatpush1.bf16.msra.mxu0 0
    %1153 = vmatprep.subr.bf16.mxu0 0
    %1154 = vmatpush1.bf16.msra.mxu0 0
    %1155 = vmatprep.subr.bf16.mxu0 0
    %1156 = vmatpush1.bf16.msra.mxu0 0
    %1157 = vmatprep.subr.bf16.mxu0 0
    %1158 = vmatpush1.bf16.msra.mxu0 0
    %1159 = vmatprep.mubr.bf16.mxu0 0
    %1160 = vmatmul.mubr.bf16.gmra.mrb[0].mxu0 %v1122
    %v1161 = vpop.f32.mrb[0].mxu0
    %v1162 = vadd.f32 0.0, %v1161
    %v1163 = vpop.f32.mrb[0].mxu0
    %v1164 = vpop.f32.mrb[0].mxu0
    %v1165 = vpop.f32.mrb[0].mxu0
    %1166 = vdwg.mxu0
    %v1168 = vsel %vm555, %v1023, 0
    %v1171 = vsel %vm1031, %v550, 0
    %1173 = vmatprep.subr.bf16.mxu0 0
    %1174 = vmatpush1.bf16.msra.mxu0 %v1171
    %1175 = vmatprep.subr.bf16.mxu0 0
    %1176 = vmatpush1.bf16.msra.mxu0 0
    %1177 = vmatprep.subr.bf16.mxu0 0
    %1178 = vmatpush1.bf16.msra.mxu0 0
    %1179 = vmatprep.subr.bf16.mxu0 0
    %1180 = vmatpush1.bf16.msra.mxu0 0
    %1181 = vmatprep.subr.bf16.mxu0 0
    %1182 = vmatpush1.bf16.msra.mxu0 0
    %1183 = vmatprep.subr.bf16.mxu0 0
    %1184 = vmatpush1.bf16.msra.mxu0 0
    %1185 = vmatprep.subr.bf16.mxu0 0
    %1186 = vmatpush1.bf16.msra.mxu0 0
    %1187 = vmatprep.subr.bf16.mxu0 0
    %1188 = vmatpush1.bf16.msra.mxu0 0
    %1189 = vmatprep.subr.bf16.mxu0 0
    %1190 = vmatpush1.bf16.msra.mxu0 0
    %1191 = vmatprep.subr.bf16.mxu0 0
    %1192 = vmatpush1.bf16.msra.mxu0 0
    %1193 = vmatprep.subr.bf16.mxu0 0
    %1194 = vmatpush1.bf16.msra.mxu0 0
    %1195 = vmatprep.subr.bf16.mxu0 0
    %1196 = vmatpush1.bf16.msra.mxu0 0
    %1197 = vmatprep.subr.bf16.mxu0 0
    %1198 = vmatpush1.bf16.msra.mxu0 0
    %1199 = vmatprep.subr.bf16.mxu0 0
    %1200 = vmatpush1.bf16.msra.mxu0 0
    %1201 = vmatprep.subr.bf16.mxu0 0
    %1202 = vmatpush1.bf16.msra.mxu0 0
    %1203 = vmatprep.subr.bf16.mxu0 0
    %1204 = vmatpush1.bf16.msra.mxu0 0
    %1205 = vmatprep.mubr.bf16.mxu0 0
    %1206 = vmatmul.mubr.bf16.gmra.mrb[0].mxu0 %v1168
    %v1207 = vpop.f32.mrb[0].mxu0
    %v1208 = vadd.f32 0.0, %v1207
    %v1209 = vpop.f32.mrb[0].mxu0
    %v1210 = vpop.f32.mrb[0].mxu0
    %v1211 = vpop.f32.mrb[0].mxu0
    %1212 = vdwg.mxu0
    %v1214 = vsel %vm555, %v1024, 0
    %v1217 = vsel %vm1031, %v551, 0
    %1219 = vmatprep.subr.bf16.mxu0 0
    %1220 = vmatpush1.bf16.msra.mxu0 %v1217
    %1221 = vmatprep.subr.bf16.mxu0 0
    %1222 = vmatpush1.bf16.msra.mxu0 0
    %1223 = vmatprep.subr.bf16.mxu0 0
    %1224 = vmatpush1.bf16.msra.mxu0 0
    %1225 = vmatprep.subr.bf16.mxu0 0
    %1226 = vmatpush1.bf16.msra.mxu0 0
    %1227 = vmatprep.subr.bf16.mxu0 0
    %1228 = vmatpush1.bf16.msra.mxu0 0
    %1229 = vmatprep.subr.bf16.mxu0 0
    %1230 = vmatpush1.bf16.msra.mxu0 0
    %1231 = vmatprep.subr.bf16.mxu0 0
    %1232 = vmatpush1.bf16.msra.mxu0 0
    %1233 = vmatprep.subr.bf16.mxu0 0
    %1234 = vmatpush1.bf16.msra.mxu0 0
    %1235 = vmatprep.subr.bf16.mxu0 0
    %1236 = vmatpush1.bf16.msra.mxu0 0
    %1237 = vmatprep.subr.bf16.mxu0 0
    %1238 = vmatpush1.bf16.msra.mxu0 0
    %1239 = vmatprep.subr.bf16.mxu0 0
    %1240 = vmatpush1.bf16.msra.mxu0 0
    %1241 = vmatprep.subr.bf16.mxu0 0
    %1242 = vmatpush1.bf16.msra.mxu0 0
    %1243 = vmatprep.subr.bf16.mxu0 0
    %1244 = vmatpush1.bf16.msra.mxu0 0
    %1245 = vmatprep.subr.bf16.mxu0 0
    %1246 = vmatpush1.bf16.msra.mxu0 0
    %1247 = vmatprep.subr.bf16.mxu0 0
    %1248 = vmatpush1.bf16.msra.mxu0 0
    %1249 = vmatprep.subr.bf16.mxu0 0
    %1250 = vmatpush1.bf16.msra.mxu0 0
    %1251 = vmatprep.mubr.bf16.mxu0 0
    %1252 = vmatmul.mubr.bf16.gmra.mrb[0].mxu0 %v1214
    %v1253 = vpop.f32.mrb[0].mxu0
    %v1254 = vadd.f32 0.0, %v1253
    %v1255 = vpop.f32.mrb[0].mxu0
    %v1256 = vpop.f32.mrb[0].mxu0
    %v1257 = vpop.f32.mrb[0].mxu0
    %1258 = vdwg.mxu0
    %v1260 = vsel %vm555, %v1025, 0
    %v1263 = vsel %vm1031, %v552, 0
    %1265 = vmatprep.subr.bf16.mxu0 0
    %1266 = vmatpush1.bf16.msra.mxu0 %v1263
    %1267 = vmatprep.subr.bf16.mxu0 0
    %1268 = vmatpush1.bf16.msra.mxu0 0
    %1269 = vmatprep.subr.bf16.mxu0 0
    %1270 = vmatpush1.bf16.msra.mxu0 0
    %1271 = vmatprep.subr.bf16.mxu0 0
    %1272 = vmatpush1.bf16.msra.mxu0 0
    %1273 = vmatprep.subr.bf16.mxu0 0
    %1274 = vmatpush1.bf16.msra.mxu0 0
    %1275 = vmatprep.subr.bf16.mxu0 0
    %1276 = vmatpush1.bf16.msra.mxu0 0
    %1277 = vmatprep.subr.bf16.mxu0 0
    %1278 = vmatpush1.bf16.msra.mxu0 0
    %1279 = vmatprep.subr.bf16.mxu0 0
    %1280 = vmatpush1.bf16.msra.mxu0 0
    %1281 = vmatprep.subr.bf16.mxu0 0
    %1282 = vmatpush1.bf16.msra.mxu0 0
    %1283 = vmatprep.subr.bf16.mxu0 0
    %1284 = vmatpush1.bf16.msra.mxu0 0
    %1285 = vmatprep.subr.bf16.mxu0 0
    %1286 = vmatpush1.bf16.msra.mxu0 0
    %1287 = vmatprep.subr.bf16.mxu0 0
    %1288 = vmatpush1.bf16.msra.mxu0 0
    %1289 = vmatprep.subr.bf16.mxu0 0
    %1290 = vmatpush1.bf16.msra.mxu0 0
    %1291 = vmatprep.subr.bf16.mxu0 0
    %1292 = vmatpush1.bf16.msra.mxu0 0
    %1293 = vmatprep.subr.bf16.mxu0 0
    %1294 = vmatpush1.bf16.msra.mxu0 0
    %1295 = vmatprep.subr.bf16.mxu0 0
    %1296 = vmatpush1.bf16.msra.mxu0 0
    %1297 = vmatprep.mubr.bf16.mxu0 0
    %1298 = vmatmul.mubr.bf16.gmra.mrb[0].mxu0 %v1260
    %v1299 = vpop.f32.mrb[0].mxu0
    %v1300 = vadd.f32 0.0, %v1299
    %v1301 = vpop.f32.mrb[0].mxu0
    %v1302 = vpop.f32.mrb[0].mxu0
    %v1303 = vpop.f32.mrb[0].mxu0
    %1304 = vdwg.mxu0
    %v1306 = vsel %vm555, %v1026, 0
    %v1309 = vsel %vm1031, %v553, 0
    %1311 = vmatprep.subr.bf16.mxu0 0
    %1312 = vmatpush1.bf16.msra.mxu0 %v1309
    %1313 = vmatprep.subr.bf16.mxu0 0
    %1314 = vmatpush1.bf16.msra.mxu0 0
    %1315 = vmatprep.subr.bf16.mxu0 0
    %1316 = vmatpush1.bf16.msra.mxu0 0
    %1317 = vmatprep.subr.bf16.mxu0 0
    %1318 = vmatpush1.bf16.msra.mxu0 0
    %1319 = vmatprep.subr.bf16.mxu0 0
    %1320 = vmatpush1.bf16.msra.mxu0 0
    %1321 = vmatprep.subr.bf16.mxu0 0
    %1322 = vmatpush1.bf16.msra.mxu0 0
    %1323 = vmatprep.subr.bf16.mxu0 0
    %1324 = vmatpush1.bf16.msra.mxu0 0
    %1325 = vmatprep.subr.bf16.mxu0 0
    %1326 = vmatpush1.bf16.msra.mxu0 0
    %1327 = vmatprep.subr.bf16.mxu0 0
    %1328 = vmatpush1.bf16.msra.mxu0 0
    %1329 = vmatprep.subr.bf16.mxu0 0
    %1330 = vmatpush1.bf16.msra.mxu0 0
    %1331 = vmatprep.subr.bf16.mxu0 0
    %1332 = vmatpush1.bf16.msra.mxu0 0
    %1333 = vmatprep.subr.bf16.mxu0 0
    %1334 = vmatpush1.bf16.msra.mxu0 0
    %1335 = vmatprep.subr.bf16.mxu0 0
    %1336 = vmatpush1.bf16.msra.mxu0 0
    %1337 = vmatprep.subr.bf16.mxu0 0
    %1338 = vmatpush1.bf16.msra.mxu0 0
    %1339 = vmatprep.subr.bf16.mxu0 0
    %1340 = vmatpush1.bf16.msra.mxu0 0
    %1341 = vmatprep.subr.bf16.mxu0 0
    %1342 = vmatpush1.bf16.msra.mxu0 0
    %1343 = vmatprep.mubr.bf16.mxu0 0
    %1344 = vmatmul.mubr.bf16.gmra.mrb[0].mxu0 %v1306
    %v1345 = vpop.f32.mrb[0].mxu0
    %v1346 = vadd.f32 0.0, %v1345
    %v1347 = vpop.f32.mrb[0].mxu0
    %v1348 = vpop.f32.mrb[0].mxu0
    %v1349 = vpop.f32.mrb[0].mxu0
    %1350 = vdwg.mxu0
    %v1352 = vsel %vm555, %v1027, 0
    %v1355 = vsel %vm1031, %v554, 0
    %1357 = vmatprep.subr.bf16.mxu0 0
    %1358 = vmatpush1.bf16.msra.mxu0 %v1355
    %1359 = vmatprep.subr.bf16.mxu0 0
    %1360 = vmatpush1.bf16.msra.mxu0 0
    %1361 = vmatprep.subr.bf16.mxu0 0
    %1362 = vmatpush1.bf16.msra.mxu0 0
    %1363 = vmatprep.subr.bf16.mxu0 0
    %1364 = vmatpush1.bf16.msra.mxu0 0
    %1365 = vmatprep.subr.bf16.mxu0 0
    %1366 = vmatpush1.bf16.msra.mxu0 0
    %1367 = vmatprep.subr.bf16.mxu0 0
    %1368 = vmatpush1.bf16.msra.mxu0 0
    %1369 = vmatprep.subr.bf16.mxu0 0
    %1370 = vmatpush1.bf16.msra.mxu0 0
    %1371 = vmatprep.subr.bf16.mxu0 0
    %1372 = vmatpush1.bf16.msra.mxu0 0
    %1373 = vmatprep.subr.bf16.mxu0 0
    %1374 = vmatpush1.bf16.msra.mxu0 0
    %1375 = vmatprep.subr.bf16.mxu0 0
    %1376 = vmatpush1.bf16.msra.mxu0 0
    %1377 = vmatprep.subr.bf16.mxu0 0
    %1378 = vmatpush1.bf16.msra.mxu0 0
    %1379 = vmatprep.subr.bf16.mxu0 0
    %1380 = vmatpush1.bf16.msra.mxu0 0
    %1381 = vmatprep.subr.bf16.mxu0 0
    %1382 = vmatpush1.bf16.msra.mxu0 0
    %1383 = vmatprep.subr.bf16.mxu0 0
    %1384 = vmatpush1.bf16.msra.mxu0 0
    %1385 = vmatprep.subr.bf16.mxu0 0
    %1386 = vmatpush1.bf16.msra.mxu0 0
    %1387 = vmatprep.subr.bf16.mxu0 0
    %1388 = vmatpush1.bf16.msra.mxu0 0
    %1389 = vmatprep.mubr.bf16.mxu0 0
    %1390 = vmatmul.mubr.bf16.gmra.mrb[0].mxu0 %v1352
    %v1391 = vpop.f32.mrb[0].mxu0
    %v1392 = vadd.f32 0.0, %v1391
    %v1393 = vpop.f32.mrb[0].mxu0
    %v1394 = vpop.f32.mrb[0].mxu0
    %v1395 = vpop.f32.mrb[0].mxu0
    %1396 = vdwg.mxu0
    %1399 = vrot.lane.b32.xlu0 %v1162, 8
    %v1400 = vpop.permute.xlu0 %1399
    %1401 = vrot.lane.b32.xlu0 %v1208, 8
    %v1402 = vpop.permute.xlu0 %1401
    %1407 = vrot.lane.b32.xlu0 %v1254, 16
    %v1408 = vpop.permute.xlu0 %1407
    %1409 = vrot.lane.b32.xlu0 %v1300, 16
    %v1410 = vpop.permute.xlu0 %1409
    %1415 = vrot.lane.b32.xlu0 %v1346, 24
    %v1416 = vpop.permute.xlu0 %1415
    %1417 = vrot.lane.b32.xlu0 %v1392, 24
    %v1418 = vpop.permute.xlu0 %1417
    %v1421 = vsel %vm555, %v1070, %v1400
    %v1422 = vsel %vm555, %v1116, %v1402
    %vm1423 = vcmask 130048
    %v1424 = vsel %vm1423, %v1421, %v1408
    %v1425 = vsel %vm1423, %v1422, %v1410
    %vm1426 = vcmask 195584
    %v1427 = vsel %vm1426, %v1424, %v1416
    %v1428 = vsel %vm1426, %v1425, %v1418
    %v1429 = vpack.c.bf16 %v1428, %v1427
    %v1430 = vld [vmem:[#allocation10] sm:$0xf]
    %v1431 = vld [vmem:[#allocation10 + $0x4] sm:$0xf]
    %v1432 = vld [vmem:[#allocation10 + $0x8] sm:$0xf]
    %v1433 = vld [vmem:[#allocation10 + $0xc] sm:$0xf]
    %v1434 = vld [vmem:[#allocation11] sm:$0x1]
    %v1436 = vlaneseq
    %v1437 = vshrl.u32 %v1436, 7
    %v1438 = vsub.s32 0, %v1437
    %v1439 = vrot.slane %v1434, %v1438
    %v1445 = vunpack.c.l.b16 %v1430
    %v1446 = vunpack.c.l.b16 %v1431
    %v1447 = vunpack.c.l.b16 %v1432
    %v1448 = vunpack.c.l.b16 %v1433
    %v1449 = vpack.c.b16 %v1446, %v1445
    %v1450 = vpack.c.b16 %v1448, %v1447
    %v1454 = vsel %vm298, %v1429, 0
    %1456 = vmatprep.subr.bf16.mxu0 0
    %1457 = vmatpush1.bf16.msra.mxu0 %v1449
    %1458 = vmatprep.subr.bf16.mxu0 0
    %1459 = vmatpush1.bf16.msra.mxu0 %v1450
    %1460 = vmatprep.subr.bf16.mxu0 0
    %1461 = vmatpush1.bf16.msra.mxu0 0
    %1462 = vmatprep.subr.bf16.mxu0 0
    %1463 = vmatpush1.bf16.msra.mxu0 0
    %1464 = vmatprep.subr.bf16.mxu0 0
    %1465 = vmatpush1.bf16.msra.mxu0 0
    %1466 = vmatprep.subr.bf16.mxu0 0
    %1467 = vmatpush1.bf16.msra.mxu0 0
    %1468 = vmatprep.subr.bf16.mxu0 0
    %1469 = vmatpush1.bf16.msra.mxu0 0
    %1470 = vmatprep.subr.bf16.mxu0 0
    %1471 = vmatpush1.bf16.msra.mxu0 0
    %1472 = vmatprep.subr.bf16.mxu0 0
    %1473 = vmatpush1.bf16.msra.mxu0 0
    %1474 = vmatprep.subr.bf16.mxu0 0
    %1475 = vmatpush1.bf16.msra.mxu0 0
    %1476 = vmatprep.subr.bf16.mxu0 0
    %1477 = vmatpush1.bf16.msra.mxu0 0
    %1478 = vmatprep.subr.bf16.mxu0 0
    %1479 = vmatpush1.bf16.msra.mxu0 0
    %1480 = vmatprep.subr.bf16.mxu0 0
    %1481 = vmatpush1.bf16.msra.mxu0 0
    %1482 = vmatprep.subr.bf16.mxu0 0
    %1483 = vmatpush1.bf16.msra.mxu0 0
    %1484 = vmatprep.subr.bf16.mxu0 0
    %1485 = vmatpush1.bf16.msra.mxu0 0
    %1486 = vmatprep.subr.bf16.mxu0 0
    %1487 = vmatpush1.bf16.msra.mxu0 0
    %1488 = vmatprep.mubr.bf16.mxu0 0
    %1489 = vmatmul.mubr.bf16.gmra.mrb[0].mxu0 %v1454
    %v1490 = vpop.f32.mrb[0].mxu0
    %v1491 = vadd.f32 %v1439, %v1490
    %v1492 = vpop.f32.mrb[0].mxu0
    %v1493 = vpop.f32.mrb[0].mxu0
    %v1494 = vadd.f32 %v1439, %v1493
    %v1495 = vpop.f32.mrb[0].mxu0
    %1496 = vdwg.mxu0
    %v1497 = vadd.f32 %v1491, %v269
    %v1498 = vadd.f32 %v1494, %v270
    %v1499 = vld [vmem:[#allocation13] sm:$0x1]
    %v1500 = vld [vmem:[#allocation14] sm:$0x1]
    %v1501 = vsel %vm298, %v1497, 0.0
    %1502 = vadd.xlane.f32.xlu0 %v1501
    %v1503 = vpop.xlane.xlu0 %1502
    %v1504 = vsel %vm298, %v1498, 0.0
    %1505 = vadd.xlane.f32.xlu0 %v1504
    %v1506 = vpop.xlane.xlu0 %1505
    %v1507 = vrcp.pop 32.0
    %v1508 = vmul.f32 %v1503, %v1507
    %v1509 = vmul.f32 %v1506, %v1507
    %v1510 = vsub.f32 %v1497, %v1508
    %v1511 = vsub.f32 %v1498, %v1509
    %v1512 = vmul.f32 %v1510, %v1510
    %v1513 = vmul.f32 %v1511, %v1511
    %v1514 = vsel %vm298, %v1512, 0.0
    %1515 = vadd.xlane.f32.xlu0 %v1514
    %v1516 = vpop.xlane.xlu0 %1515
    %v1517 = vsel %vm298, %v1513, 0.0
    %1518 = vadd.xlane.f32.xlu0 %v1517
    %v1519 = vpop.xlane.xlu0 %1518
    %v1520 = vmul.f32 %v1516, %v1507
    %v1521 = vmul.f32 %v1519, %v1507
    %v1522 = vadd.f32 %v1520, 1e-05
    %v1523 = vadd.f32 %v1521, 1e-05
    %v1524 = vrsqrt.pop %v1522
    %v1525 = vrsqrt.pop %v1523
    %v1526 = vmul.f32 %v1510, %v1524
    %v1527 = vmul.f32 %v1511, %v1525
    %v1529 = vlaneseq
    %v1530 = vshrl.u32 %v1529, 7
    %v1531 = vsub.s32 0, %v1530
    %v1532 = vrot.slane %v1499, %v1531
    %v1534 = vmul.f32 %v1526, %v1532
    %v1535 = vmul.f32 %v1527, %v1532
    %v1537 = vlaneseq
    %v1538 = vshrl.u32 %v1537, 7
    %v1539 = vsub.s32 0, %v1538
    %v1540 = vrot.slane %v1500, %v1539
    %v1542 = vadd.f32 %v1534, %v1540
    %v1543 = vadd.f32 %v1535, %v1540
    %v1544 = vpack.c.bf16 %v1543, %v1542
    %v1545 = vld [vmem:[%s25] sm:$0xf]
    %v1546 = vld [vmem:[%s25 + $0x4] sm:$0xf]
    %v1547 = vld [vmem:[%s25 + $0x8] sm:$0xf]
    %v1548 = vld [vmem:[%s25 + $0xc] sm:$0xf]
    %v1549 = vld [vmem:[#allocation16] sm:$0x1]
    %v1551 = vlaneseq
    %v1552 = vshrl.u32 %v1551, 7
    %v1553 = vsub.s32 0, %v1552
    %v1554 = vrot.slane %v1549, %v1553
    %v1560 = vunpack.c.l.b16 %v1545
    %v1561 = vunpack.c.l.b16 %v1546
    %v1562 = vunpack.c.l.b16 %v1547
    %v1563 = vunpack.c.l.b16 %v1548
    %v1564 = vpack.c.b16 %v1561, %v1560
    %v1565 = vpack.c.b16 %v1563, %v1562
    %v1569 = vsel %vm298, %v1544, 0
    %1571 = vmatprep.subr.bf16.mxu0 0
    %1572 = vmatpush1.bf16.msra.mxu0 %v1564
    %1573 = vmatprep.subr.bf16.mxu0 0
    %1574 = vmatpush1.bf16.msra.mxu0 %v1565
    %1575 = vmatprep.subr.bf16.mxu0 0
    %1576 = vmatpush1.bf16.msra.mxu0 0
    %1577 = vmatprep.subr.bf16.mxu0 0
    %1578 = vmatpush1.bf16.msra.mxu0 0
    %1579 = vmatprep.subr.bf16.mxu0 0
    %1580 = vmatpush1.bf16.msra.mxu0 0
    %1581 = vmatprep.subr.bf16.mxu0 0
    %1582 = vmatpush1.bf16.msra.mxu0 0
    %1583 = vmatprep.subr.bf16.mxu0 0
    %1584 = vmatpush1.bf16.msra.mxu0 0
    %1585 = vmatprep.subr.bf16.mxu0 0
    %1586 = vmatpush1.bf16.msra.mxu0 0
    %1587 = vmatprep.subr.bf16.mxu0 0
    %1588 = vmatpush1.bf16.msra.mxu0 0
    %1589 = vmatprep.subr.bf16.mxu0 0
    %1590 = vmatpush1.bf16.msra.mxu0 0
    %1591 = vmatprep.subr.bf16.mxu0 0
    %1592 = vmatpush1.bf16.msra.mxu0 0
    %1593 = vmatprep.subr.bf16.mxu0 0
    %1594 = vmatpush1.bf16.msra.mxu0 0
    %1595 = vmatprep.subr.bf16.mxu0 0
    %1596 = vmatpush1.bf16.msra.mxu0 0
    %1597 = vmatprep.subr.bf16.mxu0 0
    %1598 = vmatpush1.bf16.msra.mxu0 0
    %1599 = vmatprep.subr.bf16.mxu0 0
    %1600 = vmatpush1.bf16.msra.mxu0 0
    %1601 = vmatprep.subr.bf16.mxu0 0
    %1602 = vmatpush1.bf16.msra.mxu0 0
    %1603 = vmatprep.mubr.bf16.mxu0 0
    %1604 = vmatmul.mubr.bf16.gmra.mrb[0].mxu0 %v1569
    %v1605 = vpop.f32.mrb[0].mxu0
    %v1606 = vadd.f32 %v1554, %v1605
    %v1607 = vpop.f32.mrb[0].mxu0
    %v1608 = vpop.f32.mrb[0].mxu0
    %v1609 = vadd.f32 %v1554, %v1608
    %v1610 = vpop.f32.mrb[0].mxu0
    %1611 = vdwg.mxu0
    %v1612 = vld [vmem:[%s29] sm:$0xf]
    %v1613 = vld [vmem:[%s29 + $0x4] sm:$0xf]
    %v1614 = vld [vmem:[%s29 + $0x8] sm:$0xf]
    %v1615 = vld [vmem:[%s29 + $0xc] sm:$0xf]
    %v1616 = vld [vmem:[#allocation17] sm:$0x1]
    %v1618 = vlaneseq
    %v1619 = vshrl.u32 %v1618, 7
    %v1620 = vsub.s32 0, %v1619
    %v1621 = vrot.slane %v1616, %v1620
    %v1627 = vunpack.c.l.b16 %v1612
    %v1628 = vunpack.c.l.b16 %v1613
    %v1629 = vunpack.c.l.b16 %v1614
    %v1630 = vunpack.c.l.b16 %v1615
    %v1631 = vpack.c.b16 %v1628, %v1627
    %v1632 = vpack.c.b16 %v1630, %v1629
    %v1636 = vsel %vm298, %v274, 0
    %1638 = vmatprep.subr.bf16.mxu0 0
    %1639 = vmatpush1.bf16.msra.mxu0 %v1631
    %1640 = vmatprep.subr.bf16.mxu0 0
    %1641 = vmatpush1.bf16.msra.mxu0 %v1632
    %1642 = vmatprep.subr.bf16.mxu0 0
    %1643 = vmatpush1.bf16.msra.mxu0 0
    %1644 = vmatprep.subr.bf16.mxu0 0
    %1645 = vmatpush1.bf16.msra.mxu0 0
    %1646 = vmatprep.subr.bf16.mxu0 0
    %1647 = vmatpush1.bf16.msra.mxu0 0
    %1648 = vmatprep.subr.bf16.mxu0 0
    %1649 = vmatpush1.bf16.msra.mxu0 0
    %1650 = vmatprep.subr.bf16.mxu0 0
    %1651 = vmatpush1.bf16.msra.mxu0 0
    %1652 = vmatprep.subr.bf16.mxu0 0
    %1653 = vmatpush1.bf16.msra.mxu0 0
    %1654 = vmatprep.subr.bf16.mxu0 0
    %1655 = vmatpush1.bf16.msra.mxu0 0
    %1656 = vmatprep.subr.bf16.mxu0 0
    %1657 = vmatpush1.bf16.msra.mxu0 0
    %1658 = vmatprep.subr.bf16.mxu0 0
    %1659 = vmatpush1.bf16.msra.mxu0 0
    %1660 = vmatprep.subr.bf16.mxu0 0
    %1661 = vmatpush1.bf16.msra.mxu0 0
    %1662 = vmatprep.subr.bf16.mxu0 0
    %1663 = vmatpush1.bf16.msra.mxu0 0
    %1664 = vmatprep.subr.bf16.mxu0 0
    %1665 = vmatpush1.bf16.msra.mxu0 0
    %1666 = vmatprep.subr.bf16.mxu0 0
    %1667 = vmatpush1.bf16.msra.mxu0 0
    %1668 = vmatprep.subr.bf16.mxu0 0
    %1669 = vmatpush1.bf16.msra.mxu0 0
    %1670 = vmatprep.mubr.bf16.mxu0 0
    %1671 = vmatmul.mubr.bf16.gmra.mrb[0].mxu0 %v1636
    %v1672 = vpop.f32.mrb[0].mxu0
    %v1673 = vadd.f32 %v1621, %v1672
    %v1674 = vpop.f32.mrb[0].mxu0
    %v1675 = vpop.f32.mrb[0].mxu0
    %v1676 = vadd.f32 %v1621, %v1675
    %v1677 = vpop.f32.mrb[0].mxu0
    %1678 = vdwg.mxu0
    %v1679 = vld [vmem:[#allocation19] sm:$0xf]
    %v1680 = vld [vmem:[#allocation19 + $0x4] sm:$0xf]
    %v1681 = vld [vmem:[#allocation19 + $0x8] sm:$0xf]
    %v1682 = vld [vmem:[#allocation19 + $0xc] sm:$0xf]
    %v1683 = vld [vmem:[#allocation20] sm:$0x1]
    %v1685 = vlaneseq
    %v1686 = vshrl.u32 %v1685, 7
    %v1687 = vsub.s32 0, %v1686
    %v1688 = vrot.slane %v1683, %v1687
    %v1694 = vunpack.c.l.b16 %v1679
    %v1695 = vunpack.c.l.b16 %v1680
    %v1696 = vunpack.c.l.b16 %v1681
    %v1697 = vunpack.c.l.b16 %v1682
    %v1698 = vpack.c.b16 %v1695, %v1694
    %v1699 = vpack.c.b16 %v1697, %v1696
    %1702 = vmatprep.subr.bf16.mxu0 0
    %1703 = vmatpush1.bf16.msra.mxu0 %v1698
    %1704 = vmatprep.subr.bf16.mxu0 0
    %1705 = vmatpush1.bf16.msra.mxu0 %v1699
    %1706 = vmatprep.subr.bf16.mxu0 0
    %1707 = vmatpush1.bf16.msra.mxu0 0
    %1708 = vmatprep.subr.bf16.mxu0 0
    %1709 = vmatpush1.bf16.msra.mxu0 0
    %1710 = vmatprep.subr.bf16.mxu0 0
    %1711 = vmatpush1.bf16.msra.mxu0 0
    %1712 = vmatprep.subr.bf16.mxu0 0
    %1713 = vmatpush1.bf16.msra.mxu0 0
    %1714 = vmatprep.subr.bf16.mxu0 0
    %1715 = vmatpush1.bf16.msra.mxu0 0
    %1716 = vmatprep.subr.bf16.mxu0 0
    %1717 = vmatpush1.bf16.msra.mxu0 0
    %1718 = vmatprep.subr.bf16.mxu0 0
    %1719 = vmatpush1.bf16.msra.mxu0 0
    %1720 = vmatprep.subr.bf16.mxu0 0
    %1721 = vmatpush1.bf16.msra.mxu0 0
    %1722 = vmatprep.subr.bf16.mxu0 0
    %1723 = vmatpush1.bf16.msra.mxu0 0
    %1724 = vmatprep.subr.bf16.mxu0 0
    %1725 = vmatpush1.bf16.msra.mxu0 0
    %1726 = vmatprep.subr.bf16.mxu0 0
    %1727 = vmatpush1.bf16.msra.mxu0 0
    %1728 = vmatprep.subr.bf16.mxu0 0
    %1729 = vmatpush1.bf16.msra.mxu0 0
    %1730 = vmatprep.subr.bf16.mxu0 0
    %1731 = vmatpush1.bf16.msra.mxu0 0
    %1732 = vmatprep.subr.bf16.mxu0 0
    %1733 = vmatpush1.bf16.msra.mxu0 0
    %1734 = vmatprep.mubr.bf16.mxu0 0
    %1735 = vmatmul.mubr.bf16.gmra.mrb[0].mxu0 %v1636
    %v1736 = vpop.f32.mrb[0].mxu0
    %v1737 = vadd.f32 %v1688, %v1736
    %v1738 = vpop.f32.mrb[0].mxu0
    %v1739 = vpop.f32.mrb[0].mxu0
    %v1740 = vadd.f32 %v1688, %v1739
    %v1741 = vpop.f32.mrb[0].mxu0
    %1742 = vdwg.mxu0
    %1745 = vrot.lane.b32.xlu0 %v1606, 120
    %v1746 = vpop.permute.xlu0 %1745
    %1747 = vrot.lane.b32.xlu0 %v1609, 120
    %v1748 = vpop.permute.xlu0 %1747
    %1751 = vrot.lane.b32.xlu0 %v1606, 112
    %v1752 = vpop.permute.xlu0 %1751
    %1753 = vrot.lane.b32.xlu0 %v1609, 112
    %v1754 = vpop.permute.xlu0 %1753
    %1757 = vrot.lane.b32.xlu0 %v1606, 104
    %v1758 = vpop.permute.xlu0 %1757
    %1759 = vrot.lane.b32.xlu0 %v1609, 104
    %v1760 = vpop.permute.xlu0 %1759
    %v1763 = vpack.c.bf16 %v1606, %v1606
    %v1764 = vpack.c.bf16 %v1609, %v1609
    %v1765 = vpack.c.bf16 %v1746, %v1746
    %v1766 = vpack.c.bf16 %v1748, %v1748
    %v1767 = vpack.c.bf16 %v1752, %v1752
    %v1768 = vpack.c.bf16 %v1754, %v1754
    %v1769 = vpack.c.bf16 %v1758, %v1758
    %v1770 = vpack.c.bf16 %v1760, %v1760
    %1773 = vrot.lane.b32.xlu0 %v1673, 120
    %v1774 = vpop.permute.xlu0 %1773
    %1775 = vrot.lane.b32.xlu0 %v1676, 120
    %v1776 = vpop.permute.xlu0 %1775
    %1779 = vrot.lane.b32.xlu0 %v1673, 112
    %v1780 = vpop.permute.xlu0 %1779
    %1781 = vrot.lane.b32.xlu0 %v1676, 112
    %v1782 = vpop.permute.xlu0 %1781
    %1785 = vrot.lane.b32.xlu0 %v1673, 104
    %v1786 = vpop.permute.xlu0 %1785
    %1787 = vrot.lane.b32.xlu0 %v1676, 104
    %v1788 = vpop.permute.xlu0 %1787
    %v1791 = vpack.c.bf16 %v1673, %v1673
    %v1792 = vpack.c.bf16 %v1676, %v1676
    %v1793 = vpack.c.bf16 %v1774, %v1774
    %v1794 = vpack.c.bf16 %v1776, %v1776
    %v1795 = vpack.c.bf16 %v1780, %v1780
    %v1796 = vpack.c.bf16 %v1782, %v1782
    %v1797 = vpack.c.bf16 %v1786, %v1786
    %v1798 = vpack.c.bf16 %v1788, %v1788
    %1801 = vrot.lane.b32.xlu0 %v1737, 120
    %v1802 = vpop.permute.xlu0 %1801
    %1803 = vrot.lane.b32.xlu0 %v1740, 120
    %v1804 = vpop.permute.xlu0 %1803
    %1807 = vrot.lane.b32.xlu0 %v1737, 112
    %v1808 = vpop.permute.xlu0 %1807
    %1809 = vrot.lane.b32.xlu0 %v1740, 112
    %v1810 = vpop.permute.xlu0 %1809
    %1813 = vrot.lane.b32.xlu0 %v1737, 104
    %v1814 = vpop.permute.xlu0 %1813
    %1815 = vrot.lane.b32.xlu0 %v1740, 104
    %v1816 = vpop.permute.xlu0 %1815
    %v1819 = vpack.c.bf16 %v1737, %v1737
    %v1820 = vpack.c.bf16 %v1740, %v1740
    %v1821 = vpack.c.bf16 %v1802, %v1802
    %v1822 = vpack.c.bf16 %v1804, %v1804
    %v1823 = vpack.c.bf16 %v1808, %v1808
    %v1824 = vpack.c.bf16 %v1810, %v1810
    %v1825 = vpack.c.bf16 %v1814, %v1814
    %v1826 = vpack.c.bf16 %v1816, %v1816
    %v1828 = vsel %vm555, %v1763, 0
    %v1831 = vsel %vm555, %v1791, 0
    %1833 = vmatprep.subr.bf16.mxu0 0
    %1834 = vmatpush1.bf16.xpose.msra.mxu0 %v1831
    %1835 = vmatprep.subr.bf16.mxu0 0
    %1836 = vmatpush1.bf16.xpose.msra.mxu0 0
    %1837 = vmatprep.subr.bf16.mxu0 0
    %1838 = vmatpush1.bf16.xpose.msra.mxu0 0
    %1839 = vmatprep.subr.bf16.mxu0 0
    %1840 = vmatpush1.bf16.xpose.msra.mxu0 0
    %1841 = vmatprep.subr.bf16.mxu0 0
    %1842 = vmatpush1.bf16.xpose.msra.mxu0 0
    %1843 = vmatprep.subr.bf16.mxu0 0
    %1844 = vmatpush1.bf16.xpose.msra.mxu0 0
    %1845 = vmatprep.subr.bf16.mxu0 0
    %1846 = vmatpush1.bf16.xpose.msra.mxu0 0
    %1847 = vmatprep.subr.bf16.mxu0 0
    %1848 = vmatpush1.bf16.xpose.msra.mxu0 0
    %1849 = vmatprep.subr.bf16.mxu0 0
    %1850 = vmatpush1.bf16.xpose.msra.mxu0 0
    %1851 = vmatprep.subr.bf16.mxu0 0
    %1852 = vmatpush1.bf16.xpose.msra.mxu0 0
    %1853 = vmatprep.subr.bf16.mxu0 0
    %1854 = vmatpush1.bf16.xpose.msra.mxu0 0
    %1855 = vmatprep.subr.bf16.mxu0 0
    %1856 = vmatpush1.bf16.xpose.msra.mxu0 0
    %1857 = vmatprep.subr.bf16.mxu0 0
    %1858 = vmatpush1.bf16.xpose.msra.mxu0 0
    %1859 = vmatprep.subr.bf16.mxu0 0
    %1860 = vmatpush1.bf16.xpose.msra.mxu0 0
    %1861 = vmatprep.subr.bf16.mxu0 0
    %1862 = vmatpush1.bf16.xpose.msra.mxu0 0
    %1863 = vmatprep.subr.bf16.mxu0 0
    %1864 = vmatpush1.bf16.xpose.msra.mxu0 0
    %1865 = vmatprep.mubr.bf16.mxu0 0
    %1866 = vmatmul.mubr.bf16.gmra.mrb[0].mxu0 %v1828
    %v1867 = vpop.f32.mrb[0].mxu0
    %v1868 = vadd.f32 0.0, %v1867
    %v1869 = vpop.f32.mrb[0].mxu0
    %v1870 = vpop.f32.mrb[0].mxu0
    %v1871 = vpop.f32.mrb[0].mxu0
    %1872 = vdwg.mxu0
    %v1874 = vsel %vm555, %v1764, 0
    %v1877 = vsel %vm555, %v1792, 0
    %1879 = vmatprep.subr.bf16.mxu0 0
    %1880 = vmatpush1.bf16.xpose.msra.mxu0 %v1877
    %1881 = vmatprep.subr.bf16.mxu0 0
    %1882 = vmatpush1.bf16.xpose.msra.mxu0 0
    %1883 = vmatprep.subr.bf16.mxu0 0
    %1884 = vmatpush1.bf16.xpose.msra.mxu0 0
    %1885 = vmatprep.subr.bf16.mxu0 0
    %1886 = vmatpush1.bf16.xpose.msra.mxu0 0
    %1887 = vmatprep.subr.bf16.mxu0 0
    %1888 = vmatpush1.bf16.xpose.msra.mxu0 0
    %1889 = vmatprep.subr.bf16.mxu0 0
    %1890 = vmatpush1.bf16.xpose.msra.mxu0 0
    %1891 = vmatprep.subr.bf16.mxu0 0
    %1892 = vmatpush1.bf16.xpose.msra.mxu0 0
    %1893 = vmatprep.subr.bf16.mxu0 0
    %1894 = vmatpush1.bf16.xpose.msra.mxu0 0
    %1895 = vmatprep.subr.bf16.mxu0 0
    %1896 = vmatpush1.bf16.xpose.msra.mxu0 0
    %1897 = vmatprep.subr.bf16.mxu0 0
    %1898 = vmatpush1.bf16.xpose.msra.mxu0 0
    %1899 = vmatprep.subr.bf16.mxu0 0
    %1900 = vmatpush1.bf16.xpose.msra.mxu0 0
    %1901 = vmatprep.subr.bf16.mxu0 0
    %1902 = vmatpush1.bf16.xpose.msra.mxu0 0
    %1903 = vmatprep.subr.bf16.mxu0 0
    %1904 = vmatpush1.bf16.xpose.msra.mxu0 0
    %1905 = vmatprep.subr.bf16.mxu0 0
    %1906 = vmatpush1.bf16.xpose.msra.mxu0 0
    %1907 = vmatprep.subr.bf16.mxu0 0
    %1908 = vmatpush1.bf16.xpose.msra.mxu0 0
    %1909 = vmatprep.subr.bf16.mxu0 0
    %1910 = vmatpush1.bf16.xpose.msra.mxu0 0
    %1911 = vmatprep.mubr.bf16.mxu0 0
    %1912 = vmatmul.mubr.bf16.gmra.mrb[0].mxu0 %v1874
    %v1913 = vpop.f32.mrb[0].mxu0
    %v1914 = vadd.f32 0.0, %v1913
    %v1915 = vpop.f32.mrb[0].mxu0
    %v1916 = vpop.f32.mrb[0].mxu0
    %v1917 = vpop.f32.mrb[0].mxu0
    %1918 = vdwg.mxu0
    %v1920 = vsel %vm555, %v1765, 0
    %v1923 = vsel %vm555, %v1793, 0
    %1925 = vmatprep.subr.bf16.mxu0 0
    %1926 = vmatpush1.bf16.xpose.msra.mxu0 %v1923
    %1927 = vmatprep.subr.bf16.mxu0 0
    %1928 = vmatpush1.bf16.xpose.msra.mxu0 0
    %1929 = vmatprep.subr.bf16.mxu0 0
    %1930 = vmatpush1.bf16.xpose.msra.mxu0 0
    %1931 = vmatprep.subr.bf16.mxu0 0
    %1932 = vmatpush1.bf16.xpose.msra.mxu0 0
    %1933 = vmatprep.subr.bf16.mxu0 0
    %1934 = vmatpush1.bf16.xpose.msra.mxu0 0
    %1935 = vmatprep.subr.bf16.mxu0 0
    %1936 = vmatpush1.bf16.xpose.msra.mxu0 0
    %1937 = vmatprep.subr.bf16.mxu0 0
    %1938 = vmatpush1.bf16.xpose.msra.mxu0 0
    %1939 = vmatprep.subr.bf16.mxu0 0
    %1940 = vmatpush1.bf16.xpose.msra.mxu0 0
    %1941 = vmatprep.subr.bf16.mxu0 0
    %1942 = vmatpush1.bf16.xpose.msra.mxu0 0
    %1943 = vmatprep.subr.bf16.mxu0 0
    %1944 = vmatpush1.bf16.xpose.msra.mxu0 0
    %1945 = vmatprep.subr.bf16.mxu0 0
    %1946 = vmatpush1.bf16.xpose.msra.mxu0 0
    %1947 = vmatprep.subr.bf16.mxu0 0
    %1948 = vmatpush1.bf16.xpose.msra.mxu0 0
    %1949 = vmatprep.subr.bf16.mxu0 0
    %1950 = vmatpush1.bf16.xpose.msra.mxu0 0
    %1951 = vmatprep.subr.bf16.mxu0 0
    %1952 = vmatpush1.bf16.xpose.msra.mxu0 0
    %1953 = vmatprep.subr.bf16.mxu0 0
    %1954 = vmatpush1.bf16.xpose.msra.mxu0 0
    %1955 = vmatprep.subr.bf16.mxu0 0
    %1956 = vmatpush1.bf16.xpose.msra.mxu0 0
    %1957 = vmatprep.mubr.bf16.mxu0 0
    %1958 = vmatmul.mubr.bf16.gmra.mrb[0].mxu0 %v1920
    %v1959 = vpop.f32.mrb[0].mxu0
    %v1960 = vadd.f32 0.0, %v1959
    %v1961 = vpop.f32.mrb[0].mxu0
    %v1962 = vpop.f32.mrb[0].mxu0
    %v1963 = vpop.f32.mrb[0].mxu0
    %1964 = vdwg.mxu0
    %v1966 = vsel %vm555, %v1766, 0
    %v1969 = vsel %vm555, %v1794, 0
    %1971 = vmatprep.subr.bf16.mxu0 0
    %1972 = vmatpush1.bf16.xpose.msra.mxu0 %v1969
    %1973 = vmatprep.subr.bf16.mxu0 0
    %1974 = vmatpush1.bf16.xpose.msra.mxu0 0
    %1975 = vmatprep.subr.bf16.mxu0 0
    %1976 = vmatpush1.bf16.xpose.msra.mxu0 0
    %1977 = vmatprep.subr.bf16.mxu0 0
    %1978 = vmatpush1.bf16.xpose.msra.mxu0 0
    %1979 = vmatprep.subr.bf16.mxu0 0
    %1980 = vmatpush1.bf16.xpose.msra.mxu0 0
    %1981 = vmatprep.subr.bf16.mxu0 0
    %1982 = vmatpush1.bf16.xpose.msra.mxu0 0
    %1983 = vmatprep.subr.bf16.mxu0 0
    %1984 = vmatpush1.bf16.xpose.msra.mxu0 0
    %1985 = vmatprep.subr.bf16.mxu0 0
    %1986 = vmatpush1.bf16.xpose.msra.mxu0 0
    %1987 = vmatprep.subr.bf16.mxu0 0
    %1988 = vmatpush1.bf16.xpose.msra.mxu0 0
    %1989 = vmatprep.subr.bf16.mxu0 0
    %1990 = vmatpush1.bf16.xpose.msra.mxu0 0
    %1991 = vmatprep.subr.bf16.mxu0 0
    %1992 = vmatpush1.bf16.xpose.msra.mxu0 0
    %1993 = vmatprep.subr.bf16.mxu0 0
    %1994 = vmatpush1.bf16.xpose.msra.mxu0 0
    %1995 = vmatprep.subr.bf16.mxu0 0
    %1996 = vmatpush1.bf16.xpose.msra.mxu0 0
    %1997 = vmatprep.subr.bf16.mxu0 0
    %1998 = vmatpush1.bf16.xpose.msra.mxu0 0
    %1999 = vmatprep.subr.bf16.mxu0 0
    %2000 = vmatpush1.bf16.xpose.msra.mxu0 0
    %2001 = vmatprep.subr.bf16.mxu0 0
    %2002 = vmatpush1.bf16.xpose.msra.mxu0 0
    %2003 = vmatprep.mubr.bf16.mxu0 0
    %2004 = vmatmul.mubr.bf16.gmra.mrb[0].mxu0 %v1966
    %v2005 = vpop.f32.mrb[0].mxu0
    %v2006 = vadd.f32 0.0, %v2005
    %v2007 = vpop.f32.mrb[0].mxu0
    %v2008 = vpop.f32.mrb[0].mxu0
    %v2009 = vpop.f32.mrb[0].mxu0
    %2010 = vdwg.mxu0
    %v2012 = vsel %vm555, %v1767, 0
    %v2015 = vsel %vm555, %v1795, 0
    %2017 = vmatprep.subr.bf16.mxu0 0
    %2018 = vmatpush1.bf16.xpose.msra.mxu0 %v2015
    %2019 = vmatprep.subr.bf16.mxu0 0
    %2020 = vmatpush1.bf16.xpose.msra.mxu0 0
    %2021 = vmatprep.subr.bf16.mxu0 0
    %2022 = vmatpush1.bf16.xpose.msra.mxu0 0
    %2023 = vmatprep.subr.bf16.mxu0 0
    %2024 = vmatpush1.bf16.xpose.msra.mxu0 0
    %2025 = vmatprep.subr.bf16.mxu0 0
    %2026 = vmatpush1.bf16.xpose.msra.mxu0 0
    %2027 = vmatprep.subr.bf16.mxu0 0
    %2028 = vmatpush1.bf16.xpose.msra.mxu0 0
    %2029 = vmatprep.subr.bf16.mxu0 0
    %2030 = vmatpush1.bf16.xpose.msra.mxu0 0
    %2031 = vmatprep.subr.bf16.mxu0 0
    %2032 = vmatpush1.bf16.xpose.msra.mxu0 0
    %2033 = vmatprep.subr.bf16.mxu0 0
    %2034 = vmatpush1.bf16.xpose.msra.mxu0 0
    %2035 = vmatprep.subr.bf16.mxu0 0
    %2036 = vmatpush1.bf16.xpose.msra.mxu0 0
    %2037 = vmatprep.subr.bf16.mxu0 0
    %2038 = vmatpush1.bf16.xpose.msra.mxu0 0
    %2039 = vmatprep.subr.bf16.mxu0 0
    %2040 = vmatpush1.bf16.xpose.msra.mxu0 0
    %2041 = vmatprep.subr.bf16.mxu0 0
    %2042 = vmatpush1.bf16.xpose.msra.mxu0 0
    %2043 = vmatprep.subr.bf16.mxu0 0
    %2044 = vmatpush1.bf16.xpose.msra.mxu0 0
    %2045 = vmatprep.subr.bf16.mxu0 0
    %2046 = vmatpush1.bf16.xpose.msra.mxu0 0
    %2047 = vmatprep.subr.bf16.mxu0 0
    %2048 = vmatpush1.bf16.xpose.msra.mxu0 0
    %2049 = vmatprep.mubr.bf16.mxu0 0
    %2050 = vmatmul.mubr.bf16.gmra.mrb[0].mxu0 %v2012
    %v2051 = vpop.f32.mrb[0].mxu0
    %v2052 = vadd.f32 0.0, %v2051
    %v2053 = vpop.f32.mrb[0].mxu0
    %v2054 = vpop.f32.mrb[0].mxu0
    %v2055 = vpop.f32.mrb[0].mxu0
    %2056 = vdwg.mxu0
    %v2058 = vsel %vm555, %v1768, 0
    %v2061 = vsel %vm555, %v1796, 0
    %2063 = vmatprep.subr.bf16.mxu0 0
    %2064 = vmatpush1.bf16.xpose.msra.mxu0 %v2061
    %2065 = vmatprep.subr.bf16.mxu0 0
    %2066 = vmatpush1.bf16.xpose.msra.mxu0 0
    %2067 = vmatprep.subr.bf16.mxu0 0
    %2068 = vmatpush1.bf16.xpose.msra.mxu0 0
    %2069 = vmatprep.subr.bf16.mxu0 0
    %2070 = vmatpush1.bf16.xpose.msra.mxu0 0
    %2071 = vmatprep.subr.bf16.mxu0 0
    %2072 = vmatpush1.bf16.xpose.msra.mxu0 0
    %2073 = vmatprep.subr.bf16.mxu0 0
    %2074 = vmatpush1.bf16.xpose.msra.mxu0 0
    %2075 = vmatprep.subr.bf16.mxu0 0
    %2076 = vmatpush1.bf16.xpose.msra.mxu0 0
    %2077 = vmatprep.subr.bf16.mxu0 0
    %2078 = vmatpush1.bf16.xpose.msra.mxu0 0
    %2079 = vmatprep.subr.bf16.mxu0 0
    %2080 = vmatpush1.bf16.xpose.msra.mxu0 0
    %2081 = vmatprep.subr.bf16.mxu0 0
    %2082 = vmatpush1.bf16.xpose.msra.mxu0 0
    %2083 = vmatprep.subr.bf16.mxu0 0
    %2084 = vmatpush1.bf16.xpose.msra.mxu0 0
    %2085 = vmatprep.subr.bf16.mxu0 0
    %2086 = vmatpush1.bf16.xpose.msra.mxu0 0
    %2087 = vmatprep.subr.bf16.mxu0 0
    %2088 = vmatpush1.bf16.xpose.msra.mxu0 0
    %2089 = vmatprep.subr.bf16.mxu0 0
    %2090 = vmatpush1.bf16.xpose.msra.mxu0 0
    %2091 = vmatprep.subr.bf16.mxu0 0
    %2092 = vmatpush1.bf16.xpose.msra.mxu0 0
    %2093 = vmatprep.subr.bf16.mxu0 0
    %2094 = vmatpush1.bf16.xpose.msra.mxu0 0
    %2095 = vmatprep.mubr.bf16.mxu0 0
    %2096 = vmatmul.mubr.bf16.gmra.mrb[0].mxu0 %v2058
    %v2097 = vpop.f32.mrb[0].mxu0
    %v2098 = vadd.f32 0.0, %v2097
    %v2099 = vpop.f32.mrb[0].mxu0
    %v2100 = vpop.f32.mrb[0].mxu0
    %v2101 = vpop.f32.mrb[0].mxu0
    %2102 = vdwg.mxu0
    %v2104 = vsel %vm555, %v1769, 0
    %v2107 = vsel %vm555, %v1797, 0
    %2109 = vmatprep.subr.bf16.mxu0 0
    %2110 = vmatpush1.bf16.xpose.msra.mxu0 %v2107
    %2111 = vmatprep.subr.bf16.mxu0 0
    %2112 = vmatpush1.bf16.xpose.msra.mxu0 0
    %2113 = vmatprep.subr.bf16.mxu0 0
    %2114 = vmatpush1.bf16.xpose.msra.mxu0 0
    %2115 = vmatprep.subr.bf16.mxu0 0
    %2116 = vmatpush1.bf16.xpose.msra.mxu0 0
    %2117 = vmatprep.subr.bf16.mxu0 0
    %2118 = vmatpush1.bf16.xpose.msra.mxu0 0
    %2119 = vmatprep.subr.bf16.mxu0 0
    %2120 = vmatpush1.bf16.xpose.msra.mxu0 0
    %2121 = vmatprep.subr.bf16.mxu0 0
    %2122 = vmatpush1.bf16.xpose.msra.mxu0 0
    %2123 = vmatprep.subr.bf16.mxu0 0
    %2124 = vmatpush1.bf16.xpose.msra.mxu0 0
    %2125 = vmatprep.subr.bf16.mxu0 0
    %2126 = vmatpush1.bf16.xpose.msra.mxu0 0
    %2127 = vmatprep.subr.bf16.mxu0 0
    %2128 = vmatpush1.bf16.xpose.msra.mxu0 0
    %2129 = vmatprep.subr.bf16.mxu0 0
    %2130 = vmatpush1.bf16.xpose.msra.mxu0 0
    %2131 = vmatprep.subr.bf16.mxu0 0
    %2132 = vmatpush1.bf16.xpose.msra.mxu0 0
    %2133 = vmatprep.subr.bf16.mxu0 0
    %2134 = vmatpush1.bf16.xpose.msra.mxu0 0
    %2135 = vmatprep.subr.bf16.mxu0 0
    %2136 = vmatpush1.bf16.xpose.msra.mxu0 0
    %2137 = vmatprep.subr.bf16.mxu0 0
    %2138 = vmatpush1.bf16.xpose.msra.mxu0 0
    %2139 = vmatprep.subr.bf16.mxu0 0
    %2140 = vmatpush1.bf16.xpose.msra.mxu0 0
    %2141 = vmatprep.mubr.bf16.mxu0 0
    %2142 = vmatmul.mubr.bf16.gmra.mrb[0].mxu0 %v2104
    %v2143 = vpop.f32.mrb[0].mxu0
    %v2144 = vadd.f32 0.0, %v2143
    %v2145 = vpop.f32.mrb[0].mxu0
    %v2146 = vpop.f32.mrb[0].mxu0
    %v2147 = vpop.f32.mrb[0].mxu0
    %2148 = vdwg.mxu0
    %v2150 = vsel %vm555, %v1770, 0
    %v2153 = vsel %vm555, %v1798, 0
    %2155 = vmatprep.subr.bf16.mxu0 0
    %2156 = vmatpush1.bf16.xpose.msra.mxu0 %v2153
    %2157 = vmatprep.subr.bf16.mxu0 0
    %2158 = vmatpush1.bf16.xpose.msra.mxu0 0
    %2159 = vmatprep.subr.bf16.mxu0 0
    %2160 = vmatpush1.bf16.xpose.msra.mxu0 0
    %2161 = vmatprep.subr.bf16.mxu0 0
    %2162 = vmatpush1.bf16.xpose.msra.mxu0 0
    %2163 = vmatprep.subr.bf16.mxu0 0
    %2164 = vmatpush1.bf16.xpose.msra.mxu0 0
    %2165 = vmatprep.subr.bf16.mxu0 0
    %2166 = vmatpush1.bf16.xpose.msra.mxu0 0
    %2167 = vmatprep.subr.bf16.mxu0 0
    %2168 = vmatpush1.bf16.xpose.msra.mxu0 0
    %2169 = vmatprep.subr.bf16.mxu0 0
    %2170 = vmatpush1.bf16.xpose.msra.mxu0 0
    %2171 = vmatprep.subr.bf16.mxu0 0
    %2172 = vmatpush1.bf16.xpose.msra.mxu0 0
    %2173 = vmatprep.subr.bf16.mxu0 0
    %2174 = vmatpush1.bf16.xpose.msra.mxu0 0
    %2175 = vmatprep.subr.bf16.mxu0 0
    %2176 = vmatpush1.bf16.xpose.msra.mxu0 0
    %2177 = vmatprep.subr.bf16.mxu0 0
    %2178 = vmatpush1.bf16.xpose.msra.mxu0 0
    %2179 = vmatprep.subr.bf16.mxu0 0
    %2180 = vmatpush1.bf16.xpose.msra.mxu0 0
    %2181 = vmatprep.subr.bf16.mxu0 0
    %2182 = vmatpush1.bf16.xpose.msra.mxu0 0
    %2183 = vmatprep.subr.bf16.mxu0 0
    %2184 = vmatpush1.bf16.xpose.msra.mxu0 0
    %2185 = vmatprep.subr.bf16.mxu0 0
    %2186 = vmatpush1.bf16.xpose.msra.mxu0 0
    %2187 = vmatprep.mubr.bf16.mxu0 0
    %2188 = vmatmul.mubr.bf16.gmra.mrb[0].mxu0 %v2150
    %v2189 = vpop.f32.mrb[0].mxu0
    %v2190 = vadd.f32 0.0, %v2189
    %v2191 = vpop.f32.mrb[0].mxu0
    %v2192 = vpop.f32.mrb[0].mxu0
    %v2193 = vpop.f32.mrb[0].mxu0
    %2194 = vdwg.mxu0
    %v2195 = vmul.f32 %v1868, 0.35355338
    %v2196 = vmul.f32 %v1914, 0.35355338
    %v2197 = vmul.f32 %v1960, 0.35355338
    %v2198 = vmul.f32 %v2006, 0.35355338
    %v2199 = vmul.f32 %v2052, 0.35355338
    %v2200 = vmul.f32 %v2098, 0.35355338
    %v2201 = vmul.f32 %v2144, 0.35355338
    %v2202 = vmul.f32 %v2190, 0.35355338
    %v2203 = vsel %vm555, %v2195, -inf
    %2204 = vmax.xlane.f32.xlu0 %v2203
    %v2205 = vpop.xlane.xlu0 %2204
    %v2206 = vsel %vm555, %v2196, -inf
    %2207 = vmax.xlane.f32.xlu0 %v2206
    %v2208 = vpop.xlane.xlu0 %2207
    %v2209 = vsel %vm555, %v2197, -inf
    %2210 = vmax.xlane.f32.xlu0 %v2209
    %v2211 = vpop.xlane.xlu0 %2210
    %v2212 = vsel %vm555, %v2198, -inf
    %2213 = vmax.xlane.f32.xlu0 %v2212
    %v2214 = vpop.xlane.xlu0 %2213
    %v2215 = vsel %vm555, %v2199, -inf
    %2216 = vmax.xlane.f32.xlu0 %v2215
    %v2217 = vpop.xlane.xlu0 %2216
    %v2218 = vsel %vm555, %v2200, -inf
    %2219 = vmax.xlane.f32.xlu0 %v2218
    %v2220 = vpop.xlane.xlu0 %2219
    %v2221 = vsel %vm555, %v2201, -inf
    %2222 = vmax.xlane.f32.xlu0 %v2221
    %v2223 = vpop.xlane.xlu0 %2222
    %v2224 = vsel %vm555, %v2202, -inf
    %2225 = vmax.xlane.f32.xlu0 %v2224
    %v2226 = vpop.xlane.xlu0 %2225
    %v2227 = vsub.f32 %v2195, %v2205
    %v2228 = vsub.f32 %v2196, %v2208
    %v2229 = vsub.f32 %v2197, %v2211
    %v2230 = vsub.f32 %v2198, %v2214
    %v2231 = vsub.f32 %v2199, %v2217
    %v2232 = vsub.f32 %v2200, %v2220
    %v2233 = vsub.f32 %v2201, %v2223
    %v2234 = vsub.f32 %v2202, %v2226
    %v2235 = vmul.f32 %v2227, 1.442695
    %v2236 = vpow.pop %v2235
    %v2237 = vmul.f32 %v2228, 1.442695
    %v2238 = vpow.pop %v2237
    %v2239 = vmul.f32 %v2229, 1.442695
    %v2240 = vpow.pop %v2239
    %v2241 = vmul.f32 %v2230, 1.442695
    %v2242 = vpow.pop %v2241
    %v2243 = vmul.f32 %v2231, 1.442695
    %v2244 = vpow.pop %v2243
    %v2245 = vmul.f32 %v2232, 1.442695
    %v2246 = vpow.pop %v2245
    %v2247 = vmul.f32 %v2233, 1.442695
    %v2248 = vpow.pop %v2247
    %v2249 = vmul.f32 %v2234, 1.442695
    %v2250 = vpow.pop %v2249
    %v2251 = vsel %vm555, %v2236, 0.0
    %2252 = vadd.xlane.f32.xlu0 %v2251
    %v2253 = vpop.xlane.xlu0 %2252
    %v2254 = vsel %vm555, %v2238, 0.0
    %2255 = vadd.xlane.f32.xlu0 %v2254
    %v2256 = vpop.xlane.xlu0 %2255
    %v2257 = vsel %vm555, %v2240, 0.0
    %2258 = vadd.xlane.f32.xlu0 %v2257
    %v2259 = vpop.xlane.xlu0 %2258
    %v2260 = vsel %vm555, %v2242, 0.0
    %2261 = vadd.xlane.f32.xlu0 %v2260
    %v2262 = vpop.xlane.xlu0 %2261
    %v2263 = vsel %vm555, %v2244, 0.0
    %2264 = vadd.xlane.f32.xlu0 %v2263
    %v2265 = vpop.xlane.xlu0 %2264
    %v2266 = vsel %vm555, %v2246, 0.0
    %2267 = vadd.xlane.f32.xlu0 %v2266
    %v2268 = vpop.xlane.xlu0 %2267
    %v2269 = vsel %vm555, %v2248, 0.0
    %2270 = vadd.xlane.f32.xlu0 %v2269
    %v2271 = vpop.xlane.xlu0 %2270
    %v2272 = vsel %vm555, %v2250, 0.0
    %2273 = vadd.xlane.f32.xlu0 %v2272
    %v2274 = vpop.xlane.xlu0 %2273
    %v2275 = vrcp.pop %v2253
    %v2276 = vrcp.pop %v2256
    %v2277 = vrcp.pop %v2259
    %v2278 = vrcp.pop %v2262
    %v2279 = vrcp.pop %v2265
    %v2280 = vrcp.pop %v2268
    %v2281 = vrcp.pop %v2271
    %v2282 = vrcp.pop %v2274
    %v2283 = vmul.f32 %v2236, %v2275
    %v2284 = vmul.f32 %v2238, %v2276
    %v2285 = vmul.f32 %v2240, %v2277
    %v2286 = vmul.f32 %v2242, %v2278
    %v2287 = vmul.f32 %v2244, %v2279
    %v2288 = vmul.f32 %v2246, %v2280
    %v2289 = vmul.f32 %v2248, %v2281
    %v2290 = vmul.f32 %v2250, %v2282
    %v2291 = vpack.c.bf16 %v2283, %v2283
    %v2292 = vpack.c.bf16 %v2284, %v2284
    %v2293 = vpack.c.bf16 %v2285, %v2285
    %v2294 = vpack.c.bf16 %v2286, %v2286
    %v2295 = vpack.c.bf16 %v2287, %v2287
    %v2296 = vpack.c.bf16 %v2288, %v2288
    %v2297 = vpack.c.bf16 %v2289, %v2289
    %v2298 = vpack.c.bf16 %v2290, %v2290
    %v2300 = vsel %vm555, %v2291, 0
    %v2303 = vsel %vm1031, %v1819, 0
    %2305 = vmatprep.subr.bf16.mxu0 0
    %2306 = vmatpush1.bf16.msra.mxu0 %v2303
    %2307 = vmatprep.subr.bf16.mxu0 0
    %2308 = vmatpush1.bf16.msra.mxu0 0
    %2309 = vmatprep.subr.bf16.mxu0 0
    %2310 = vmatpush1.bf16.msra.mxu0 0
    %2311 = vmatprep.subr.bf16.mxu0 0
    %2312 = vmatpush1.bf16.msra.mxu0 0
    %2313 = vmatprep.subr.bf16.mxu0 0
    %2314 = vmatpush1.bf16.msra.mxu0 0
    %2315 = vmatprep.subr.bf16.mxu0 0
    %2316 = vmatpush1.bf16.msra.mxu0 0
    %2317 = vmatprep.subr.bf16.mxu0 0
    %2318 = vmatpush1.bf16.msra.mxu0 0
    %2319 = vmatprep.subr.bf16.mxu0 0
    %2320 = vmatpush1.bf16.msra.mxu0 0
    %2321 = vmatprep.subr.bf16.mxu0 0
    %2322 = vmatpush1.bf16.msra.mxu0 0
    %2323 = vmatprep.subr.bf16.mxu0 0
    %2324 = vmatpush1.bf16.msra.mxu0 0
    %2325 = vmatprep.subr.bf16.mxu0 0
    %2326 = vmatpush1.bf16.msra.mxu0 0
    %2327 = vmatprep.subr.bf16.mxu0 0
    %2328 = vmatpush1.bf16.msra.mxu0 0
    %2329 = vmatprep.subr.bf16.mxu0 0
    %2330 = vmatpush1.bf16.msra.mxu0 0
    %2331 = vmatprep.subr.bf16.mxu0 0
    %2332 = vmatpush1.bf16.msra.mxu0 0
    %2333 = vmatprep.subr.bf16.mxu0 0
    %2334 = vmatpush1.bf16.msra.mxu0 0
    %2335 = vmatprep.subr.bf16.mxu0 0
    %2336 = vmatpush1.bf16.msra.mxu0 0
    %2337 = vmatprep.mubr.bf16.mxu0 0
    %2338 = vmatmul.mubr.bf16.gmra.mrb[0].mxu0 %v2300
    %v2339 = vpop.f32.mrb[0].mxu0
    %v2340 = vadd.f32 0.0, %v2339
    %v2341 = vpop.f32.mrb[0].mxu0
    %v2342 = vpop.f32.mrb[0].mxu0
    %v2343 = vpop.f32.mrb[0].mxu0
    %2344 = vdwg.mxu0
    %v2346 = vsel %vm555, %v2292, 0
    %v2349 = vsel %vm1031, %v1820, 0
    %2351 = vmatprep.subr.bf16.mxu0 0
    %2352 = vmatpush1.bf16.msra.mxu0 %v2349
    %2353 = vmatprep.subr.bf16.mxu0 0
    %2354 = vmatpush1.bf16.msra.mxu0 0
    %2355 = vmatprep.subr.bf16.mxu0 0
    %2356 = vmatpush1.bf16.msra.mxu0 0
    %2357 = vmatprep.subr.bf16.mxu0 0
    %2358 = vmatpush1.bf16.msra.mxu0 0
    %2359 = vmatprep.subr.bf16.mxu0 0
    %2360 = vmatpush1.bf16.msra.mxu0 0
    %2361 = vmatprep.subr.bf16.mxu0 0
    %2362 = vmatpush1.bf16.msra.mxu0 0
    %2363 = vmatprep.subr.bf16.mxu0 0
    %2364 = vmatpush1.bf16.msra.mxu0 0
    %2365 = vmatprep.subr.bf16.mxu0 0
    %2366 = vmatpush1.bf16.msra.mxu0 0
    %2367 = vmatprep.subr.bf16.mxu0 0
    %2368 = vmatpush1.bf16.msra.mxu0 0
    %2369 = vmatprep.subr.bf16.mxu0 0
    %2370 = vmatpush1.bf16.msra.mxu0 0
    %2371 = vmatprep.subr.bf16.mxu0 0
    %2372 = vmatpush1.bf16.msra.mxu0 0
    %2373 = vmatprep.subr.bf16.mxu0 0
    %2374 = vmatpush1.bf16.msra.mxu0 0
    %2375 = vmatprep.subr.bf16.mxu0 0
    %2376 = vmatpush1.bf16.msra.mxu0 0
    %2377 = vmatprep.subr.bf16.mxu0 0
    %2378 = vmatpush1.bf16.msra.mxu0 0
    %2379 = vmatprep.subr.bf16.mxu0 0
    %2380 = vmatpush1.bf16.msra.mxu0 0
    %2381 = vmatprep.subr.bf16.mxu0 0
    %2382 = vmatpush1.bf16.msra.mxu0 0
    %2383 = vmatprep.mubr.bf16.mxu0 0
    %2384 = vmatmul.mubr.bf16.gmra.mrb[0].mxu0 %v2346
    %v2385 = vpop.f32.mrb[0].mxu0
    %v2386 = vadd.f32 0.0, %v2385
    %v2387 = vpop.f32.mrb[0].mxu0
    %v2388 = vpop.f32.mrb[0].mxu0
    %v2389 = vpop.f32.mrb[0].mxu0
    %2390 = vdwg.mxu0
    %v2392 = vsel %vm555, %v2293, 0
    %v2395 = vsel %vm1031, %v1821, 0
    %2397 = vmatprep.subr.bf16.mxu0 0
    %2398 = vmatpush1.bf16.msra.mxu0 %v2395
    %2399 = vmatprep.subr.bf16.mxu0 0
    %2400 = vmatpush1.bf16.msra.mxu0 0
    %2401 = vmatprep.subr.bf16.mxu0 0
    %2402 = vmatpush1.bf16.msra.mxu0 0
    %2403 = vmatprep.subr.bf16.mxu0 0
    %2404 = vmatpush1.bf16.msra.mxu0 0
    %2405 = vmatprep.subr.bf16.mxu0 0
    %2406 = vmatpush1.bf16.msra.mxu0 0
    %2407 = vmatprep.subr.bf16.mxu0 0
    %2408 = vmatpush1.bf16.msra.mxu0 0
    %2409 = vmatprep.subr.bf16.mxu0 0
    %2410 = vmatpush1.bf16.msra.mxu0 0
    %2411 = vmatprep.subr.bf16.mxu0 0
    %2412 = vmatpush1.bf16.msra.mxu0 0
    %2413 = vmatprep.subr.bf16.mxu0 0
    %2414 = vmatpush1.bf16.msra.mxu0 0
    %2415 = vmatprep.subr.bf16.mxu0 0
    %2416 = vmatpush1.bf16.msra.mxu0 0
    %2417 = vmatprep.subr.bf16.mxu0 0
    %2418 = vmatpush1.bf16.msra.mxu0 0
    %2419 = vmatprep.subr.bf16.mxu0 0
    %2420 = vmatpush1.bf16.msra.mxu0 0
    %2421 = vmatprep.subr.bf16.mxu0 0
    %2422 = vmatpush1.bf16.msra.mxu0 0
    %2423 = vmatprep.subr.bf16.mxu0 0
    %2424 = vmatpush1.bf16.msra.mxu0 0
    %2425 = vmatprep.subr.bf16.mxu0 0
    %2426 = vmatpush1.bf16.msra.mxu0 0
    %2427 = vmatprep.subr.bf16.mxu0 0
    %2428 = vmatpush1.bf16.msra.mxu0 0
    %2429 = vmatprep.mubr.bf16.mxu0 0
    %2430 = vmatmul.mubr.bf16.gmra.mrb[0].mxu0 %v2392
    %v2431 = vpop.f32.mrb[0].mxu0
    %v2432 = vadd.f32 0.0, %v2431
    %v2433 = vpop.f32.mrb[0].mxu0
    %v2434 = vpop.f32.mrb[0].mxu0
    %v2435 = vpop.f32.mrb[0].mxu0
    %2436 = vdwg.mxu0
    %v2438 = vsel %vm555, %v2294, 0
    %v2441 = vsel %vm1031, %v1822, 0
    %2443 = vmatprep.subr.bf16.mxu0 0
    %2444 = vmatpush1.bf16.msra.mxu0 %v2441
    %2445 = vmatprep.subr.bf16.mxu0 0
    %2446 = vmatpush1.bf16.msra.mxu0 0
    %2447 = vmatprep.subr.bf16.mxu0 0
    %2448 = vmatpush1.bf16.msra.mxu0 0
    %2449 = vmatprep.subr.bf16.mxu0 0
    %2450 = vmatpush1.bf16.msra.mxu0 0
    %2451 = vmatprep.subr.bf16.mxu0 0
    %2452 = vmatpush1.bf16.msra.mxu0 0
    %2453 = vmatprep.subr.bf16.mxu0 0
    %2454 = vmatpush1.bf16.msra.mxu0 0
    %2455 = vmatprep.subr.bf16.mxu0 0
    %2456 = vmatpush1.bf16.msra.mxu0 0
    %2457 = vmatprep.subr.bf16.mxu0 0
    %2458 = vmatpush1.bf16.msra.mxu0 0
    %2459 = vmatprep.subr.bf16.mxu0 0
    %2460 = vmatpush1.bf16.msra.mxu0 0
    %2461 = vmatprep.subr.bf16.mxu0 0
    %2462 = vmatpush1.bf16.msra.mxu0 0
    %2463 = vmatprep.subr.bf16.mxu0 0
    %2464 = vmatpush1.bf16.msra.mxu0 0
    %2465 = vmatprep.subr.bf16.mxu0 0
    %2466 = vmatpush1.bf16.msra.mxu0 0
    %2467 = vmatprep.subr.bf16.mxu0 0
    %2468 = vmatpush1.bf16.msra.mxu0 0
    %2469 = vmatprep.subr.bf16.mxu0 0
    %2470 = vmatpush1.bf16.msra.mxu0 0
    %2471 = vmatprep.subr.bf16.mxu0 0
    %2472 = vmatpush1.bf16.msra.mxu0 0
    %2473 = vmatprep.subr.bf16.mxu0 0
    %2474 = vmatpush1.bf16.msra.mxu0 0
    %2475 = vmatprep.mubr.bf16.mxu0 0
    %2476 = vmatmul.mubr.bf16.gmra.mrb[0].mxu0 %v2438
    %v2477 = vpop.f32.mrb[0].mxu0
    %v2478 = vadd.f32 0.0, %v2477
    %v2479 = vpop.f32.mrb[0].mxu0
    %v2480 = vpop.f32.mrb[0].mxu0
    %v2481 = vpop.f32.mrb[0].mxu0
    %2482 = vdwg.mxu0
    %v2484 = vsel %vm555, %v2295, 0
    %v2487 = vsel %vm1031, %v1823, 0
    %2489 = vmatprep.subr.bf16.mxu0 0
    %2490 = vmatpush1.bf16.msra.mxu0 %v2487
    %2491 = vmatprep.subr.bf16.mxu0 0
    %2492 = vmatpush1.bf16.msra.mxu0 0
    %2493 = vmatprep.subr.bf16.mxu0 0
    %2494 = vmatpush1.bf16.msra.mxu0 0
    %2495 = vmatprep.subr.bf16.mxu0 0
    %2496 = vmatpush1.bf16.msra.mxu0 0
    %2497 = vmatprep.subr.bf16.mxu0 0
    %2498 = vmatpush1.bf16.msra.mxu0 0
    %2499 = vmatprep.subr.bf16.mxu0 0
    %2500 = vmatpush1.bf16.msra.mxu0 0
    %2501 = vmatprep.subr.bf16.mxu0 0
    %2502 = vmatpush1.bf16.msra.mxu0 0
    %2503 = vmatprep.subr.bf16.mxu0 0
    %2504 = vmatpush1.bf16.msra.mxu0 0
    %2505 = vmatprep.subr.bf16.mxu0 0
    %2506 = vmatpush1.bf16.msra.mxu0 0
    %2507 = vmatprep.subr.bf16.mxu0 0
    %2508 = vmatpush1.bf16.msra.mxu0 0
    %2509 = vmatprep.subr.bf16.mxu0 0
    %2510 = vmatpush1.bf16.msra.mxu0 0
    %2511 = vmatprep.subr.bf16.mxu0 0
    %2512 = vmatpush1.bf16.msra.mxu0 0
    %2513 = vmatprep.subr.bf16.mxu0 0
    %2514 = vmatpush1.bf16.msra.mxu0 0
    %2515 = vmatprep.subr.bf16.mxu0 0
    %2516 = vmatpush1.bf16.msra.mxu0 0
    %2517 = vmatprep.subr.bf16.mxu0 0
    %2518 = vmatpush1.bf16.msra.mxu0 0
    %2519 = vmatprep.subr.bf16.mxu0 0
    %2520 = vmatpush1.bf16.msra.mxu0 0
    %2521 = vmatprep.mubr.bf16.mxu0 0
    %2522 = vmatmul.mubr.bf16.gmra.mrb[0].mxu0 %v2484
    %v2523 = vpop.f32.mrb[0].mxu0
    %v2524 = vadd.f32 0.0, %v2523
    %v2525 = vpop.f32.mrb[0].mxu0
    %v2526 = vpop.f32.mrb[0].mxu0
    %v2527 = vpop.f32.mrb[0].mxu0
    %2528 = vdwg.mxu0
    %v2530 = vsel %vm555, %v2296, 0
    %v2533 = vsel %vm1031, %v1824, 0
    %2535 = vmatprep.subr.bf16.mxu0 0
    %2536 = vmatpush1.bf16.msra.mxu0 %v2533
    %2537 = vmatprep.subr.bf16.mxu0 0
    %2538 = vmatpush1.bf16.msra.mxu0 0
    %2539 = vmatprep.subr.bf16.mxu0 0
    %2540 = vmatpush1.bf16.msra.mxu0 0
    %2541 = vmatprep.subr.bf16.mxu0 0
    %2542 = vmatpush1.bf16.msra.mxu0 0
    %2543 = vmatprep.subr.bf16.mxu0 0
    %2544 = vmatpush1.bf16.msra.mxu0 0
    %2545 = vmatprep.subr.bf16.mxu0 0
    %2546 = vmatpush1.bf16.msra.mxu0 0
    %2547 = vmatprep.subr.bf16.mxu0 0
    %2548 = vmatpush1.bf16.msra.mxu0 0
    %2549 = vmatprep.subr.bf16.mxu0 0
    %2550 = vmatpush1.bf16.msra.mxu0 0
    %2551 = vmatprep.subr.bf16.mxu0 0
    %2552 = vmatpush1.bf16.msra.mxu0 0
    %2553 = vmatprep.subr.bf16.mxu0 0
    %2554 = vmatpush1.bf16.msra.mxu0 0
    %2555 = vmatprep.subr.bf16.mxu0 0
    %2556 = vmatpush1.bf16.msra.mxu0 0
    %2557 = vmatprep.subr.bf16.mxu0 0
    %2558 = vmatpush1.bf16.msra.mxu0 0
    %2559 = vmatprep.subr.bf16.mxu0 0
    %2560 = vmatpush1.bf16.msra.mxu0 0
    %2561 = vmatprep.subr.bf16.mxu0 0
    %2562 = vmatpush1.bf16.msra.mxu0 0
    %2563 = vmatprep.subr.bf16.mxu0 0
    %2564 = vmatpush1.bf16.msra.mxu0 0
    %2565 = vmatprep.subr.bf16.mxu0 0
    %2566 = vmatpush1.bf16.msra.mxu0 0
    %2567 = vmatprep.mubr.bf16.mxu0 0
    %2568 = vmatmul.mubr.bf16.gmra.mrb[0].mxu0 %v2530
    %v2569 = vpop.f32.mrb[0].mxu0
    %v2570 = vadd.f32 0.0, %v2569
    %v2571 = vpop.f32.mrb[0].mxu0
    %v2572 = vpop.f32.mrb[0].mxu0
    %v2573 = vpop.f32.mrb[0].mxu0
    %2574 = vdwg.mxu0
    %v2576 = vsel %vm555, %v2297, 0
    %v2579 = vsel %vm1031, %v1825, 0
    %2581 = vmatprep.subr.bf16.mxu0 0
    %2582 = vmatpush1.bf16.msra.mxu0 %v2579
    %2583 = vmatprep.subr.bf16.mxu0 0
    %2584 = vmatpush1.bf16.msra.mxu0 0
    %2585 = vmatprep.subr.bf16.mxu0 0
    %2586 = vmatpush1.bf16.msra.mxu0 0
    %2587 = vmatprep.subr.bf16.mxu0 0
    %2588 = vmatpush1.bf16.msra.mxu0 0
    %2589 = vmatprep.subr.bf16.mxu0 0
    %2590 = vmatpush1.bf16.msra.mxu0 0
    %2591 = vmatprep.subr.bf16.mxu0 0
    %2592 = vmatpush1.bf16.msra.mxu0 0
    %2593 = vmatprep.subr.bf16.mxu0 0
    %2594 = vmatpush1.bf16.msra.mxu0 0
    %2595 = vmatprep.subr.bf16.mxu0 0
    %2596 = vmatpush1.bf16.msra.mxu0 0
    %2597 = vmatprep.subr.bf16.mxu0 0
    %2598 = vmatpush1.bf16.msra.mxu0 0
    %2599 = vmatprep.subr.bf16.mxu0 0
    %2600 = vmatpush1.bf16.msra.mxu0 0
    %2601 = vmatprep.subr.bf16.mxu0 0
    %2602 = vmatpush1.bf16.msra.mxu0 0
    %2603 = vmatprep.subr.bf16.mxu0 0
    %2604 = vmatpush1.bf16.msra.mxu0 0
    %2605 = vmatprep.subr.bf16.mxu0 0
    %2606 = vmatpush1.bf16.msra.mxu0 0
    %2607 = vmatprep.subr.bf16.mxu0 0
    %2608 = vmatpush1.bf16.msra.mxu0 0
    %2609 = vmatprep.subr.bf16.mxu0 0
    %2610 = vmatpush1.bf16.msra.mxu0 0
    %2611 = vmatprep.subr.bf16.mxu0 0
    %2612 = vmatpush1.bf16.msra.mxu0 0
    %2613 = vmatprep.mubr.bf16.mxu0 0
    %2614 = vmatmul.mubr.bf16.gmra.mrb[0].mxu0 %v2576
    %v2615 = vpop.f32.mrb[0].mxu0
    %v2616 = vadd.f32 0.0, %v2615
    %v2617 = vpop.f32.mrb[0].mxu0
    %v2618 = vpop.f32.mrb[0].mxu0
    %v2619 = vpop.f32.mrb[0].mxu0
    %2620 = vdwg.mxu0
    %v2622 = vsel %vm555, %v2298, 0
    %v2625 = vsel %vm1031, %v1826, 0
    %2627 = vmatprep.subr.bf16.mxu0 0
    %2628 = vmatpush1.bf16.msra.mxu0 %v2625
    %2629 = vmatprep.subr.bf16.mxu0 0
    %2630 = vmatpush1.bf16.msra.mxu0 0
    %2631 = vmatprep.subr.bf16.mxu0 0
    %2632 = vmatpush1.bf16.msra.mxu0 0
    %2633 = vmatprep.subr.bf16.mxu0 0
    %2634 = vmatpush1.bf16.msra.mxu0 0
    %2635 = vmatprep.subr.bf16.mxu0 0
    %2636 = vmatpush1.bf16.msra.mxu0 0
    %2637 = vmatprep.subr.bf16.mxu0 0
    %2638 = vmatpush1.bf16.msra.mxu0 0
    %2639 = vmatprep.subr.bf16.mxu0 0
    %2640 = vmatpush1.bf16.msra.mxu0 0
    %2641 = vmatprep.subr.bf16.mxu0 0
    %2642 = vmatpush1.bf16.msra.mxu0 0
    %2643 = vmatprep.subr.bf16.mxu0 0
    %2644 = vmatpush1.bf16.msra.mxu0 0
    %2645 = vmatprep.subr.bf16.mxu0 0
    %2646 = vmatpush1.bf16.msra.mxu0 0
    %2647 = vmatprep.subr.bf16.mxu0 0
    %2648 = vmatpush1.bf16.msra.mxu0 0
    %2649 = vmatprep.subr.bf16.mxu0 0
    %2650 = vmatpush1.bf16.msra.mxu0 0
    %2651 = vmatprep.subr.bf16.mxu0 0
    %2652 = vmatpush1.bf16.msra.mxu0 0
    %2653 = vmatprep.subr.bf16.mxu0 0
    %2654 = vmatpush1.bf16.msra.mxu0 0
    %2655 = vmatprep.subr.bf16.mxu0 0
    %2656 = vmatpush1.bf16.msra.mxu0 0
    %2657 = vmatprep.subr.bf16.mxu0 0
    %2658 = vmatpush1.bf16.msra.mxu0 0
    %2659 = vmatprep.mubr.bf16.mxu0 0
    %2660 = vmatmul.mubr.bf16.gmra.mrb[0].mxu0 %v2622
    %v2661 = vpop.f32.mrb[0].mxu0
    %v2662 = vadd.f32 0.0, %v2661
    %v2663 = vpop.f32.mrb[0].mxu0
    %v2664 = vpop.f32.mrb[0].mxu0
    %v2665 = vpop.f32.mrb[0].mxu0
    %2666 = vdwg.mxu0
    %2669 = vrot.lane.b32.xlu0 %v2432, 8
    %v2670 = vpop.permute.xlu0 %2669
    %2671 = vrot.lane.b32.xlu0 %v2478, 8
    %v2672 = vpop.permute.xlu0 %2671
    %2677 = vrot.lane.b32.xlu0 %v2524, 16
    %v2678 = vpop.permute.xlu0 %2677
    %2679 = vrot.lane.b32.xlu0 %v2570, 16
    %v2680 = vpop.permute.xlu0 %2679
    %2685 = vrot.lane.b32.xlu0 %v2616, 24
    %v2686 = vpop.permute.xlu0 %2685
    %2687 = vrot.lane.b32.xlu0 %v2662, 24
    %v2688 = vpop.permute.xlu0 %2687
    %v2691 = vsel %vm555, %v2340, %v2670
    %v2692 = vsel %vm555, %v2386, %v2672
    %v2693 = vsel %vm1423, %v2691, %v2678
    %v2694 = vsel %vm1423, %v2692, %v2680
    %v2695 = vsel %vm1426, %v2693, %v2686
    %v2696 = vsel %vm1426, %v2694, %v2688
    %v2697 = vpack.c.bf16 %v2696, %v2695
    %v2698 = vld [vmem:[%s37] sm:$0xf]
    %v2699 = vld [vmem:[%s37 + $0x4] sm:$0xf]
    %v2700 = vld [vmem:[%s37 + $0x8] sm:$0xf]
    %v2701 = vld [vmem:[%s37 + $0xc] sm:$0xf]
    %v2702 = vld [vmem:[%s39] sm:$0x1]
    %v2704 = vlaneseq
    %v2705 = vshrl.u32 %v2704, 7
    %v2706 = vsub.s32 0, %v2705
    %v2707 = vrot.slane %v2702, %v2706
    %v2713 = vunpack.c.l.b16 %v2698
    %v2714 = vunpack.c.l.b16 %v2699
    %v2715 = vunpack.c.l.b16 %v2700
    %v2716 = vunpack.c.l.b16 %v2701
    %v2717 = vpack.c.b16 %v2714, %v2713
    %v2718 = vpack.c.b16 %v2716, %v2715
    %v2722 = vsel %vm298, %v2697, 0
    %2724 = vmatprep.subr.bf16.mxu0 0
    %2725 = vmatpush1.bf16.msra.mxu0 %v2717
    %2726 = vmatprep.subr.bf16.mxu0 0
    %2727 = vmatpush1.bf16.msra.mxu0 %v2718
    %2728 = vmatprep.subr.bf16.mxu0 0
    %2729 = vmatpush1.bf16.msra.mxu0 0
    %2730 = vmatprep.subr.bf16.mxu0 0
    %2731 = vmatpush1.bf16.msra.mxu0 0
    %2732 = vmatprep.subr.bf16.mxu0 0
    %2733 = vmatpush1.bf16.msra.mxu0 0
    %2734 = vmatprep.subr.bf16.mxu0 0
    %2735 = vmatpush1.bf16.msra.mxu0 0
    %2736 = vmatprep.subr.bf16.mxu0 0
    %2737 = vmatpush1.bf16.msra.mxu0 0
    %2738 = vmatprep.subr.bf16.mxu0 0
    %2739 = vmatpush1.bf16.msra.mxu0 0
    %2740 = vmatprep.subr.bf16.mxu0 0
    %2741 = vmatpush1.bf16.msra.mxu0 0
    %2742 = vmatprep.subr.bf16.mxu0 0
    %2743 = vmatpush1.bf16.msra.mxu0 0
    %2744 = vmatprep.subr.bf16.mxu0 0
    %2745 = vmatpush1.bf16.msra.mxu0 0
    %2746 = vmatprep.subr.bf16.mxu0 0
    %2747 = vmatpush1.bf16.msra.mxu0 0
    %2748 = vmatprep.subr.bf16.mxu0 0
    %2749 = vmatpush1.bf16.msra.mxu0 0
    %2750 = vmatprep.subr.bf16.mxu0 0
    %2751 = vmatpush1.bf16.msra.mxu0 0
    %2752 = vmatprep.subr.bf16.mxu0 0
    %2753 = vmatpush1.bf16.msra.mxu0 0
    %2754 = vmatprep.subr.bf16.mxu0 0
    %2755 = vmatpush1.bf16.msra.mxu0 0
    %2756 = vmatprep.mubr.bf16.mxu0 0
    %2757 = vmatmul.mubr.bf16.gmra.mrb[0].mxu0 %v2722
    %v2758 = vpop.f32.mrb[0].mxu0
    %v2759 = vadd.f32 %v2707, %v2758
    %v2760 = vpop.f32.mrb[0].mxu0
    %v2761 = vpop.f32.mrb[0].mxu0
    %v2762 = vadd.f32 %v2707, %v2761
    %v2763 = vpop.f32.mrb[0].mxu0
    %2764 = vdwg.mxu0
    %v2765 = vadd.f32 %v2759, %v1542
    %v2766 = vadd.f32 %v2762, %v1543
    %v2767 = vld [vmem:[%s41] sm:$0x1]
    %v2768 = vld [vmem:[%s43] sm:$0x1]
    %v2769 = vsel %vm298, %v2765, 0.0
    %2770 = vadd.xlane.f32.xlu0 %v2769
    %v2771 = vpop.xlane.xlu0 %2770
    %v2772 = vsel %vm298, %v2766, 0.0
    %2773 = vadd.xlane.f32.xlu0 %v2772
    %v2774 = vpop.xlane.xlu0 %2773
    %v2775 = vmul.f32 %v2771, %v1507
    %v2776 = vmul.f32 %v2774, %v1507
    %v2777 = vsub.f32 %v2765, %v2775
    %v2778 = vsub.f32 %v2766, %v2776
    %v2779 = vmul.f32 %v2777, %v2777
    %v2780 = vmul.f32 %v2778, %v2778
    %v2781 = vsel %vm298, %v2779, 0.0
    %2782 = vadd.xlane.f32.xlu0 %v2781
    %v2783 = vpop.xlane.xlu0 %2782
    %v2784 = vsel %vm298, %v2780, 0.0
    %2785 = vadd.xlane.f32.xlu0 %v2784
    %v2786 = vpop.xlane.xlu0 %2785
    %v2787 = vmul.f32 %v2783, %v1507
    %v2788 = vmul.f32 %v2786, %v1507
    %v2789 = vadd.f32 %v2787, 1e-05
    %v2790 = vadd.f32 %v2788, 1e-05
    %v2791 = vrsqrt.pop %v2789
    %v2792 = vrsqrt.pop %v2790
    %v2793 = vmul.f32 %v2777, %v2791
    %v2794 = vmul.f32 %v2778, %v2792
    %v2796 = vlaneseq
    %v2797 = vshrl.u32 %v2796, 7
    %v2798 = vsub.s32 0, %v2797
    %v2799 = vrot.slane %v2767, %v2798
    %v2801 = vmul.f32 %v2793, %v2799
    %v2802 = vmul.f32 %v2794, %v2799
    %v2804 = vlaneseq
    %v2805 = vshrl.u32 %v2804, 7
    %v2806 = vsub.s32 0, %v2805
    %v2807 = vrot.slane %v2768, %v2806
    %v2809 = vadd.f32 %v2801, %v2807
    %v2810 = vadd.f32 %v2802, %v2807
    %2811 = vst.msk [vmem:[#allocation23] sm:$0xff] %vm555, %v2283
    %2812 = vst.msk [vmem:[#allocation23 + $0x8] sm:$0xff] %vm555, %v2284
    %2813 = vst.msk [vmem:[#allocation23 + $0x10] sm:$0xff] %vm555, %v2285
    %2814 = vst.msk [vmem:[#allocation23 + $0x18] sm:$0xff] %vm555, %v2286
    %2815 = vst.msk [vmem:[#allocation23 + $0x20] sm:$0xff] %vm555, %v2287
    %2816 = vst.msk [vmem:[#allocation23 + $0x28] sm:$0xff] %vm555, %v2288
    %2817 = vst.msk [vmem:[#allocation23 + $0x30] sm:$0xff] %vm555, %v2289
    %2818 = vst.msk [vmem:[#allocation23 + $0x38] sm:$0xff] %vm555, %v2290
    %v2819 = vpack.c.bf16 %v2810, %v2809
    %v2820 = vld [vmem:[%s45] sm:$0xf]
    %v2821 = vld [vmem:[%s45 + $0x4] sm:$0xf]
    %v2822 = vld [vmem:[%s45 + $0x8] sm:$0xf]
    %v2823 = vld [vmem:[%s45 + $0xc] sm:$0xf]
    %v2824 = vld [vmem:[%s47] sm:$0x1]
    %v2826 = vlaneseq
    %v2827 = vshrl.u32 %v2826, 7
    %v2828 = vsub.s32 0, %v2827
    %v2829 = vrot.slane %v2824, %v2828
    %v2835 = vunpack.c.l.b16 %v2820
    %v2836 = vunpack.c.l.b16 %v2821
    %v2837 = vunpack.c.l.b16 %v2822
    %v2838 = vunpack.c.l.b16 %v2823
    %v2839 = vpack.c.b16 %v2836, %v2835
    %v2840 = vpack.c.b16 %v2838, %v2837
    %v2844 = vsel %vm298, %v2819, 0
    %2846 = vmatprep.subr.bf16.mxu0 0
    %2847 = vmatpush1.bf16.msra.mxu0 %v2839
    %2848 = vmatprep.subr.bf16.mxu0 0
    %2849 = vmatpush1.bf16.msra.mxu0 %v2840
    %2850 = vmatprep.subr.bf16.mxu0 0
    %2851 = vmatpush1.bf16.msra.mxu0 0
    %2852 = vmatprep.subr.bf16.mxu0 0
    %2853 = vmatpush1.bf16.msra.mxu0 0
    %2854 = vmatprep.subr.bf16.mxu0 0
    %2855 = vmatpush1.bf16.msra.mxu0 0
    %2856 = vmatprep.subr.bf16.mxu0 0
    %2857 = vmatpush1.bf16.msra.mxu0 0
    %2858 = vmatprep.subr.bf16.mxu0 0
    %2859 = vmatpush1.bf16.msra.mxu0 0
    %2860 = vmatprep.subr.bf16.mxu0 0
    %2861 = vmatpush1.bf16.msra.mxu0 0
    %2862 = vmatprep.subr.bf16.mxu0 0
    %2863 = vmatpush1.bf16.msra.mxu0 0
    %2864 = vmatprep.subr.bf16.mxu0 0
    %2865 = vmatpush1.bf16.msra.mxu0 0
    %2866 = vmatprep.subr.bf16.mxu0 0
    %2867 = vmatpush1.bf16.msra.mxu0 0
    %2868 = vmatprep.subr.bf16.mxu0 0
    %2869 = vmatpush1.bf16.msra.mxu0 0
    %2870 = vmatprep.subr.bf16.mxu0 0
    %2871 = vmatpush1.bf16.msra.mxu0 0
    %2872 = vmatprep.subr.bf16.mxu0 0
    %2873 = vmatpush1.bf16.msra.mxu0 0
    %2874 = vmatprep.subr.bf16.mxu0 0
    %2875 = vmatpush1.bf16.msra.mxu0 0
    %2876 = vmatprep.subr.bf16.mxu0 0
    %2877 = vmatpush1.bf16.msra.mxu0 0
    %2878 = vmatprep.mubr.bf16.mxu0 0
    %2879 = vmatmul.mubr.bf16.gmra.mrb[0].mxu0 %v2844
    %v2880 = vpop.f32.mrb[0].mxu0
    %v2881 = vadd.f32 %v2829, %v2880
    %v2882 = vpop.f32.mrb[0].mxu0
    %v2883 = vpop.f32.mrb[0].mxu0
    %v2884 = vadd.f32 %v2829, %v2883
    %v2885 = vpop.f32.mrb[0].mxu0
    %2886 = vdwg.mxu0
    %v2887 = vmax.f32 %v2881, 0.0
    %v2888 = vmax.f32 %v2884, 0.0
    %v2889 = vpack.c.bf16 %v2888, %v2887
    %v2890 = vld [vmem:[%s49] sm:$0xf]
    %v2891 = vld [vmem:[%s49 + $0x4] sm:$0xf]
    %v2892 = vld [vmem:[%s49 + $0x8] sm:$0xf]
    %v2893 = vld [vmem:[%s49 + $0xc] sm:$0xf]
    %v2894 = vld [vmem:[%s49 + $0x10] sm:$0xf]
    %v2895 = vld [vmem:[%s49 + $0x14] sm:$0xf]
    %v2896 = vld [vmem:[%s49 + $0x18] sm:$0xf]
    %v2897 = vld [vmem:[%s49 + $0x1c] sm:$0xf]
    %v2898 = vld [vmem:[%s51] sm:$0x1]
    %v2900 = vlaneseq
    %v2901 = vshrl.u32 %v2900, 7
    %v2902 = vsub.s32 0, %v2901
    %v2903 = vrot.slane %v2898, %v2902
    %v2913 = vunpack.c.l.b16 %v2890
    %v2914 = vunpack.c.l.b16 %v2891
    %v2915 = vunpack.c.l.b16 %v2892
    %v2916 = vunpack.c.l.b16 %v2893
    %v2917 = vunpack.c.l.b16 %v2894
    %v2918 = vunpack.c.l.b16 %v2895
    %v2919 = vunpack.c.l.b16 %v2896
    %v2920 = vunpack.c.l.b16 %v2897
    %v2921 = vpack.c.b16 %v2914, %v2913
    %v2922 = vpack.c.b16 %v2916, %v2915
    %v2923 = vpack.c.b16 %v2918, %v2917
    %v2924 = vpack.c.b16 %v2920, %v2919
    %vm2929 = vcmask 523264
    %v2931 = vsel %vm2929, %v2889, 0
    %2933 = vmatprep.subr.bf16.mxu0 0
    %2934 = vmatpush1.bf16.msra.mxu0 %v2921
    %2935 = vmatprep.subr.bf16.mxu0 0
    %2936 = vmatpush1.bf16.msra.mxu0 %v2922
    %2937 = vmatprep.subr.bf16.mxu0 0
    %2938 = vmatpush1.bf16.msra.mxu0 %v2923
    %2939 = vmatprep.subr.bf16.mxu0 0
    %2940 = vmatpush1.bf16.msra.mxu0 %v2924
    %2941 = vmatprep.subr.bf16.mxu0 0
    %2942 = vmatpush1.bf16.msra.mxu0 0
    %2943 = vmatprep.subr.bf16.mxu0 0
    %2944 = vmatpush1.bf16.msra.mxu0 0
    %2945 = vmatprep.subr.bf16.mxu0 0
    %2946 = vmatpush1.bf16.msra.mxu0 0
    %2947 = vmatprep.subr.bf16.mxu0 0
    %2948 = vmatpush1.bf16.msra.mxu0 0
    %2949 = vmatprep.subr.bf16.mxu0 0
    %2950 = vmatpush1.bf16.msra.mxu0 0
    %2951 = vmatprep.subr.bf16.mxu0 0
    %2952 = vmatpush1.bf16.msra.mxu0 0
    %2953 = vmatprep.subr.bf16.mxu0 0
    %2954 = vmatpush1.bf16.msra.mxu0 0
    %2955 = vmatprep.subr.bf16.mxu0 0
    %2956 = vmatpush1.bf16.msra.mxu0 0
    %2957 = vmatprep.subr.bf16.mxu0 0
    %2958 = vmatpush1.bf16.msra.mxu0 0
    %2959 = vmatprep.subr.bf16.mxu0 0
    %2960 = vmatpush1.bf16.msra.mxu0 0
    %2961 = vmatprep.subr.bf16.mxu0 0
    %2962 = vmatpush1.bf16.msra.mxu0 0
    %2963 = vmatprep.subr.bf16.mxu0 0
    %2964 = vmatpush1.bf16.msra.mxu0 0
    %2965 = vmatprep.mubr.bf16.mxu0 0
    %2966 = vmatmul.mubr.bf16.gmra.mrb[0].mxu0 %v2931
    %v2967 = vpop.f32.mrb[0].mxu0
    %v2968 = vadd.f32 %v2903, %v2967
    %v2969 = vpop.f32.mrb[0].mxu0
    %v2970 = vpop.f32.mrb[0].mxu0
    %v2971 = vadd.f32 %v2903, %v2970
    %v2972 = vpop.f32.mrb[0].mxu0
    %2973 = vdwg.mxu0
    %v2974 = vadd.f32 %v2968, %v2809
    %v2975 = vadd.f32 %v2971, %v2810
    %v2976 = vld [vmem:[%s53] sm:$0x1]
    %v2977 = vld [vmem:[%s55] sm:$0x1]
    %v2978 = vsel %vm298, %v2974, 0.0
    %2979 = vadd.xlane.f32.xlu0 %v2978
    %v2980 = vpop.xlane.xlu0 %2979
    %v2981 = vsel %vm298, %v2975, 0.0
    %2982 = vadd.xlane.f32.xlu0 %v2981
    %v2983 = vpop.xlane.xlu0 %2982
    %v2984 = vmul.f32 %v2980, %v1507
    %v2985 = vmul.f32 %v2983, %v1507
    %v2986 = vsub.f32 %v2974, %v2984
    %v2987 = vsub.f32 %v2975, %v2985
    %v2988 = vmul.f32 %v2986, %v2986
    %v2989 = vmul.f32 %v2987, %v2987
    %v2990 = vsel %vm298, %v2988, 0.0
    %2991 = vadd.xlane.f32.xlu0 %v2990
    %v2992 = vpop.xlane.xlu0 %2991
    %v2993 = vsel %vm298, %v2989, 0.0
    %2994 = vadd.xlane.f32.xlu0 %v2993
    %v2995 = vpop.xlane.xlu0 %2994
    %v2996 = vmul.f32 %v2992, %v1507
    %v2997 = vmul.f32 %v2995, %v1507
    %v2998 = vadd.f32 %v2996, 1e-05
    %v2999 = vadd.f32 %v2997, 1e-05
    %v3000 = vrsqrt.pop %v2998
    %v3001 = vrsqrt.pop %v2999
    %v3002 = vmul.f32 %v2986, %v3000
    %v3003 = vmul.f32 %v2987, %v3001
    %v3005 = vlaneseq
    %v3006 = vshrl.u32 %v3005, 7
    %v3007 = vsub.s32 0, %v3006
    %v3008 = vrot.slane %v2976, %v3007
    %v3010 = vmul.f32 %v3002, %v3008
    %v3011 = vmul.f32 %v3003, %v3008
    %v3013 = vlaneseq
    %v3014 = vshrl.u32 %v3013, 7
    %v3015 = vsub.s32 0, %v3014
    %v3016 = vrot.slane %v2977, %v3015
    %v3018 = vadd.f32 %v3010, %v3016
    %v3019 = vadd.f32 %v3011, %v3016
    %3020 = vst.msk [vmem:[#allocation22] sm:$0xff] %vm298, %v3018
    %3021 = vst.msk [vmem:[#allocation22 + $0x8] sm:$0xff] %vm298, %v3019
    // Predicated region
    $region162: #{tpu_custom_call.1} parent=1 // pred_check
      _
    $region163: #{tpu_custom_call.1} parent=1 // pred_check_branch
      %3023 = sbr.rel (0) target = $region165
    $region164: #{tpu_custom_call.1} parent=1 // pred_region
      %s3025 = ssub.s32 256, 256
      %3026 = vsyncadd [#allocation4], %s3025
      %s3027 = sshll.u32 [#allocation22], 4
      %s3028 = int_to_ptr.vmem [resolvable:$true] %s3027
      %3033 = dma.vmem_to_hbm [thread:$0]  %s3028, 256, %s57, [#allocation4], 128, 128, 8
    $region165: #{tpu_custom_call.1} parent=1 // pred_fallthru
      _
    // Predicated region
    $region166: #{tpu_custom_call.1} parent=1 // pred_check
      _
    $region167: #{tpu_custom_call.1} parent=1 // pred_check_branch
      %3035 = sbr.rel (0) target = $region169
    $region168: #{tpu_custom_call.1} parent=1 // pred_region
      %s3037 = ssub.s32 1024, 1024
      %3038 = vsyncadd [#allocation24], %s3037
      %s3039 = sshll.u32 [#allocation23], 4
      %s3040 = int_to_ptr.vmem [resolvable:$true] %s3039
      %3045 = dma.vmem_to_hbm [thread:$0]  %s3040, 1024, %s59, [#allocation24], 128, 128, 8
    $region169: #{tpu_custom_call.1} parent=1 // pred_fallthru
      _
    // Predicated region
    $region170: #{tpu_custom_call.1} parent=1 // pred_check
      _
    $region171: #{tpu_custom_call.1} parent=1 // pred_check_branch
      %3047 = sbr.rel (0) target = $region173
    $region172: #{tpu_custom_call.1} parent=1 // pred_region
      %3048 = dma.done [#allocation4], 256
    $region173: #{tpu_custom_call.1} parent=1 // pred_fallthru
      _
    // Predicated region
    $region174: #{tpu_custom_call.1} parent=1 // pred_check
      _
    $region175: #{tpu_custom_call.1} parent=1 // pred_check_branch
      %3050 = sbr.rel (0) target = $region177
    $region176: #{tpu_custom_call.1} parent=1 // pred_region
      %3051 = dma.done [#allocation24], 1024
    $region177: #{tpu_custom_call.1} parent=1 // pred_fallthru
      _
    %3052 = vsyncpa [#allocation3], 1
    %3053 = vsyncpa [#allocation6], 1
    %3054 = vsyncpa [#allocation9], 1
    %3055 = vsyncpa [#allocation12], 1
    %3056 = vsyncpa [#allocation15], 1
    %3057 = vsyncpa [#allocation18], 1
    %3058 = vsyncpa [#allocation21], 1
    %3059 = vsyncpa [#allocation4], 1
    %3060 = vsyncpa [#allocation24], 1

</llo_original>
